<compile_context>
chip_gen: v7x
topology: tpu7x:2x2x1
jax: 0.10.0
libtpu: 0.0.40
codegen_flags: <defaults>
</compile_context>

<pallas_src>
import functools

import numpy as np
import jax
import jax.numpy as jnp
from jax.experimental import pallas as pl
from jax.experimental.pallas import tpu as pltpu


# ---------------------------------------------------------------------------
# the Pallas kernel: one fused UKF step over one batch tile
# ---------------------------------------------------------------------------
def _ukf_kernel(meas_ref, state_ref, cov_ref, pn_ref, mn_ref,
                y_ref, ns_ref, nc_ref, *, n, m, kappa, log_cholesky):
    sw = float(np.sqrt(n + kappa))
    w0 = float(kappa) / float(n + kappa)
    wi = 0.5 / float(n + kappa)
    ws = [w0] + [wi] * (2 * n)

    # Each ref[i] is a lane-dense (block_rows, 128) tile holding that scalar
    # quantity for every batch element of the current tile.
    mu = [state_ref[i] for i in range(n)]
    meas = [meas_ref[j] for j in range(m)]
    P = [[cov_ref[i * n + j] for j in range(n)] for i in range(n)]
    zero = jnp.zeros_like(mu[0])

    # --- noise covariances from (log-)Cholesky parameters: Q = Lq Lq^T, R = Lr Lr^T
    def tril_from_params(ref, k):
        L = [[zero] * k for _ in range(k)]
        idx = 0
        for i in range(k):
            for j in range(i + 1):          # torch.tril_indices row-major order
                v = ref[idx]
                if log_cholesky and i == j:
                    v = jnp.exp(v)
                L[i][j] = v
                idx += 1
        return L

    def square_lower(L, k):                 # symmetric S = L @ L^T
        S = [[None] * k for _ in range(k)]
        for i in range(k):
            for j in range(i + 1):
                acc = L[i][0] * L[j][0]
                for kk in range(1, j + 1):
                    acc = acc + L[i][kk] * L[j][kk]
                S[i][j] = acc
                S[j][i] = acc
        return S

    Q = square_lower(tril_from_params(pn_ref, n), n)
    R = square_lower(tril_from_params(mn_ref, m), m)

    # --- unrolled batched Cholesky (A = L L^T), pure elementwise ops
    def cholesky(S, k):
        L = [[zero] * k for _ in range(k)]
        for j in range(k):
            d = S[j][j]
            for kk in range(j):
                d = d - L[j][kk] * L[j][kk]
            dj = jnp.sqrt(d)
            inv_dj = 1.0 / dj
            L[j][j] = dj
            for i in range(j + 1, k):
                v = S[i][j]
                for kk in range(j):
                    v = v - L[i][kk] * L[j][kk]
                L[i][j] = v * inv_dj
        return L

    # ---------------- time update (motion model = identity) ----------------
    L0 = cholesky(P, n)
    # sigma-point deltas: d0 = 0, d_{1+i} = +sw*col_i(L0), d_{1+n+i} = -sw*col_i(L0)
    deltas = [[zero] * n]
    for i in range(n):
        deltas.append([sw * L0[r][i] for r in range(n)])
    for i in range(n):
        deltas.append([-sw * L0[r][i] for r in range(n)])

    # x = sum_k w_k (mu + d_k) = mu + sum_k w_k d_k   (sum of weights == 1)
    x = []
    for r in range(n):
        acc = ws[1] * deltas[1][r]
        for kk in range(2, 2 * n + 1):
            acc = acc + ws[kk] * deltas[kk][r]
        x.append(mu[r] + acc)

    # residuals r_k = (mu + d_k) - x
    shift = [mu[r] - x[r] for r in range(n)]
    res = [[deltas[k][r] + shift[r] for r in range(n)] for k in range(2 * n + 1)]

    x_cov = [[None] * n for _ in range(n)]
    for i in range(n):
        for j in range(i + 1):
            acc = ws[0] * (res[0][i] * res[0][j])
            for kk in range(1, 2 * n + 1):
                acc = acc + ws[kk] * (res[kk][i] * res[kk][j])
            v = acc + Q[i][j]
            x_cov[i][j] = v
            x_cov[j][i] = v

    # ------------- measurement update (measurement model = identity) -------
    # Exact identities of the unscented transform with an identity model:
    #   y == x, y_cov == x_cov + R, cov_sy == x_cov  -> second sigma pass removed.
    y = x
    y_cov = [[x_cov[i][j] + R[i][j] for j in range(m)] for i in range(m)]
    cov_sy = x_cov                                   # (n x m), n == m

    # SPD inverse of y_cov via Cholesky + unrolled triangular inverse
    Lc = cholesky(y_cov, m)
    inv_diag = [1.0 / Lc[i][i] for i in range(m)]
    Linv = [[zero] * m for _ in range(m)]
    for i in range(m):
        Linv[i][i] = inv_diag[i]
        for j in range(i):
            acc = Lc[i][j] * Linv[j][j]
            for kk in range(j + 1, i):
                acc = acc + Lc[i][kk] * Linv[kk][j]
            Linv[i][j] = -acc * inv_diag[i]

    y_cov_inv = [[None] * m for _ in range(m)]       # = Linv^T @ Linv
    for i in range(m):
        for j in range(i + 1):
            acc = Linv[i][i] * Linv[i][j]
            for kk in range(i + 1, m):
                acc = acc + Linv[kk][i] * Linv[kk][j]
            y_cov_inv[i][j] = acc
            y_cov_inv[j][i] = acc

    # gain = cov_sy @ y_cov_inv
    gain = [[None] * m for _ in range(n)]
    for i in range(n):
        for j in range(m):
            acc = cov_sy[i][0] * y_cov_inv[0][j]
            for kk in range(1, m):
                acc = acc + cov_sy[i][kk] * y_cov_inv[kk][j]
            gain[i][j] = acc

    # new_state = x + gain @ (measurement - y)
    innov = [meas[j] - y[j] for j in range(m)]
    for r in range(n):
        acc = gain[r][0] * innov[0]
        for j in range(1, m):
            acc = acc + gain[r][j] * innov[j]
        ns_ref[r] = x[r] + acc

    # new_cov = x_cov - gain @ (y_cov @ gain^T)
    tmp = [[None] * n for _ in range(m)]             # y_cov @ gain^T
    for i in range(m):
        for j in range(n):
            acc = y_cov[i][0] * gain[j][0]
            for kk in range(1, m):
                acc = acc + y_cov[i][kk] * gain[j][kk]
            tmp[i][j] = acc
    for i in range(n):
        for j in range(n):
            acc = gain[i][0] * tmp[0][j]
            for kk in range(1, m):
                acc = acc + gain[i][kk] * tmp[kk][j]
            nc_ref[i * n + j] = x_cov[i][j] - acc

    for j in range(m):
        y_ref[j] = y[j]


# ---------------------------------------------------------------------------
# wrapper: batch-in-lanes re-layout + batch-tiled pallas_call
# ---------------------------------------------------------------------------
def ukf_forward(measurement, state, state_cov, process_noise, measurement_noise,
                log_cholesky=True, max_block_rows=32):
    f32 = jnp.float32
    measurement = measurement.astype(f32)
    state = state.astype(f32)
    state_cov = state_cov.astype(f32)
    process_noise = process_noise.astype(f32)
    measurement_noise = measurement_noise.astype(f32)

    b, n = state.shape
    m = measurement.shape[1]
    assert m == n, "identity measurement model in UKFCell requires m == n"
    kappa = 3.0 - float(n)
    tn = n * (n + 1) // 2
    tm = m * (m + 1) // 2

    LANES = 128
    rows = max(1, -(-b // LANES))          # ceil(b / 128)
    rows = -(-rows // 8) * 8               # round up to a multiple of 8 sublanes
    sblk = min(rows, max_block_rows)       # sublane rows per grid step (multiple of 8)
    T = -(-rows // sblk)                   # number of batch tiles (grid size)
    rows_pad = T * sblk
    b_pad = rows_pad * LANES

    def to_lanes(x_bD, pad_col=None):
        # (b, D) -> (D, rows_pad, 128) with batch on (sublane, lane)
        D = x_bD.shape[1]
        xt = jnp.transpose(x_bD)
        if b_pad > b:
            if pad_col is None:
                pad = jnp.zeros((D, b_pad - b), f32)
            else:
                pad = jnp.broadcast_to(jnp.asarray(pad_col, f32)[:, None],
                                       (D, b_pad - b))
            xt = jnp.concatenate([xt, pad], axis=1)
        return xt.reshape(D, rows_pad, LANES)

    eye_flat = np.eye(n, dtype=np.float32).reshape(-1)   # SPD padding for covariances
    meas_l = to_lanes(measurement)
    state_l = to_lanes(state)
    cov_l = to_lanes(state_cov.reshape(b, n * n), pad_col=eye_flat)
    pn_l = to_lanes(process_noise)
    mn_l = to_lanes(measurement_noise)

    kernel = functools.partial(_ukf_kernel, n=n, m=m, kappa=kappa,
                               log_cholesky=log_cholesky)

    def spec(D):
        return pl.BlockSpec((D, sblk, LANES), lambda t: (0, t, 0))

    out_shape = (jax.ShapeDtypeStruct((m, rows_pad, LANES), f32),
                 jax.ShapeDtypeStruct((n, rows_pad, LANES), f32),
                 jax.ShapeDtypeStruct((n * n, rows_pad, LANES), f32))

    y_l, ns_l, nc_l = pl.pallas_call(
        kernel,
        grid=(T,),
        in_specs=[spec(m), spec(n), spec(n * n), spec(tn), spec(tm)],
        out_specs=(spec(m), spec(n), spec(n * n)),
        out_shape=out_shape,
        compiler_params=pltpu.CompilerParams(
            dimension_semantics=("parallel",)),   # batch tiles are independent
    )(meas_l, state_l, cov_l, pn_l, mn_l)

    def from_lanes(x_l):
        D = x_l.shape[0]
        return jnp.transpose(x_l.reshape(D, b_pad)[:, :b])

    y = from_lanes(y_l)
    new_state = from_lanes(ns_l)
    new_cov = from_lanes(nc_l).reshape(b, n, n)
    return y, new_state, new_cov


# ---------------------------------------------------------------------------
# pure-JAX reference (mirrors the PyTorch forward exactly) for verification
# ---------------------------------------------------------------------------
def ukf_reference(measurement, state, state_cov, pnoise, mnoise, log_cholesky=True):
    b, n = state.shape
    m = measurement.shape[1]
    kappa = 3.0 - float(n)

    def tril_sq(xlin, k):
        t = k * (k + 1) // 2
        diag_pos = np.array([i * (i + 3) // 2 for i in range(k)])
        mask = jnp.asarray(np.isin(np.arange(t), diag_pos))
        xe = jnp.where(mask[None, :], jnp.exp(xlin), xlin) if log_cholesky else xlin
        r, c = np.tril_indices(k)
        L = jnp.zeros((b, k, k), xlin.dtype).at[:, r, c].set(xe)
        return L @ jnp.swapaxes(L, 1, 2)

    Q = tril_sq(pnoise, n)
    R = tril_sq(mnoise, m)

    wvec = jnp.full((2 * n + 1,), 0.5 / (n + kappa),
                    dtype=jnp.float32).at[0].set(kappa / (n + kappa))
    w = wvec[None, None, :]

    def sigma(mu, cov):
        L = jnp.linalg.cholesky(cov)
        s = jnp.sqrt(jnp.float32(n + kappa))
        dx = jnp.concatenate([jnp.zeros((b, n, 1), jnp.float32), s * L, -s * L], axis=2)
        return mu[:, :, None] + dx

    sp = sigma(state, state_cov)
    xs = sp
    x = jnp.sum(w * xs, axis=2)
    x_res = xs - x[:, :, None]
    x_cov = (w * x_res) @ jnp.swapaxes(x_res, 1, 2) + Q

    sp2 = sigma(x, x_cov)
    ys = sp2
    y = jnp.sum(w * ys, axis=2)
    y_res = ys - y[:, :, None]
    y_cov = (w * y_res) @ jnp.swapaxes(y_res, 1, 2) + R

    s_res = sp2 - x[:, :, None]
    cov_sy = (w * s_res) @ jnp.swapaxes(y_res, 1, 2)
    gain = cov_sy @ jnp.linalg.inv(y_cov)
    new_state = x + (gain @ (measurement - y)[:, :, None])[:, :, 0]
    new_cov = x_cov - gain @ y_cov @ jnp.swapaxes(gain, 1, 2)
    return y, new_state, new_cov


def _make_inputs(key, b, n, m):
    k1, k2, k3, k4, k5 = jax.random.split(key, 5)
    measurement = jax.random.normal(k1, (b, m), dtype=jnp.float32)
    state = jax.random.normal(k2, (b, n), dtype=jnp.float32)
    A = jax.random.normal(k3, (b, n, n), dtype=jnp.float32)
    state_cov = jnp.einsum('bik,bjk->bij', A, A) + 0.5 * jnp.eye(n, dtype=jnp.float32)[None]
    process_noise = 0.05 * jax.random.normal(k4, (b, n * (n + 1) // 2), dtype=jnp.float32)
    measurement_noise = 0.05 * jax.random.normal(k5, (b, m * (m + 1) // 2), dtype=jnp.float32)
    return measurement, state, state_cov, process_noise, measurement_noise


if __name__ == "__main__":
    n = m = 4                      # state dim == measurement dim (identity model)
    key = jax.random.PRNGKey(0)
    k_small, k_big = jax.random.split(key, 2)

    # ---- small batch (module default style): b = 2, single grid tile, padded
    meas, st, cov, pn, mn = _make_inputs(k_small, 2, n, m)
    y, ns, nc = ukf_forward(meas, st, cov, pn, mn)
    jax.block_until_ready((y, ns, nc))
    y_r, ns_r, nc_r = ukf_reference(meas, st, cov, pn, mn)
    np.testing.assert_allclose(np.asarray(y), np.asarray(y_r), rtol=2e-3, atol=2e-3)
    np.testing.assert_allclose(np.asarray(ns), np.asarray(ns_r), rtol=2e-3, atol=2e-3)
    np.testing.assert_allclose(np.asarray(nc), np.asarray(nc_r), rtol=2e-3, atol=2e-3)

    # ---- larger batch: exercises the batch-tiled grid (T > 1) and padding
    meas, st, cov, pn, mn = _make_inputs(k_big, 2000, n, m)
    y, ns, nc = ukf_forward(meas, st, cov, pn, mn, max_block_rows=8)  # -> 2 grid tiles
    jax.block_until_ready((y, ns, nc))
    y_r, ns_r, nc_r = ukf_reference(meas, st, cov, pn, mn)
    np.testing.assert_allclose(np.asarray(y), np.asarray(y_r), rtol=2e-3, atol=2e-3)
    np.testing.assert_allclose(np.asarray(ns), np.asarray(ns_r), rtol=2e-3, atol=2e-3)
    np.testing.assert_allclose(np.asarray(nc), np.asarray(nc_r), rtol=2e-3, atol=2e-3)

    print("KERNEL_OK")
</pallas_src>

<mosaic_0001>
module attributes {stable_mosaic.version = 11 : i64} {
  func.func @_ukf_kernel(%arg0: i32, %arg1: memref<4x8x128xf32, #tpu.memory_space<vmem>>, %arg2: memref<4x8x128xf32, #tpu.memory_space<vmem>>, %arg3: memref<16x8x128xf32, #tpu.memory_space<vmem>>, %arg4: memref<10x8x128xf32, #tpu.memory_space<vmem>>, %arg5: memref<10x8x128xf32, #tpu.memory_space<vmem>>, %arg6: memref<4x8x128xf32, #tpu.memory_space<vmem>>, %arg7: memref<4x8x128xf32, #tpu.memory_space<vmem>>, %arg8: memref<16x8x128xf32, #tpu.memory_space<vmem>>) attributes {dimension_semantics = [#tpu.dimension_semantics<parallel>], iteration_bounds = array<i64: 1>, scalar_prefetch = 0 : i64, scratch_operands = 0 : i64, tpu.core_type = #tpu.core_type<tc>, window_params = [{transform_indices = @transform_0, window_bounds = array<i64: 4, 8, 128>}, {transform_indices = @transform_1, window_bounds = array<i64: 4, 8, 128>}, {transform_indices = @transform_2, window_bounds = array<i64: 16, 8, 128>}, {transform_indices = @transform_3, window_bounds = array<i64: 10, 8, 128>}, {transform_indices = @transform_4, window_bounds = array<i64: 10, 8, 128>}, {transform_indices = @transform_5, window_bounds = array<i64: 4, 8, 128>}, {transform_indices = @transform_6, window_bounds = array<i64: 4, 8, 128>}, {transform_indices = @transform_7, window_bounds = array<i64: 16, 8, 128>}]} {
    %c0 = arith.constant 0 : index
    %c0_0 = arith.constant 0 : index
    %c0_1 = arith.constant 0 : index
    %0 = vector.load %arg2[%c0, %c0_0, %c0_1] : memref<4x8x128xf32, #tpu.memory_space<vmem>>, vector<1x8x128xf32>
    %1 = vector.shape_cast %0 : vector<1x8x128xf32> to vector<8x128xf32>
    %c1 = arith.constant 1 : index
    %c0_2 = arith.constant 0 : index
    %c0_3 = arith.constant 0 : index
    %2 = vector.load %arg2[%c1, %c0_2, %c0_3] : memref<4x8x128xf32, #tpu.memory_space<vmem>>, vector<1x8x128xf32>
    %3 = vector.shape_cast %2 : vector<1x8x128xf32> to vector<8x128xf32>
    %c2 = arith.constant 2 : index
    %c0_4 = arith.constant 0 : index
    %c0_5 = arith.constant 0 : index
    %4 = vector.load %arg2[%c2, %c0_4, %c0_5] : memref<4x8x128xf32, #tpu.memory_space<vmem>>, vector<1x8x128xf32>
    %5 = vector.shape_cast %4 : vector<1x8x128xf32> to vector<8x128xf32>
    %c3 = arith.constant 3 : index
    %c0_6 = arith.constant 0 : index
    %c0_7 = arith.constant 0 : index
    %6 = vector.load %arg2[%c3, %c0_6, %c0_7] : memref<4x8x128xf32, #tpu.memory_space<vmem>>, vector<1x8x128xf32>
    %7 = vector.shape_cast %6 : vector<1x8x128xf32> to vector<8x128xf32>
    %c0_8 = arith.constant 0 : index
    %c0_9 = arith.constant 0 : index
    %c0_10 = arith.constant 0 : index
    %8 = vector.load %arg1[%c0_8, %c0_9, %c0_10] : memref<4x8x128xf32, #tpu.memory_space<vmem>>, vector<1x8x128xf32>
    %9 = vector.shape_cast %8 : vector<1x8x128xf32> to vector<8x128xf32>
    %c1_11 = arith.constant 1 : index
    %c0_12 = arith.constant 0 : index
    %c0_13 = arith.constant 0 : index
    %10 = vector.load %arg1[%c1_11, %c0_12, %c0_13] : memref<4x8x128xf32, #tpu.memory_space<vmem>>, vector<1x8x128xf32>
    %11 = vector.shape_cast %10 : vector<1x8x128xf32> to vector<8x128xf32>
    %c2_14 = arith.constant 2 : index
    %c0_15 = arith.constant 0 : index
    %c0_16 = arith.constant 0 : index
    %12 = vector.load %arg1[%c2_14, %c0_15, %c0_16] : memref<4x8x128xf32, #tpu.memory_space<vmem>>, vector<1x8x128xf32>
    %13 = vector.shape_cast %12 : vector<1x8x128xf32> to vector<8x128xf32>
    %c3_17 = arith.constant 3 : index
    %c0_18 = arith.constant 0 : index
    %c0_19 = arith.constant 0 : index
    %14 = vector.load %arg1[%c3_17, %c0_18, %c0_19] : memref<4x8x128xf32, #tpu.memory_space<vmem>>, vector<1x8x128xf32>
    %15 = vector.shape_cast %14 : vector<1x8x128xf32> to vector<8x128xf32>
    %c0_20 = arith.constant 0 : index
    %c0_21 = arith.constant 0 : index
    %c0_22 = arith.constant 0 : index
    %16 = vector.load %arg3[%c0_20, %c0_21, %c0_22] : memref<16x8x128xf32, #tpu.memory_space<vmem>>, vector<1x8x128xf32>
    %17 = vector.shape_cast %16 : vector<1x8x128xf32> to vector<8x128xf32>
    %c4 = arith.constant 4 : index
    %c0_23 = arith.constant 0 : index
    %c0_24 = arith.constant 0 : index
    %18 = vector.load %arg3[%c4, %c0_23, %c0_24] : memref<16x8x128xf32, #tpu.memory_space<vmem>>, vector<1x8x128xf32>
    %19 = vector.shape_cast %18 : vector<1x8x128xf32> to vector<8x128xf32>
    %c5 = arith.constant 5 : index
    %c0_25 = arith.constant 0 : index
    %c0_26 = arith.constant 0 : index
    %20 = vector.load %arg3[%c5, %c0_25, %c0_26] : memref<16x8x128xf32, #tpu.memory_space<vmem>>, vector<1x8x128xf32>
    %21 = vector.shape_cast %20 : vector<1x8x128xf32> to vector<8x128xf32>
    %c8 = arith.constant 8 : index
    %c0_27 = arith.constant 0 : index
    %c0_28 = arith.constant 0 : index
    %22 = vector.load %arg3[%c8, %c0_27, %c0_28] : memref<16x8x128xf32, #tpu.memory_space<vmem>>, vector<1x8x128xf32>
    %23 = vector.shape_cast %22 : vector<1x8x128xf32> to vector<8x128xf32>
    %c9 = arith.constant 9 : index
    %c0_29 = arith.constant 0 : index
    %c0_30 = arith.constant 0 : index
    %24 = vector.load %arg3[%c9, %c0_29, %c0_30] : memref<16x8x128xf32, #tpu.memory_space<vmem>>, vector<1x8x128xf32>
    %25 = vector.shape_cast %24 : vector<1x8x128xf32> to vector<8x128xf32>
    %c10 = arith.constant 10 : index
    %c0_31 = arith.constant 0 : index
    %c0_32 = arith.constant 0 : index
    %26 = vector.load %arg3[%c10, %c0_31, %c0_32] : memref<16x8x128xf32, #tpu.memory_space<vmem>>, vector<1x8x128xf32>
    %27 = vector.shape_cast %26 : vector<1x8x128xf32> to vector<8x128xf32>
    %c12 = arith.constant 12 : index
    %c0_33 = arith.constant 0 : index
    %c0_34 = arith.constant 0 : index
    %28 = vector.load %arg3[%c12, %c0_33, %c0_34] : memref<16x8x128xf32, #tpu.memory_space<vmem>>, vector<1x8x128xf32>
    %29 = vector.shape_cast %28 : vector<1x8x128xf32> to vector<8x128xf32>
    %c13 = arith.constant 13 : index
    %c0_35 = arith.constant 0 : index
    %c0_36 = arith.constant 0 : index
    %30 = vector.load %arg3[%c13, %c0_35, %c0_36] : memref<16x8x128xf32, #tpu.memory_space<vmem>>, vector<1x8x128xf32>
    %31 = vector.shape_cast %30 : vector<1x8x128xf32> to vector<8x128xf32>
    %c14 = arith.constant 14 : index
    %c0_37 = arith.constant 0 : index
    %c0_38 = arith.constant 0 : index
    %32 = vector.load %arg3[%c14, %c0_37, %c0_38] : memref<16x8x128xf32, #tpu.memory_space<vmem>>, vector<1x8x128xf32>
    %33 = vector.shape_cast %32 : vector<1x8x128xf32> to vector<8x128xf32>
    %c15 = arith.constant 15 : index
    %c0_39 = arith.constant 0 : index
    %c0_40 = arith.constant 0 : index
    %34 = vector.load %arg3[%c15, %c0_39, %c0_40] : memref<16x8x128xf32, #tpu.memory_space<vmem>>, vector<1x8x128xf32>
    %35 = vector.shape_cast %34 : vector<1x8x128xf32> to vector<8x128xf32>
    %cst = arith.constant 0.000000e+00 : f32
    %36 = vector.broadcast %cst : f32 to vector<8x128xf32>
    %c0_41 = arith.constant 0 : index
    %c0_42 = arith.constant 0 : index
    %c0_43 = arith.constant 0 : index
    %37 = vector.load %arg4[%c0_41, %c0_42, %c0_43] : memref<10x8x128xf32, #tpu.memory_space<vmem>>, vector<1x8x128xf32>
    %38 = vector.shape_cast %37 : vector<1x8x128xf32> to vector<8x128xf32>
    %39 = math.exp %38 : vector<8x128xf32>
    %c1_44 = arith.constant 1 : index
    %c0_45 = arith.constant 0 : index
    %c0_46 = arith.constant 0 : index
    %40 = vector.load %arg4[%c1_44, %c0_45, %c0_46] : memref<10x8x128xf32, #tpu.memory_space<vmem>>, vector<1x8x128xf32>
    %41 = vector.shape_cast %40 : vector<1x8x128xf32> to vector<8x128xf32>
    %c2_47 = arith.constant 2 : index
    %c0_48 = arith.constant 0 : index
    %c0_49 = arith.constant 0 : index
    %42 = vector.load %arg4[%c2_47, %c0_48, %c0_49] : memref<10x8x128xf32, #tpu.memory_space<vmem>>, vector<1x8x128xf32>
    %43 = vector.shape_cast %42 : vector<1x8x128xf32> to vector<8x128xf32>
    %44 = math.exp %43 : vector<8x128xf32>
    %c3_50 = arith.constant 3 : index
    %c0_51 = arith.constant 0 : index
    %c0_52 = arith.constant 0 : index
    %45 = vector.load %arg4[%c3_50, %c0_51, %c0_52] : memref<10x8x128xf32, #tpu.memory_space<vmem>>, vector<1x8x128xf32>
    %46 = vector.shape_cast %45 : vector<1x8x128xf32> to vector<8x128xf32>
    %c4_53 = arith.constant 4 : index
    %c0_54 = arith.constant 0 : index
    %c0_55 = arith.constant 0 : index
    %47 = vector.load %arg4[%c4_53, %c0_54, %c0_55] : memref<10x8x128xf32, #tpu.memory_space<vmem>>, vector<1x8x128xf32>
    %48 = vector.shape_cast %47 : vector<1x8x128xf32> to vector<8x128xf32>
    %c5_56 = arith.constant 5 : index
    %c0_57 = arith.constant 0 : index
    %c0_58 = arith.constant 0 : index
    %49 = vector.load %arg4[%c5_56, %c0_57, %c0_58] : memref<10x8x128xf32, #tpu.memory_space<vmem>>, vector<1x8x128xf32>
    %50 = vector.shape_cast %49 : vector<1x8x128xf32> to vector<8x128xf32>
    %51 = math.exp %50 : vector<8x128xf32>
    %c6 = arith.constant 6 : index
    %c0_59 = arith.constant 0 : index
    %c0_60 = arith.constant 0 : index
    %52 = vector.load %arg4[%c6, %c0_59, %c0_60] : memref<10x8x128xf32, #tpu.memory_space<vmem>>, vector<1x8x128xf32>
    %53 = vector.shape_cast %52 : vector<1x8x128xf32> to vector<8x128xf32>
    %c7 = arith.constant 7 : index
    %c0_61 = arith.constant 0 : index
    %c0_62 = arith.constant 0 : index
    %54 = vector.load %arg4[%c7, %c0_61, %c0_62] : memref<10x8x128xf32, #tpu.memory_space<vmem>>, vector<1x8x128xf32>
    %55 = vector.shape_cast %54 : vector<1x8x128xf32> to vector<8x128xf32>
    %c8_63 = arith.constant 8 : index
    %c0_64 = arith.constant 0 : index
    %c0_65 = arith.constant 0 : index
    %56 = vector.load %arg4[%c8_63, %c0_64, %c0_65] : memref<10x8x128xf32, #tpu.memory_space<vmem>>, vector<1x8x128xf32>
    %57 = vector.shape_cast %56 : vector<1x8x128xf32> to vector<8x128xf32>
    %c9_66 = arith.constant 9 : index
    %c0_67 = arith.constant 0 : index
    %c0_68 = arith.constant 0 : index
    %58 = vector.load %arg4[%c9_66, %c0_67, %c0_68] : memref<10x8x128xf32, #tpu.memory_space<vmem>>, vector<1x8x128xf32>
    %59 = vector.shape_cast %58 : vector<1x8x128xf32> to vector<8x128xf32>
    %60 = math.exp %59 : vector<8x128xf32>
    %61 = arith.mulf %39, %39 : vector<8x128xf32>
    %62 = arith.mulf %41, %39 : vector<8x128xf32>
    %63 = arith.mulf %41, %41 : vector<8x128xf32>
    %64 = arith.mulf %44, %44 : vector<8x128xf32>
    %65 = arith.addf %63, %64 : vector<8x128xf32>
    %66 = arith.mulf %46, %39 : vector<8x128xf32>
    %67 = arith.mulf %46, %41 : vector<8x128xf32>
    %68 = arith.mulf %48, %44 : vector<8x128xf32>
    %69 = arith.addf %67, %68 : vector<8x128xf32>
    %70 = arith.mulf %46, %46 : vector<8x128xf32>
    %71 = arith.mulf %48, %48 : vector<8x128xf32>
    %72 = arith.addf %70, %71 : vector<8x128xf32>
    %73 = arith.mulf %51, %51 : vector<8x128xf32>
    %74 = arith.addf %72, %73 : vector<8x128xf32>
    %75 = arith.mulf %53, %39 : vector<8x128xf32>
    %76 = arith.mulf %53, %41 : vector<8x128xf32>
    %77 = arith.mulf %55, %44 : vector<8x128xf32>
    %78 = arith.addf %76, %77 : vector<8x128xf32>
    %79 = arith.mulf %53, %46 : vector<8x128xf32>
    %80 = arith.mulf %55, %48 : vector<8x128xf32>
    %81 = arith.addf %79, %80 : vector<8x128xf32>
    %82 = arith.mulf %57, %51 : vector<8x128xf32>
    %83 = arith.addf %81, %82 : vector<8x128xf32>
    %84 = arith.mulf %53, %53 : vector<8x128xf32>
    %85 = arith.mulf %55, %55 : vector<8x128xf32>
    %86 = arith.addf %84, %85 : vector<8x128xf32>
    %87 = arith.mulf %57, %57 : vector<8x128xf32>
    %88 = arith.addf %86, %87 : vector<8x128xf32>
    %89 = arith.mulf %60, %60 : vector<8x128xf32>
    %90 = arith.addf %88, %89 : vector<8x128xf32>
    %c0_69 = arith.constant 0 : index
    %c0_70 = arith.constant 0 : index
    %c0_71 = arith.constant 0 : index
    %91 = vector.load %arg5[%c0_69, %c0_70, %c0_71] : memref<10x8x128xf32, #tpu.memory_space<vmem>>, vector<1x8x128xf32>
    %92 = vector.shape_cast %91 : vector<1x8x128xf32> to vector<8x128xf32>
    %93 = math.exp %92 : vector<8x128xf32>
    %c1_72 = arith.constant 1 : index
    %c0_73 = arith.constant 0 : index
    %c0_74 = arith.constant 0 : index
    %94 = vector.load %arg5[%c1_72, %c0_73, %c0_74] : memref<10x8x128xf32, #tpu.memory_space<vmem>>, vector<1x8x128xf32>
    %95 = vector.shape_cast %94 : vector<1x8x128xf32> to vector<8x128xf32>
    %c2_75 = arith.constant 2 : index
    %c0_76 = arith.constant 0 : index
    %c0_77 = arith.constant 0 : index
    %96 = vector.load %arg5[%c2_75, %c0_76, %c0_77] : memref<10x8x128xf32, #tpu.memory_space<vmem>>, vector<1x8x128xf32>
    %97 = vector.shape_cast %96 : vector<1x8x128xf32> to vector<8x128xf32>
    %98 = math.exp %97 : vector<8x128xf32>
    %c3_78 = arith.constant 3 : index
    %c0_79 = arith.constant 0 : index
    %c0_80 = arith.constant 0 : index
    %99 = vector.load %arg5[%c3_78, %c0_79, %c0_80] : memref<10x8x128xf32, #tpu.memory_space<vmem>>, vector<1x8x128xf32>
    %100 = vector.shape_cast %99 : vector<1x8x128xf32> to vector<8x128xf32>
    %c4_81 = arith.constant 4 : index
    %c0_82 = arith.constant 0 : index
    %c0_83 = arith.constant 0 : index
    %101 = vector.load %arg5[%c4_81, %c0_82, %c0_83] : memref<10x8x128xf32, #tpu.memory_space<vmem>>, vector<1x8x128xf32>
    %102 = vector.shape_cast %101 : vector<1x8x128xf32> to vector<8x128xf32>
    %c5_84 = arith.constant 5 : index
    %c0_85 = arith.constant 0 : index
    %c0_86 = arith.constant 0 : index
    %103 = vector.load %arg5[%c5_84, %c0_85, %c0_86] : memref<10x8x128xf32, #tpu.memory_space<vmem>>, vector<1x8x128xf32>
    %104 = vector.shape_cast %103 : vector<1x8x128xf32> to vector<8x128xf32>
    %105 = math.exp %104 : vector<8x128xf32>
    %c6_87 = arith.constant 6 : index
    %c0_88 = arith.constant 0 : index
    %c0_89 = arith.constant 0 : index
    %106 = vector.load %arg5[%c6_87, %c0_88, %c0_89] : memref<10x8x128xf32, #tpu.memory_space<vmem>>, vector<1x8x128xf32>
    %107 = vector.shape_cast %106 : vector<1x8x128xf32> to vector<8x128xf32>
    %c7_90 = arith.constant 7 : index
    %c0_91 = arith.constant 0 : index
    %c0_92 = arith.constant 0 : index
    %108 = vector.load %arg5[%c7_90, %c0_91, %c0_92] : memref<10x8x128xf32, #tpu.memory_space<vmem>>, vector<1x8x128xf32>
    %109 = vector.shape_cast %108 : vector<1x8x128xf32> to vector<8x128xf32>
    %c8_93 = arith.constant 8 : index
    %c0_94 = arith.constant 0 : index
    %c0_95 = arith.constant 0 : index
    %110 = vector.load %arg5[%c8_93, %c0_94, %c0_95] : memref<10x8x128xf32, #tpu.memory_space<vmem>>, vector<1x8x128xf32>
    %111 = vector.shape_cast %110 : vector<1x8x128xf32> to vector<8x128xf32>
    %c9_96 = arith.constant 9 : index
    %c0_97 = arith.constant 0 : index
    %c0_98 = arith.constant 0 : index
    %112 = vector.load %arg5[%c9_96, %c0_97, %c0_98] : memref<10x8x128xf32, #tpu.memory_space<vmem>>, vector<1x8x128xf32>
    %113 = vector.shape_cast %112 : vector<1x8x128xf32> to vector<8x128xf32>
    %114 = math.exp %113 : vector<8x128xf32>
    %115 = arith.mulf %93, %93 : vector<8x128xf32>
    %116 = arith.mulf %95, %93 : vector<8x128xf32>
    %117 = arith.mulf %95, %95 : vector<8x128xf32>
    %118 = arith.mulf %98, %98 : vector<8x128xf32>
    %119 = arith.addf %117, %118 : vector<8x128xf32>
    %120 = arith.mulf %100, %93 : vector<8x128xf32>
    %121 = arith.mulf %100, %95 : vector<8x128xf32>
    %122 = arith.mulf %102, %98 : vector<8x128xf32>
    %123 = arith.addf %121, %122 : vector<8x128xf32>
    %124 = arith.mulf %100, %100 : vector<8x128xf32>
    %125 = arith.mulf %102, %102 : vector<8x128xf32>
    %126 = arith.addf %124, %125 : vector<8x128xf32>
    %127 = arith.mulf %105, %105 : vector<8x128xf32>
    %128 = arith.addf %126, %127 : vector<8x128xf32>
    %129 = arith.mulf %107, %93 : vector<8x128xf32>
    %130 = arith.mulf %107, %95 : vector<8x128xf32>
    %131 = arith.mulf %109, %98 : vector<8x128xf32>
    %132 = arith.addf %130, %131 : vector<8x128xf32>
    %133 = arith.mulf %107, %100 : vector<8x128xf32>
    %134 = arith.mulf %109, %102 : vector<8x128xf32>
    %135 = arith.addf %133, %134 : vector<8x128xf32>
    %136 = arith.mulf %111, %105 : vector<8x128xf32>
    %137 = arith.addf %135, %136 : vector<8x128xf32>
    %138 = arith.mulf %107, %107 : vector<8x128xf32>
    %139 = arith.mulf %109, %109 : vector<8x128xf32>
    %140 = arith.addf %138, %139 : vector<8x128xf32>
    %141 = arith.mulf %111, %111 : vector<8x128xf32>
    %142 = arith.addf %140, %141 : vector<8x128xf32>
    %143 = arith.mulf %114, %114 : vector<8x128xf32>
    %144 = arith.addf %142, %143 : vector<8x128xf32>
    %145 = math.sqrt %17 : vector<8x128xf32>
    %cst_99 = arith.constant 1.000000e+00 : f32
    %146 = vector.broadcast %cst_99 : f32 to vector<8x128xf32>
    %147 = arith.divf %146, %145 : vector<8x128xf32>
    %148 = arith.mulf %19, %147 : vector<8x128xf32>
    %149 = arith.mulf %23, %147 : vector<8x128xf32>
    %150 = arith.mulf %29, %147 : vector<8x128xf32>
    %151 = arith.mulf %148, %148 : vector<8x128xf32>
    %152 = arith.subf %21, %151 : vector<8x128xf32>
    %153 = math.sqrt %152 : vector<8x128xf32>
    %cst_100 = arith.constant 1.000000e+00 : f32
    %154 = vector.broadcast %cst_100 : f32 to vector<8x128xf32>
    %155 = arith.divf %154, %153 : vector<8x128xf32>
    %156 = arith.mulf %149, %148 : vector<8x128xf32>
    %157 = arith.subf %25, %156 : vector<8x128xf32>
    %158 = arith.mulf %157, %155 : vector<8x128xf32>
    %159 = arith.mulf %150, %148 : vector<8x128xf32>
    %160 = arith.subf %31, %159 : vector<8x128xf32>
    %161 = arith.mulf %160, %155 : vector<8x128xf32>
    %162 = arith.mulf %149, %149 : vector<8x128xf32>
    %163 = arith.subf %27, %162 : vector<8x128xf32>
    %164 = arith.mulf %158, %158 : vector<8x128xf32>
    %165 = arith.subf %163, %164 : vector<8x128xf32>
    %166 = math.sqrt %165 : vector<8x128xf32>
    %cst_101 = arith.constant 1.000000e+00 : f32
    %167 = vector.broadcast %cst_101 : f32 to vector<8x128xf32>
    %168 = arith.divf %167, %166 : vector<8x128xf32>
    %169 = arith.mulf %150, %149 : vector<8x128xf32>
    %170 = arith.subf %33, %169 : vector<8x128xf32>
    %171 = arith.mulf %161, %158 : vector<8x128xf32>
    %172 = arith.subf %170, %171 : vector<8x128xf32>
    %173 = arith.mulf %172, %168 : vector<8x128xf32>
    %174 = arith.mulf %150, %150 : vector<8x128xf32>
    %175 = arith.subf %35, %174 : vector<8x128xf32>
    %176 = arith.mulf %161, %161 : vector<8x128xf32>
    %177 = arith.subf %175, %176 : vector<8x128xf32>
    %178 = arith.mulf %173, %173 : vector<8x128xf32>
    %179 = arith.subf %177, %178 : vector<8x128xf32>
    %180 = math.sqrt %179 : vector<8x128xf32>
    %cst_102 = arith.constant 1.73205078 : f32
    %181 = vector.broadcast %cst_102 : f32 to vector<8x128xf32>
    %182 = arith.mulf %181, %145 : vector<8x128xf32>
    %cst_103 = arith.constant 1.73205078 : f32
    %183 = vector.broadcast %cst_103 : f32 to vector<8x128xf32>
    %184 = arith.mulf %183, %148 : vector<8x128xf32>
    %cst_104 = arith.constant 1.73205078 : f32
    %185 = vector.broadcast %cst_104 : f32 to vector<8x128xf32>
    %186 = arith.mulf %185, %149 : vector<8x128xf32>
    %cst_105 = arith.constant 1.73205078 : f32
    %187 = vector.broadcast %cst_105 : f32 to vector<8x128xf32>
    %188 = arith.mulf %187, %150 : vector<8x128xf32>
    %cst_106 = arith.constant 1.73205078 : f32
    %189 = vector.broadcast %cst_106 : f32 to vector<8x128xf32>
    %190 = arith.mulf %189, %36 : vector<8x128xf32>
    %cst_107 = arith.constant 1.73205078 : f32
    %191 = vector.broadcast %cst_107 : f32 to vector<8x128xf32>
    %192 = arith.mulf %191, %153 : vector<8x128xf32>
    %cst_108 = arith.constant 1.73205078 : f32
    %193 = vector.broadcast %cst_108 : f32 to vector<8x128xf32>
    %194 = arith.mulf %193, %158 : vector<8x128xf32>
    %cst_109 = arith.constant 1.73205078 : f32
    %195 = vector.broadcast %cst_109 : f32 to vector<8x128xf32>
    %196 = arith.mulf %195, %161 : vector<8x128xf32>
    %cst_110 = arith.constant 1.73205078 : f32
    %197 = vector.broadcast %cst_110 : f32 to vector<8x128xf32>
    %198 = arith.mulf %197, %36 : vector<8x128xf32>
    %cst_111 = arith.constant 1.73205078 : f32
    %199 = vector.broadcast %cst_111 : f32 to vector<8x128xf32>
    %200 = arith.mulf %199, %36 : vector<8x128xf32>
    %cst_112 = arith.constant 1.73205078 : f32
    %201 = vector.broadcast %cst_112 : f32 to vector<8x128xf32>
    %202 = arith.mulf %201, %166 : vector<8x128xf32>
    %cst_113 = arith.constant 1.73205078 : f32
    %203 = vector.broadcast %cst_113 : f32 to vector<8x128xf32>
    %204 = arith.mulf %203, %173 : vector<8x128xf32>
    %cst_114 = arith.constant 1.73205078 : f32
    %205 = vector.broadcast %cst_114 : f32 to vector<8x128xf32>
    %206 = arith.mulf %205, %36 : vector<8x128xf32>
    %cst_115 = arith.constant 1.73205078 : f32
    %207 = vector.broadcast %cst_115 : f32 to vector<8x128xf32>
    %208 = arith.mulf %207, %36 : vector<8x128xf32>
    %cst_116 = arith.constant 1.73205078 : f32
    %209 = vector.broadcast %cst_116 : f32 to vector<8x128xf32>
    %210 = arith.mulf %209, %36 : vector<8x128xf32>
    %cst_117 = arith.constant 1.73205078 : f32
    %211 = vector.broadcast %cst_117 : f32 to vector<8x128xf32>
    %212 = arith.mulf %211, %180 : vector<8x128xf32>
    %cst_118 = arith.constant -1.73205078 : f32
    %213 = vector.broadcast %cst_118 : f32 to vector<8x128xf32>
    %214 = arith.mulf %213, %145 : vector<8x128xf32>
    %cst_119 = arith.constant -1.73205078 : f32
    %215 = vector.broadcast %cst_119 : f32 to vector<8x128xf32>
    %216 = arith.mulf %215, %148 : vector<8x128xf32>
    %cst_120 = arith.constant -1.73205078 : f32
    %217 = vector.broadcast %cst_120 : f32 to vector<8x128xf32>
    %218 = arith.mulf %217, %149 : vector<8x128xf32>
    %cst_121 = arith.constant -1.73205078 : f32
    %219 = vector.broadcast %cst_121 : f32 to vector<8x128xf32>
    %220 = arith.mulf %219, %150 : vector<8x128xf32>
    %cst_122 = arith.constant -1.73205078 : f32
    %221 = vector.broadcast %cst_122 : f32 to vector<8x128xf32>
    %222 = arith.mulf %221, %36 : vector<8x128xf32>
    %cst_123 = arith.constant -1.73205078 : f32
    %223 = vector.broadcast %cst_123 : f32 to vector<8x128xf32>
    %224 = arith.mulf %223, %153 : vector<8x128xf32>
    %cst_124 = arith.constant -1.73205078 : f32
    %225 = vector.broadcast %cst_124 : f32 to vector<8x128xf32>
    %226 = arith.mulf %225, %158 : vector<8x128xf32>
    %cst_125 = arith.constant -1.73205078 : f32
    %227 = vector.broadcast %cst_125 : f32 to vector<8x128xf32>
    %228 = arith.mulf %227, %161 : vector<8x128xf32>
    %cst_126 = arith.constant -1.73205078 : f32
    %229 = vector.broadcast %cst_126 : f32 to vector<8x128xf32>
    %230 = arith.mulf %229, %36 : vector<8x128xf32>
    %cst_127 = arith.constant -1.73205078 : f32
    %231 = vector.broadcast %cst_127 : f32 to vector<8x128xf32>
    %232 = arith.mulf %231, %36 : vector<8x128xf32>
    %cst_128 = arith.constant -1.73205078 : f32
    %233 = vector.broadcast %cst_128 : f32 to vector<8x128xf32>
    %234 = arith.mulf %233, %166 : vector<8x128xf32>
    %cst_129 = arith.constant -1.73205078 : f32
    %235 = vector.broadcast %cst_129 : f32 to vector<8x128xf32>
    %236 = arith.mulf %235, %173 : vector<8x128xf32>
    %cst_130 = arith.constant -1.73205078 : f32
    %237 = vector.broadcast %cst_130 : f32 to vector<8x128xf32>
    %238 = arith.mulf %237, %36 : vector<8x128xf32>
    %cst_131 = arith.constant -1.73205078 : f32
    %239 = vector.broadcast %cst_131 : f32 to vector<8x128xf32>
    %240 = arith.mulf %239, %36 : vector<8x128xf32>
    %cst_132 = arith.constant -1.73205078 : f32
    %241 = vector.broadcast %cst_132 : f32 to vector<8x128xf32>
    %242 = arith.mulf %241, %36 : vector<8x128xf32>
    %cst_133 = arith.constant -1.73205078 : f32
    %243 = vector.broadcast %cst_133 : f32 to vector<8x128xf32>
    %244 = arith.mulf %243, %180 : vector<8x128xf32>
    %cst_134 = arith.constant 0.166666672 : f32
    %245 = vector.broadcast %cst_134 : f32 to vector<8x128xf32>
    %246 = arith.mulf %245, %182 : vector<8x128xf32>
    %cst_135 = arith.constant 0.166666672 : f32
    %247 = vector.broadcast %cst_135 : f32 to vector<8x128xf32>
    %248 = arith.mulf %247, %190 : vector<8x128xf32>
    %249 = arith.addf %246, %248 : vector<8x128xf32>
    %cst_136 = arith.constant 0.166666672 : f32
    %250 = vector.broadcast %cst_136 : f32 to vector<8x128xf32>
    %251 = arith.mulf %250, %198 : vector<8x128xf32>
    %252 = arith.addf %249, %251 : vector<8x128xf32>
    %cst_137 = arith.constant 0.166666672 : f32
    %253 = vector.broadcast %cst_137 : f32 to vector<8x128xf32>
    %254 = arith.mulf %253, %206 : vector<8x128xf32>
    %255 = arith.addf %252, %254 : vector<8x128xf32>
    %cst_138 = arith.constant 0.166666672 : f32
    %256 = vector.broadcast %cst_138 : f32 to vector<8x128xf32>
    %257 = arith.mulf %256, %214 : vector<8x128xf32>
    %258 = arith.addf %255, %257 : vector<8x128xf32>
    %cst_139 = arith.constant 0.166666672 : f32
    %259 = vector.broadcast %cst_139 : f32 to vector<8x128xf32>
    %260 = arith.mulf %259, %222 : vector<8x128xf32>
    %261 = arith.addf %258, %260 : vector<8x128xf32>
    %cst_140 = arith.constant 0.166666672 : f32
    %262 = vector.broadcast %cst_140 : f32 to vector<8x128xf32>
    %263 = arith.mulf %262, %230 : vector<8x128xf32>
    %264 = arith.addf %261, %263 : vector<8x128xf32>
    %cst_141 = arith.constant 0.166666672 : f32
    %265 = vector.broadcast %cst_141 : f32 to vector<8x128xf32>
    %266 = arith.mulf %265, %238 : vector<8x128xf32>
    %267 = arith.addf %264, %266 : vector<8x128xf32>
    %268 = arith.addf %1, %267 : vector<8x128xf32>
    %cst_142 = arith.constant 0.166666672 : f32
    %269 = vector.broadcast %cst_142 : f32 to vector<8x128xf32>
    %270 = arith.mulf %269, %184 : vector<8x128xf32>
    %cst_143 = arith.constant 0.166666672 : f32
    %271 = vector.broadcast %cst_143 : f32 to vector<8x128xf32>
    %272 = arith.mulf %271, %192 : vector<8x128xf32>
    %273 = arith.addf %270, %272 : vector<8x128xf32>
    %cst_144 = arith.constant 0.166666672 : f32
    %274 = vector.broadcast %cst_144 : f32 to vector<8x128xf32>
    %275 = arith.mulf %274, %200 : vector<8x128xf32>
    %276 = arith.addf %273, %275 : vector<8x128xf32>
    %cst_145 = arith.constant 0.166666672 : f32
    %277 = vector.broadcast %cst_145 : f32 to vector<8x128xf32>
    %278 = arith.mulf %277, %208 : vector<8x128xf32>
    %279 = arith.addf %276, %278 : vector<8x128xf32>
    %cst_146 = arith.constant 0.166666672 : f32
    %280 = vector.broadcast %cst_146 : f32 to vector<8x128xf32>
    %281 = arith.mulf %280, %216 : vector<8x128xf32>
    %282 = arith.addf %279, %281 : vector<8x128xf32>
    %cst_147 = arith.constant 0.166666672 : f32
    %283 = vector.broadcast %cst_147 : f32 to vector<8x128xf32>
    %284 = arith.mulf %283, %224 : vector<8x128xf32>
    %285 = arith.addf %282, %284 : vector<8x128xf32>
    %cst_148 = arith.constant 0.166666672 : f32
    %286 = vector.broadcast %cst_148 : f32 to vector<8x128xf32>
    %287 = arith.mulf %286, %232 : vector<8x128xf32>
    %288 = arith.addf %285, %287 : vector<8x128xf32>
    %cst_149 = arith.constant 0.166666672 : f32
    %289 = vector.broadcast %cst_149 : f32 to vector<8x128xf32>
    %290 = arith.mulf %289, %240 : vector<8x128xf32>
    %291 = arith.addf %288, %290 : vector<8x128xf32>
    %292 = arith.addf %3, %291 : vector<8x128xf32>
    %cst_150 = arith.constant 0.166666672 : f32
    %293 = vector.broadcast %cst_150 : f32 to vector<8x128xf32>
    %294 = arith.mulf %293, %186 : vector<8x128xf32>
    %cst_151 = arith.constant 0.166666672 : f32
    %295 = vector.broadcast %cst_151 : f32 to vector<8x128xf32>
    %296 = arith.mulf %295, %194 : vector<8x128xf32>
    %297 = arith.addf %294, %296 : vector<8x128xf32>
    %cst_152 = arith.constant 0.166666672 : f32
    %298 = vector.broadcast %cst_152 : f32 to vector<8x128xf32>
    %299 = arith.mulf %298, %202 : vector<8x128xf32>
    %300 = arith.addf %297, %299 : vector<8x128xf32>
    %cst_153 = arith.constant 0.166666672 : f32
    %301 = vector.broadcast %cst_153 : f32 to vector<8x128xf32>
    %302 = arith.mulf %301, %210 : vector<8x128xf32>
    %303 = arith.addf %300, %302 : vector<8x128xf32>
    %cst_154 = arith.constant 0.166666672 : f32
    %304 = vector.broadcast %cst_154 : f32 to vector<8x128xf32>
    %305 = arith.mulf %304, %218 : vector<8x128xf32>
    %306 = arith.addf %303, %305 : vector<8x128xf32>
    %cst_155 = arith.constant 0.166666672 : f32
    %307 = vector.broadcast %cst_155 : f32 to vector<8x128xf32>
    %308 = arith.mulf %307, %226 : vector<8x128xf32>
    %309 = arith.addf %306, %308 : vector<8x128xf32>
    %cst_156 = arith.constant 0.166666672 : f32
    %310 = vector.broadcast %cst_156 : f32 to vector<8x128xf32>
    %311 = arith.mulf %310, %234 : vector<8x128xf32>
    %312 = arith.addf %309, %311 : vector<8x128xf32>
    %cst_157 = arith.constant 0.166666672 : f32
    %313 = vector.broadcast %cst_157 : f32 to vector<8x128xf32>
    %314 = arith.mulf %313, %242 : vector<8x128xf32>
    %315 = arith.addf %312, %314 : vector<8x128xf32>
    %316 = arith.addf %5, %315 : vector<8x128xf32>
    %cst_158 = arith.constant 0.166666672 : f32
    %317 = vector.broadcast %cst_158 : f32 to vector<8x128xf32>
    %318 = arith.mulf %317, %188 : vector<8x128xf32>
    %cst_159 = arith.constant 0.166666672 : f32
    %319 = vector.broadcast %cst_159 : f32 to vector<8x128xf32>
    %320 = arith.mulf %319, %196 : vector<8x128xf32>
    %321 = arith.addf %318, %320 : vector<8x128xf32>
    %cst_160 = arith.constant 0.166666672 : f32
    %322 = vector.broadcast %cst_160 : f32 to vector<8x128xf32>
    %323 = arith.mulf %322, %204 : vector<8x128xf32>
    %324 = arith.addf %321, %323 : vector<8x128xf32>
    %cst_161 = arith.constant 0.166666672 : f32
    %325 = vector.broadcast %cst_161 : f32 to vector<8x128xf32>
    %326 = arith.mulf %325, %212 : vector<8x128xf32>
    %327 = arith.addf %324, %326 : vector<8x128xf32>
    %cst_162 = arith.constant 0.166666672 : f32
    %328 = vector.broadcast %cst_162 : f32 to vector<8x128xf32>
    %329 = arith.mulf %328, %220 : vector<8x128xf32>
    %330 = arith.addf %327, %329 : vector<8x128xf32>
    %cst_163 = arith.constant 0.166666672 : f32
    %331 = vector.broadcast %cst_163 : f32 to vector<8x128xf32>
    %332 = arith.mulf %331, %228 : vector<8x128xf32>
    %333 = arith.addf %330, %332 : vector<8x128xf32>
    %cst_164 = arith.constant 0.166666672 : f32
    %334 = vector.broadcast %cst_164 : f32 to vector<8x128xf32>
    %335 = arith.mulf %334, %236 : vector<8x128xf32>
    %336 = arith.addf %333, %335 : vector<8x128xf32>
    %cst_165 = arith.constant 0.166666672 : f32
    %337 = vector.broadcast %cst_165 : f32 to vector<8x128xf32>
    %338 = arith.mulf %337, %244 : vector<8x128xf32>
    %339 = arith.addf %336, %338 : vector<8x128xf32>
    %340 = arith.addf %7, %339 : vector<8x128xf32>
    %341 = arith.subf %1, %268 : vector<8x128xf32>
    %342 = arith.subf %3, %292 : vector<8x128xf32>
    %343 = arith.subf %5, %316 : vector<8x128xf32>
    %344 = arith.subf %7, %340 : vector<8x128xf32>
    %345 = arith.addf %36, %341 : vector<8x128xf32>
    %346 = arith.addf %36, %342 : vector<8x128xf32>
    %347 = arith.addf %36, %343 : vector<8x128xf32>
    %348 = arith.addf %36, %344 : vector<8x128xf32>
    %349 = arith.addf %182, %341 : vector<8x128xf32>
    %350 = arith.addf %184, %342 : vector<8x128xf32>
    %351 = arith.addf %186, %343 : vector<8x128xf32>
    %352 = arith.addf %188, %344 : vector<8x128xf32>
    %353 = arith.addf %190, %341 : vector<8x128xf32>
    %354 = arith.addf %192, %342 : vector<8x128xf32>
    %355 = arith.addf %194, %343 : vector<8x128xf32>
    %356 = arith.addf %196, %344 : vector<8x128xf32>
    %357 = arith.addf %198, %341 : vector<8x128xf32>
    %358 = arith.addf %200, %342 : vector<8x128xf32>
    %359 = arith.addf %202, %343 : vector<8x128xf32>
    %360 = arith.addf %204, %344 : vector<8x128xf32>
    %361 = arith.addf %206, %341 : vector<8x128xf32>
    %362 = arith.addf %208, %342 : vector<8x128xf32>
    %363 = arith.addf %210, %343 : vector<8x128xf32>
    %364 = arith.addf %212, %344 : vector<8x128xf32>
    %365 = arith.addf %214, %341 : vector<8x128xf32>
    %366 = arith.addf %216, %342 : vector<8x128xf32>
    %367 = arith.addf %218, %343 : vector<8x128xf32>
    %368 = arith.addf %220, %344 : vector<8x128xf32>
    %369 = arith.addf %222, %341 : vector<8x128xf32>
    %370 = arith.addf %224, %342 : vector<8x128xf32>
    %371 = arith.addf %226, %343 : vector<8x128xf32>
    %372 = arith.addf %228, %344 : vector<8x128xf32>
    %373 = arith.addf %230, %341 : vector<8x128xf32>
    %374 = arith.addf %232, %342 : vector<8x128xf32>
    %375 = arith.addf %234, %343 : vector<8x128xf32>
    %376 = arith.addf %236, %344 : vector<8x128xf32>
    %377 = arith.addf %238, %341 : vector<8x128xf32>
    %378 = arith.addf %240, %342 : vector<8x128xf32>
    %379 = arith.addf %242, %343 : vector<8x128xf32>
    %380 = arith.addf %244, %344 : vector<8x128xf32>
    %381 = arith.mulf %345, %345 : vector<8x128xf32>
    %cst_166 = arith.constant -0.333333343 : f32
    %382 = vector.broadcast %cst_166 : f32 to vector<8x128xf32>
    %383 = arith.mulf %382, %381 : vector<8x128xf32>
    %384 = arith.mulf %349, %349 : vector<8x128xf32>
    %cst_167 = arith.constant 0.166666672 : f32
    %385 = vector.broadcast %cst_167 : f32 to vector<8x128xf32>
    %386 = arith.mulf %385, %384 : vector<8x128xf32>
    %387 = arith.addf %383, %386 : vector<8x128xf32>
    %388 = arith.mulf %353, %353 : vector<8x128xf32>
    %cst_168 = arith.constant 0.166666672 : f32
    %389 = vector.broadcast %cst_168 : f32 to vector<8x128xf32>
    %390 = arith.mulf %389, %388 : vector<8x128xf32>
    %391 = arith.addf %387, %390 : vector<8x128xf32>
    %392 = arith.mulf %357, %357 : vector<8x128xf32>
    %cst_169 = arith.constant 0.166666672 : f32
    %393 = vector.broadcast %cst_169 : f32 to vector<8x128xf32>
    %394 = arith.mulf %393, %392 : vector<8x128xf32>
    %395 = arith.addf %391, %394 : vector<8x128xf32>
    %396 = arith.mulf %361, %361 : vector<8x128xf32>
    %cst_170 = arith.constant 0.166666672 : f32
    %397 = vector.broadcast %cst_170 : f32 to vector<8x128xf32>
    %398 = arith.mulf %397, %396 : vector<8x128xf32>
    %399 = arith.addf %395, %398 : vector<8x128xf32>
    %400 = arith.mulf %365, %365 : vector<8x128xf32>
    %cst_171 = arith.constant 0.166666672 : f32
    %401 = vector.broadcast %cst_171 : f32 to vector<8x128xf32>
    %402 = arith.mulf %401, %400 : vector<8x128xf32>
    %403 = arith.addf %399, %402 : vector<8x128xf32>
    %404 = arith.mulf %369, %369 : vector<8x128xf32>
    %cst_172 = arith.constant 0.166666672 : f32
    %405 = vector.broadcast %cst_172 : f32 to vector<8x128xf32>
    %406 = arith.mulf %405, %404 : vector<8x128xf32>
    %407 = arith.addf %403, %406 : vector<8x128xf32>
    %408 = arith.mulf %373, %373 : vector<8x128xf32>
    %cst_173 = arith.constant 0.166666672 : f32
    %409 = vector.broadcast %cst_173 : f32 to vector<8x128xf32>
    %410 = arith.mulf %409, %408 : vector<8x128xf32>
    %411 = arith.addf %407, %410 : vector<8x128xf32>
    %412 = arith.mulf %377, %377 : vector<8x128xf32>
    %cst_174 = arith.constant 0.166666672 : f32
    %413 = vector.broadcast %cst_174 : f32 to vector<8x128xf32>
    %414 = arith.mulf %413, %412 : vector<8x128xf32>
    %415 = arith.addf %411, %414 : vector<8x128xf32>
    %416 = arith.addf %415, %61 : vector<8x128xf32>
    %417 = arith.mulf %346, %345 : vector<8x128xf32>
    %cst_175 = arith.constant -0.333333343 : f32
    %418 = vector.broadcast %cst_175 : f32 to vector<8x128xf32>
    %419 = arith.mulf %418, %417 : vector<8x128xf32>
    %420 = arith.mulf %350, %349 : vector<8x128xf32>
    %cst_176 = arith.constant 0.166666672 : f32
    %421 = vector.broadcast %cst_176 : f32 to vector<8x128xf32>
    %422 = arith.mulf %421, %420 : vector<8x128xf32>
    %423 = arith.addf %419, %422 : vector<8x128xf32>
    %424 = arith.mulf %354, %353 : vector<8x128xf32>
    %cst_177 = arith.constant 0.166666672 : f32
    %425 = vector.broadcast %cst_177 : f32 to vector<8x128xf32>
    %426 = arith.mulf %425, %424 : vector<8x128xf32>
    %427 = arith.addf %423, %426 : vector<8x128xf32>
    %428 = arith.mulf %358, %357 : vector<8x128xf32>
    %cst_178 = arith.constant 0.166666672 : f32
    %429 = vector.broadcast %cst_178 : f32 to vector<8x128xf32>
    %430 = arith.mulf %429, %428 : vector<8x128xf32>
    %431 = arith.addf %427, %430 : vector<8x128xf32>
    %432 = arith.mulf %362, %361 : vector<8x128xf32>
    %cst_179 = arith.constant 0.166666672 : f32
    %433 = vector.broadcast %cst_179 : f32 to vector<8x128xf32>
    %434 = arith.mulf %433, %432 : vector<8x128xf32>
    %435 = arith.addf %431, %434 : vector<8x128xf32>
    %436 = arith.mulf %366, %365 : vector<8x128xf32>
    %cst_180 = arith.constant 0.166666672 : f32
    %437 = vector.broadcast %cst_180 : f32 to vector<8x128xf32>
    %438 = arith.mulf %437, %436 : vector<8x128xf32>
    %439 = arith.addf %435, %438 : vector<8x128xf32>
    %440 = arith.mulf %370, %369 : vector<8x128xf32>
    %cst_181 = arith.constant 0.166666672 : f32
    %441 = vector.broadcast %cst_181 : f32 to vector<8x128xf32>
    %442 = arith.mulf %441, %440 : vector<8x128xf32>
    %443 = arith.addf %439, %442 : vector<8x128xf32>
    %444 = arith.mulf %374, %373 : vector<8x128xf32>
    %cst_182 = arith.constant 0.166666672 : f32
    %445 = vector.broadcast %cst_182 : f32 to vector<8x128xf32>
    %446 = arith.mulf %445, %444 : vector<8x128xf32>
    %447 = arith.addf %443, %446 : vector<8x128xf32>
    %448 = arith.mulf %378, %377 : vector<8x128xf32>
    %cst_183 = arith.constant 0.166666672 : f32
    %449 = vector.broadcast %cst_183 : f32 to vector<8x128xf32>
    %450 = arith.mulf %449, %448 : vector<8x128xf32>
    %451 = arith.addf %447, %450 : vector<8x128xf32>
    %452 = arith.addf %451, %62 : vector<8x128xf32>
    %453 = arith.mulf %346, %346 : vector<8x128xf32>
    %cst_184 = arith.constant -0.333333343 : f32
    %454 = vector.broadcast %cst_184 : f32 to vector<8x128xf32>
    %455 = arith.mulf %454, %453 : vector<8x128xf32>
    %456 = arith.mulf %350, %350 : vector<8x128xf32>
    %cst_185 = arith.constant 0.166666672 : f32
    %457 = vector.broadcast %cst_185 : f32 to vector<8x128xf32>
    %458 = arith.mulf %457, %456 : vector<8x128xf32>
    %459 = arith.addf %455, %458 : vector<8x128xf32>
    %460 = arith.mulf %354, %354 : vector<8x128xf32>
    %cst_186 = arith.constant 0.166666672 : f32
    %461 = vector.broadcast %cst_186 : f32 to vector<8x128xf32>
    %462 = arith.mulf %461, %460 : vector<8x128xf32>
    %463 = arith.addf %459, %462 : vector<8x128xf32>
    %464 = arith.mulf %358, %358 : vector<8x128xf32>
    %cst_187 = arith.constant 0.166666672 : f32
    %465 = vector.broadcast %cst_187 : f32 to vector<8x128xf32>
    %466 = arith.mulf %465, %464 : vector<8x128xf32>
    %467 = arith.addf %463, %466 : vector<8x128xf32>
    %468 = arith.mulf %362, %362 : vector<8x128xf32>
    %cst_188 = arith.constant 0.166666672 : f32
    %469 = vector.broadcast %cst_188 : f32 to vector<8x128xf32>
    %470 = arith.mulf %469, %468 : vector<8x128xf32>
    %471 = arith.addf %467, %470 : vector<8x128xf32>
    %472 = arith.mulf %366, %366 : vector<8x128xf32>
    %cst_189 = arith.constant 0.166666672 : f32
    %473 = vector.broadcast %cst_189 : f32 to vector<8x128xf32>
    %474 = arith.mulf %473, %472 : vector<8x128xf32>
    %475 = arith.addf %471, %474 : vector<8x128xf32>
    %476 = arith.mulf %370, %370 : vector<8x128xf32>
    %cst_190 = arith.constant 0.166666672 : f32
    %477 = vector.broadcast %cst_190 : f32 to vector<8x128xf32>
    %478 = arith.mulf %477, %476 : vector<8x128xf32>
    %479 = arith.addf %475, %478 : vector<8x128xf32>
    %480 = arith.mulf %374, %374 : vector<8x128xf32>
    %cst_191 = arith.constant 0.166666672 : f32
    %481 = vector.broadcast %cst_191 : f32 to vector<8x128xf32>
    %482 = arith.mulf %481, %480 : vector<8x128xf32>
    %483 = arith.addf %479, %482 : vector<8x128xf32>
    %484 = arith.mulf %378, %378 : vector<8x128xf32>
    %cst_192 = arith.constant 0.166666672 : f32
    %485 = vector.broadcast %cst_192 : f32 to vector<8x128xf32>
    %486 = arith.mulf %485, %484 : vector<8x128xf32>
    %487 = arith.addf %483, %486 : vector<8x128xf32>
    %488 = arith.addf %487, %65 : vector<8x128xf32>
    %489 = arith.mulf %347, %345 : vector<8x128xf32>
    %cst_193 = arith.constant -0.333333343 : f32
    %490 = vector.broadcast %cst_193 : f32 to vector<8x128xf32>
    %491 = arith.mulf %490, %489 : vector<8x128xf32>
    %492 = arith.mulf %351, %349 : vector<8x128xf32>
    %cst_194 = arith.constant 0.166666672 : f32
    %493 = vector.broadcast %cst_194 : f32 to vector<8x128xf32>
    %494 = arith.mulf %493, %492 : vector<8x128xf32>
    %495 = arith.addf %491, %494 : vector<8x128xf32>
    %496 = arith.mulf %355, %353 : vector<8x128xf32>
    %cst_195 = arith.constant 0.166666672 : f32
    %497 = vector.broadcast %cst_195 : f32 to vector<8x128xf32>
    %498 = arith.mulf %497, %496 : vector<8x128xf32>
    %499 = arith.addf %495, %498 : vector<8x128xf32>
    %500 = arith.mulf %359, %357 : vector<8x128xf32>
    %cst_196 = arith.constant 0.166666672 : f32
    %501 = vector.broadcast %cst_196 : f32 to vector<8x128xf32>
    %502 = arith.mulf %501, %500 : vector<8x128xf32>
    %503 = arith.addf %499, %502 : vector<8x128xf32>
    %504 = arith.mulf %363, %361 : vector<8x128xf32>
    %cst_197 = arith.constant 0.166666672 : f32
    %505 = vector.broadcast %cst_197 : f32 to vector<8x128xf32>
    %506 = arith.mulf %505, %504 : vector<8x128xf32>
    %507 = arith.addf %503, %506 : vector<8x128xf32>
    %508 = arith.mulf %367, %365 : vector<8x128xf32>
    %cst_198 = arith.constant 0.166666672 : f32
    %509 = vector.broadcast %cst_198 : f32 to vector<8x128xf32>
    %510 = arith.mulf %509, %508 : vector<8x128xf32>
    %511 = arith.addf %507, %510 : vector<8x128xf32>
    %512 = arith.mulf %371, %369 : vector<8x128xf32>
    %cst_199 = arith.constant 0.166666672 : f32
    %513 = vector.broadcast %cst_199 : f32 to vector<8x128xf32>
    %514 = arith.mulf %513, %512 : vector<8x128xf32>
    %515 = arith.addf %511, %514 : vector<8x128xf32>
    %516 = arith.mulf %375, %373 : vector<8x128xf32>
    %cst_200 = arith.constant 0.166666672 : f32
    %517 = vector.broadcast %cst_200 : f32 to vector<8x128xf32>
    %518 = arith.mulf %517, %516 : vector<8x128xf32>
    %519 = arith.addf %515, %518 : vector<8x128xf32>
    %520 = arith.mulf %379, %377 : vector<8x128xf32>
    %cst_201 = arith.constant 0.166666672 : f32
    %521 = vector.broadcast %cst_201 : f32 to vector<8x128xf32>
    %522 = arith.mulf %521, %520 : vector<8x128xf32>
    %523 = arith.addf %519, %522 : vector<8x128xf32>
    %524 = arith.addf %523, %66 : vector<8x128xf32>
    %525 = arith.mulf %347, %346 : vector<8x128xf32>
    %cst_202 = arith.constant -0.333333343 : f32
    %526 = vector.broadcast %cst_202 : f32 to vector<8x128xf32>
    %527 = arith.mulf %526, %525 : vector<8x128xf32>
    %528 = arith.mulf %351, %350 : vector<8x128xf32>
    %cst_203 = arith.constant 0.166666672 : f32
    %529 = vector.broadcast %cst_203 : f32 to vector<8x128xf32>
    %530 = arith.mulf %529, %528 : vector<8x128xf32>
    %531 = arith.addf %527, %530 : vector<8x128xf32>
    %532 = arith.mulf %355, %354 : vector<8x128xf32>
    %cst_204 = arith.constant 0.166666672 : f32
    %533 = vector.broadcast %cst_204 : f32 to vector<8x128xf32>
    %534 = arith.mulf %533, %532 : vector<8x128xf32>
    %535 = arith.addf %531, %534 : vector<8x128xf32>
    %536 = arith.mulf %359, %358 : vector<8x128xf32>
    %cst_205 = arith.constant 0.166666672 : f32
    %537 = vector.broadcast %cst_205 : f32 to vector<8x128xf32>
    %538 = arith.mulf %537, %536 : vector<8x128xf32>
    %539 = arith.addf %535, %538 : vector<8x128xf32>
    %540 = arith.mulf %363, %362 : vector<8x128xf32>
    %cst_206 = arith.constant 0.166666672 : f32
    %541 = vector.broadcast %cst_206 : f32 to vector<8x128xf32>
    %542 = arith.mulf %541, %540 : vector<8x128xf32>
    %543 = arith.addf %539, %542 : vector<8x128xf32>
    %544 = arith.mulf %367, %366 : vector<8x128xf32>
    %cst_207 = arith.constant 0.166666672 : f32
    %545 = vector.broadcast %cst_207 : f32 to vector<8x128xf32>
    %546 = arith.mulf %545, %544 : vector<8x128xf32>
    %547 = arith.addf %543, %546 : vector<8x128xf32>
    %548 = arith.mulf %371, %370 : vector<8x128xf32>
    %cst_208 = arith.constant 0.166666672 : f32
    %549 = vector.broadcast %cst_208 : f32 to vector<8x128xf32>
    %550 = arith.mulf %549, %548 : vector<8x128xf32>
    %551 = arith.addf %547, %550 : vector<8x128xf32>
    %552 = arith.mulf %375, %374 : vector<8x128xf32>
    %cst_209 = arith.constant 0.166666672 : f32
    %553 = vector.broadcast %cst_209 : f32 to vector<8x128xf32>
    %554 = arith.mulf %553, %552 : vector<8x128xf32>
    %555 = arith.addf %551, %554 : vector<8x128xf32>
    %556 = arith.mulf %379, %378 : vector<8x128xf32>
    %cst_210 = arith.constant 0.166666672 : f32
    %557 = vector.broadcast %cst_210 : f32 to vector<8x128xf32>
    %558 = arith.mulf %557, %556 : vector<8x128xf32>
    %559 = arith.addf %555, %558 : vector<8x128xf32>
    %560 = arith.addf %559, %69 : vector<8x128xf32>
    %561 = arith.mulf %347, %347 : vector<8x128xf32>
    %cst_211 = arith.constant -0.333333343 : f32
    %562 = vector.broadcast %cst_211 : f32 to vector<8x128xf32>
    %563 = arith.mulf %562, %561 : vector<8x128xf32>
    %564 = arith.mulf %351, %351 : vector<8x128xf32>
    %cst_212 = arith.constant 0.166666672 : f32
    %565 = vector.broadcast %cst_212 : f32 to vector<8x128xf32>
    %566 = arith.mulf %565, %564 : vector<8x128xf32>
    %567 = arith.addf %563, %566 : vector<8x128xf32>
    %568 = arith.mulf %355, %355 : vector<8x128xf32>
    %cst_213 = arith.constant 0.166666672 : f32
    %569 = vector.broadcast %cst_213 : f32 to vector<8x128xf32>
    %570 = arith.mulf %569, %568 : vector<8x128xf32>
    %571 = arith.addf %567, %570 : vector<8x128xf32>
    %572 = arith.mulf %359, %359 : vector<8x128xf32>
    %cst_214 = arith.constant 0.166666672 : f32
    %573 = vector.broadcast %cst_214 : f32 to vector<8x128xf32>
    %574 = arith.mulf %573, %572 : vector<8x128xf32>
    %575 = arith.addf %571, %574 : vector<8x128xf32>
    %576 = arith.mulf %363, %363 : vector<8x128xf32>
    %cst_215 = arith.constant 0.166666672 : f32
    %577 = vector.broadcast %cst_215 : f32 to vector<8x128xf32>
    %578 = arith.mulf %577, %576 : vector<8x128xf32>
    %579 = arith.addf %575, %578 : vector<8x128xf32>
    %580 = arith.mulf %367, %367 : vector<8x128xf32>
    %cst_216 = arith.constant 0.166666672 : f32
    %581 = vector.broadcast %cst_216 : f32 to vector<8x128xf32>
    %582 = arith.mulf %581, %580 : vector<8x128xf32>
    %583 = arith.addf %579, %582 : vector<8x128xf32>
    %584 = arith.mulf %371, %371 : vector<8x128xf32>
    %cst_217 = arith.constant 0.166666672 : f32
    %585 = vector.broadcast %cst_217 : f32 to vector<8x128xf32>
    %586 = arith.mulf %585, %584 : vector<8x128xf32>
    %587 = arith.addf %583, %586 : vector<8x128xf32>
    %588 = arith.mulf %375, %375 : vector<8x128xf32>
    %cst_218 = arith.constant 0.166666672 : f32
    %589 = vector.broadcast %cst_218 : f32 to vector<8x128xf32>
    %590 = arith.mulf %589, %588 : vector<8x128xf32>
    %591 = arith.addf %587, %590 : vector<8x128xf32>
    %592 = arith.mulf %379, %379 : vector<8x128xf32>
    %cst_219 = arith.constant 0.166666672 : f32
    %593 = vector.broadcast %cst_219 : f32 to vector<8x128xf32>
    %594 = arith.mulf %593, %592 : vector<8x128xf32>
    %595 = arith.addf %591, %594 : vector<8x128xf32>
    %596 = arith.addf %595, %74 : vector<8x128xf32>
    %597 = arith.mulf %348, %345 : vector<8x128xf32>
    %cst_220 = arith.constant -0.333333343 : f32
    %598 = vector.broadcast %cst_220 : f32 to vector<8x128xf32>
    %599 = arith.mulf %598, %597 : vector<8x128xf32>
    %600 = arith.mulf %352, %349 : vector<8x128xf32>
    %cst_221 = arith.constant 0.166666672 : f32
    %601 = vector.broadcast %cst_221 : f32 to vector<8x128xf32>
    %602 = arith.mulf %601, %600 : vector<8x128xf32>
    %603 = arith.addf %599, %602 : vector<8x128xf32>
    %604 = arith.mulf %356, %353 : vector<8x128xf32>
    %cst_222 = arith.constant 0.166666672 : f32
    %605 = vector.broadcast %cst_222 : f32 to vector<8x128xf32>
    %606 = arith.mulf %605, %604 : vector<8x128xf32>
    %607 = arith.addf %603, %606 : vector<8x128xf32>
    %608 = arith.mulf %360, %357 : vector<8x128xf32>
    %cst_223 = arith.constant 0.166666672 : f32
    %609 = vector.broadcast %cst_223 : f32 to vector<8x128xf32>
    %610 = arith.mulf %609, %608 : vector<8x128xf32>
    %611 = arith.addf %607, %610 : vector<8x128xf32>
    %612 = arith.mulf %364, %361 : vector<8x128xf32>
    %cst_224 = arith.constant 0.166666672 : f32
    %613 = vector.broadcast %cst_224 : f32 to vector<8x128xf32>
    %614 = arith.mulf %613, %612 : vector<8x128xf32>
    %615 = arith.addf %611, %614 : vector<8x128xf32>
    %616 = arith.mulf %368, %365 : vector<8x128xf32>
    %cst_225 = arith.constant 0.166666672 : f32
    %617 = vector.broadcast %cst_225 : f32 to vector<8x128xf32>
    %618 = arith.mulf %617, %616 : vector<8x128xf32>
    %619 = arith.addf %615, %618 : vector<8x128xf32>
    %620 = arith.mulf %372, %369 : vector<8x128xf32>
    %cst_226 = arith.constant 0.166666672 : f32
    %621 = vector.broadcast %cst_226 : f32 to vector<8x128xf32>
    %622 = arith.mulf %621, %620 : vector<8x128xf32>
    %623 = arith.addf %619, %622 : vector<8x128xf32>
    %624 = arith.mulf %376, %373 : vector<8x128xf32>
    %cst_227 = arith.constant 0.166666672 : f32
    %625 = vector.broadcast %cst_227 : f32 to vector<8x128xf32>
    %626 = arith.mulf %625, %624 : vector<8x128xf32>
    %627 = arith.addf %623, %626 : vector<8x128xf32>
    %628 = arith.mulf %380, %377 : vector<8x128xf32>
    %cst_228 = arith.constant 0.166666672 : f32
    %629 = vector.broadcast %cst_228 : f32 to vector<8x128xf32>
    %630 = arith.mulf %629, %628 : vector<8x128xf32>
    %631 = arith.addf %627, %630 : vector<8x128xf32>
    %632 = arith.addf %631, %75 : vector<8x128xf32>
    %633 = arith.mulf %348, %346 : vector<8x128xf32>
    %cst_229 = arith.constant -0.333333343 : f32
    %634 = vector.broadcast %cst_229 : f32 to vector<8x128xf32>
    %635 = arith.mulf %634, %633 : vector<8x128xf32>
    %636 = arith.mulf %352, %350 : vector<8x128xf32>
    %cst_230 = arith.constant 0.166666672 : f32
    %637 = vector.broadcast %cst_230 : f32 to vector<8x128xf32>
    %638 = arith.mulf %637, %636 : vector<8x128xf32>
    %639 = arith.addf %635, %638 : vector<8x128xf32>
    %640 = arith.mulf %356, %354 : vector<8x128xf32>
    %cst_231 = arith.constant 0.166666672 : f32
    %641 = vector.broadcast %cst_231 : f32 to vector<8x128xf32>
    %642 = arith.mulf %641, %640 : vector<8x128xf32>
    %643 = arith.addf %639, %642 : vector<8x128xf32>
    %644 = arith.mulf %360, %358 : vector<8x128xf32>
    %cst_232 = arith.constant 0.166666672 : f32
    %645 = vector.broadcast %cst_232 : f32 to vector<8x128xf32>
    %646 = arith.mulf %645, %644 : vector<8x128xf32>
    %647 = arith.addf %643, %646 : vector<8x128xf32>
    %648 = arith.mulf %364, %362 : vector<8x128xf32>
    %cst_233 = arith.constant 0.166666672 : f32
    %649 = vector.broadcast %cst_233 : f32 to vector<8x128xf32>
    %650 = arith.mulf %649, %648 : vector<8x128xf32>
    %651 = arith.addf %647, %650 : vector<8x128xf32>
    %652 = arith.mulf %368, %366 : vector<8x128xf32>
    %cst_234 = arith.constant 0.166666672 : f32
    %653 = vector.broadcast %cst_234 : f32 to vector<8x128xf32>
    %654 = arith.mulf %653, %652 : vector<8x128xf32>
    %655 = arith.addf %651, %654 : vector<8x128xf32>
    %656 = arith.mulf %372, %370 : vector<8x128xf32>
    %cst_235 = arith.constant 0.166666672 : f32
    %657 = vector.broadcast %cst_235 : f32 to vector<8x128xf32>
    %658 = arith.mulf %657, %656 : vector<8x128xf32>
    %659 = arith.addf %655, %658 : vector<8x128xf32>
    %660 = arith.mulf %376, %374 : vector<8x128xf32>
    %cst_236 = arith.constant 0.166666672 : f32
    %661 = vector.broadcast %cst_236 : f32 to vector<8x128xf32>
    %662 = arith.mulf %661, %660 : vector<8x128xf32>
    %663 = arith.addf %659, %662 : vector<8x128xf32>
    %664 = arith.mulf %380, %378 : vector<8x128xf32>
    %cst_237 = arith.constant 0.166666672 : f32
    %665 = vector.broadcast %cst_237 : f32 to vector<8x128xf32>
    %666 = arith.mulf %665, %664 : vector<8x128xf32>
    %667 = arith.addf %663, %666 : vector<8x128xf32>
    %668 = arith.addf %667, %78 : vector<8x128xf32>
    %669 = arith.mulf %348, %347 : vector<8x128xf32>
    %cst_238 = arith.constant -0.333333343 : f32
    %670 = vector.broadcast %cst_238 : f32 to vector<8x128xf32>
    %671 = arith.mulf %670, %669 : vector<8x128xf32>
    %672 = arith.mulf %352, %351 : vector<8x128xf32>
    %cst_239 = arith.constant 0.166666672 : f32
    %673 = vector.broadcast %cst_239 : f32 to vector<8x128xf32>
    %674 = arith.mulf %673, %672 : vector<8x128xf32>
    %675 = arith.addf %671, %674 : vector<8x128xf32>
    %676 = arith.mulf %356, %355 : vector<8x128xf32>
    %cst_240 = arith.constant 0.166666672 : f32
    %677 = vector.broadcast %cst_240 : f32 to vector<8x128xf32>
    %678 = arith.mulf %677, %676 : vector<8x128xf32>
    %679 = arith.addf %675, %678 : vector<8x128xf32>
    %680 = arith.mulf %360, %359 : vector<8x128xf32>
    %cst_241 = arith.constant 0.166666672 : f32
    %681 = vector.broadcast %cst_241 : f32 to vector<8x128xf32>
    %682 = arith.mulf %681, %680 : vector<8x128xf32>
    %683 = arith.addf %679, %682 : vector<8x128xf32>
    %684 = arith.mulf %364, %363 : vector<8x128xf32>
    %cst_242 = arith.constant 0.166666672 : f32
    %685 = vector.broadcast %cst_242 : f32 to vector<8x128xf32>
    %686 = arith.mulf %685, %684 : vector<8x128xf32>
    %687 = arith.addf %683, %686 : vector<8x128xf32>
    %688 = arith.mulf %368, %367 : vector<8x128xf32>
    %cst_243 = arith.constant 0.166666672 : f32
    %689 = vector.broadcast %cst_243 : f32 to vector<8x128xf32>
    %690 = arith.mulf %689, %688 : vector<8x128xf32>
    %691 = arith.addf %687, %690 : vector<8x128xf32>
    %692 = arith.mulf %372, %371 : vector<8x128xf32>
    %cst_244 = arith.constant 0.166666672 : f32
    %693 = vector.broadcast %cst_244 : f32 to vector<8x128xf32>
    %694 = arith.mulf %693, %692 : vector<8x128xf32>
    %695 = arith.addf %691, %694 : vector<8x128xf32>
    %696 = arith.mulf %376, %375 : vector<8x128xf32>
    %cst_245 = arith.constant 0.166666672 : f32
    %697 = vector.broadcast %cst_245 : f32 to vector<8x128xf32>
    %698 = arith.mulf %697, %696 : vector<8x128xf32>
    %699 = arith.addf %695, %698 : vector<8x128xf32>
    %700 = arith.mulf %380, %379 : vector<8x128xf32>
    %cst_246 = arith.constant 0.166666672 : f32
    %701 = vector.broadcast %cst_246 : f32 to vector<8x128xf32>
    %702 = arith.mulf %701, %700 : vector<8x128xf32>
    %703 = arith.addf %699, %702 : vector<8x128xf32>
    %704 = arith.addf %703, %83 : vector<8x128xf32>
    %705 = arith.mulf %348, %348 : vector<8x128xf32>
    %cst_247 = arith.constant -0.333333343 : f32
    %706 = vector.broadcast %cst_247 : f32 to vector<8x128xf32>
    %707 = arith.mulf %706, %705 : vector<8x128xf32>
    %708 = arith.mulf %352, %352 : vector<8x128xf32>
    %cst_248 = arith.constant 0.166666672 : f32
    %709 = vector.broadcast %cst_248 : f32 to vector<8x128xf32>
    %710 = arith.mulf %709, %708 : vector<8x128xf32>
    %711 = arith.addf %707, %710 : vector<8x128xf32>
    %712 = arith.mulf %356, %356 : vector<8x128xf32>
    %cst_249 = arith.constant 0.166666672 : f32
    %713 = vector.broadcast %cst_249 : f32 to vector<8x128xf32>
    %714 = arith.mulf %713, %712 : vector<8x128xf32>
    %715 = arith.addf %711, %714 : vector<8x128xf32>
    %716 = arith.mulf %360, %360 : vector<8x128xf32>
    %cst_250 = arith.constant 0.166666672 : f32
    %717 = vector.broadcast %cst_250 : f32 to vector<8x128xf32>
    %718 = arith.mulf %717, %716 : vector<8x128xf32>
    %719 = arith.addf %715, %718 : vector<8x128xf32>
    %720 = arith.mulf %364, %364 : vector<8x128xf32>
    %cst_251 = arith.constant 0.166666672 : f32
    %721 = vector.broadcast %cst_251 : f32 to vector<8x128xf32>
    %722 = arith.mulf %721, %720 : vector<8x128xf32>
    %723 = arith.addf %719, %722 : vector<8x128xf32>
    %724 = arith.mulf %368, %368 : vector<8x128xf32>
    %cst_252 = arith.constant 0.166666672 : f32
    %725 = vector.broadcast %cst_252 : f32 to vector<8x128xf32>
    %726 = arith.mulf %725, %724 : vector<8x128xf32>
    %727 = arith.addf %723, %726 : vector<8x128xf32>
    %728 = arith.mulf %372, %372 : vector<8x128xf32>
    %cst_253 = arith.constant 0.166666672 : f32
    %729 = vector.broadcast %cst_253 : f32 to vector<8x128xf32>
    %730 = arith.mulf %729, %728 : vector<8x128xf32>
    %731 = arith.addf %727, %730 : vector<8x128xf32>
    %732 = arith.mulf %376, %376 : vector<8x128xf32>
    %cst_254 = arith.constant 0.166666672 : f32
    %733 = vector.broadcast %cst_254 : f32 to vector<8x128xf32>
    %734 = arith.mulf %733, %732 : vector<8x128xf32>
    %735 = arith.addf %731, %734 : vector<8x128xf32>
    %736 = arith.mulf %380, %380 : vector<8x128xf32>
    %cst_255 = arith.constant 0.166666672 : f32
    %737 = vector.broadcast %cst_255 : f32 to vector<8x128xf32>
    %738 = arith.mulf %737, %736 : vector<8x128xf32>
    %739 = arith.addf %735, %738 : vector<8x128xf32>
    %740 = arith.addf %739, %90 : vector<8x128xf32>
    %741 = arith.addf %416, %115 : vector<8x128xf32>
    %742 = arith.addf %452, %116 : vector<8x128xf32>
    %743 = arith.addf %524, %120 : vector<8x128xf32>
    %744 = arith.addf %632, %129 : vector<8x128xf32>
    %745 = arith.addf %452, %116 : vector<8x128xf32>
    %746 = arith.addf %488, %119 : vector<8x128xf32>
    %747 = arith.addf %560, %123 : vector<8x128xf32>
    %748 = arith.addf %668, %132 : vector<8x128xf32>
    %749 = arith.addf %524, %120 : vector<8x128xf32>
    %750 = arith.addf %560, %123 : vector<8x128xf32>
    %751 = arith.addf %596, %128 : vector<8x128xf32>
    %752 = arith.addf %704, %137 : vector<8x128xf32>
    %753 = arith.addf %632, %129 : vector<8x128xf32>
    %754 = arith.addf %668, %132 : vector<8x128xf32>
    %755 = arith.addf %704, %137 : vector<8x128xf32>
    %756 = arith.addf %740, %144 : vector<8x128xf32>
    %757 = math.sqrt %741 : vector<8x128xf32>
    %cst_256 = arith.constant 1.000000e+00 : f32
    %758 = vector.broadcast %cst_256 : f32 to vector<8x128xf32>
    %759 = arith.divf %758, %757 : vector<8x128xf32>
    %760 = arith.mulf %745, %759 : vector<8x128xf32>
    %761 = arith.mulf %749, %759 : vector<8x128xf32>
    %762 = arith.mulf %753, %759 : vector<8x128xf32>
    %763 = arith.mulf %760, %760 : vector<8x128xf32>
    %764 = arith.subf %746, %763 : vector<8x128xf32>
    %765 = math.sqrt %764 : vector<8x128xf32>
    %cst_257 = arith.constant 1.000000e+00 : f32
    %766 = vector.broadcast %cst_257 : f32 to vector<8x128xf32>
    %767 = arith.divf %766, %765 : vector<8x128xf32>
    %768 = arith.mulf %761, %760 : vector<8x128xf32>
    %769 = arith.subf %750, %768 : vector<8x128xf32>
    %770 = arith.mulf %769, %767 : vector<8x128xf32>
    %771 = arith.mulf %762, %760 : vector<8x128xf32>
    %772 = arith.subf %754, %771 : vector<8x128xf32>
    %773 = arith.mulf %772, %767 : vector<8x128xf32>
    %774 = arith.mulf %761, %761 : vector<8x128xf32>
    %775 = arith.subf %751, %774 : vector<8x128xf32>
    %776 = arith.mulf %770, %770 : vector<8x128xf32>
    %777 = arith.subf %775, %776 : vector<8x128xf32>
    %778 = math.sqrt %777 : vector<8x128xf32>
    %cst_258 = arith.constant 1.000000e+00 : f32
    %779 = vector.broadcast %cst_258 : f32 to vector<8x128xf32>
    %780 = arith.divf %779, %778 : vector<8x128xf32>
    %781 = arith.mulf %762, %761 : vector<8x128xf32>
    %782 = arith.subf %755, %781 : vector<8x128xf32>
    %783 = arith.mulf %773, %770 : vector<8x128xf32>
    %784 = arith.subf %782, %783 : vector<8x128xf32>
    %785 = arith.mulf %784, %780 : vector<8x128xf32>
    %786 = arith.mulf %762, %762 : vector<8x128xf32>
    %787 = arith.subf %756, %786 : vector<8x128xf32>
    %788 = arith.mulf %773, %773 : vector<8x128xf32>
    %789 = arith.subf %787, %788 : vector<8x128xf32>
    %790 = arith.mulf %785, %785 : vector<8x128xf32>
    %791 = arith.subf %789, %790 : vector<8x128xf32>
    %792 = math.sqrt %791 : vector<8x128xf32>
    %cst_259 = arith.constant 1.000000e+00 : f32
    %793 = vector.broadcast %cst_259 : f32 to vector<8x128xf32>
    %794 = arith.divf %793, %757 : vector<8x128xf32>
    %cst_260 = arith.constant 1.000000e+00 : f32
    %795 = vector.broadcast %cst_260 : f32 to vector<8x128xf32>
    %796 = arith.divf %795, %765 : vector<8x128xf32>
    %cst_261 = arith.constant 1.000000e+00 : f32
    %797 = vector.broadcast %cst_261 : f32 to vector<8x128xf32>
    %798 = arith.divf %797, %778 : vector<8x128xf32>
    %cst_262 = arith.constant 1.000000e+00 : f32
    %799 = vector.broadcast %cst_262 : f32 to vector<8x128xf32>
    %800 = arith.divf %799, %792 : vector<8x128xf32>
    %801 = arith.mulf %760, %794 : vector<8x128xf32>
    %cst_263 = arith.constant 0.000000e+00 : f32
    %802 = vector.broadcast %cst_263 : f32 to vector<8x128xf32>
    %803 = arith.subf %802, %801 : vector<8x128xf32>
    %804 = arith.mulf %803, %796 : vector<8x128xf32>
    %805 = arith.mulf %761, %794 : vector<8x128xf32>
    %806 = arith.mulf %770, %804 : vector<8x128xf32>
    %807 = arith.addf %805, %806 : vector<8x128xf32>
    %cst_264 = arith.constant 0.000000e+00 : f32
    %808 = vector.broadcast %cst_264 : f32 to vector<8x128xf32>
    %809 = arith.subf %808, %807 : vector<8x128xf32>
    %810 = arith.mulf %809, %798 : vector<8x128xf32>
    %811 = arith.mulf %770, %796 : vector<8x128xf32>
    %cst_265 = arith.constant 0.000000e+00 : f32
    %812 = vector.broadcast %cst_265 : f32 to vector<8x128xf32>
    %813 = arith.subf %812, %811 : vector<8x128xf32>
    %814 = arith.mulf %813, %798 : vector<8x128xf32>
    %815 = arith.mulf %762, %794 : vector<8x128xf32>
    %816 = arith.mulf %773, %804 : vector<8x128xf32>
    %817 = arith.addf %815, %816 : vector<8x128xf32>
    %818 = arith.mulf %785, %810 : vector<8x128xf32>
    %819 = arith.addf %817, %818 : vector<8x128xf32>
    %cst_266 = arith.constant 0.000000e+00 : f32
    %820 = vector.broadcast %cst_266 : f32 to vector<8x128xf32>
    %821 = arith.subf %820, %819 : vector<8x128xf32>
    %822 = arith.mulf %821, %800 : vector<8x128xf32>
    %823 = arith.mulf %773, %796 : vector<8x128xf32>
    %824 = arith.mulf %785, %814 : vector<8x128xf32>
    %825 = arith.addf %823, %824 : vector<8x128xf32>
    %cst_267 = arith.constant 0.000000e+00 : f32
    %826 = vector.broadcast %cst_267 : f32 to vector<8x128xf32>
    %827 = arith.subf %826, %825 : vector<8x128xf32>
    %828 = arith.mulf %827, %800 : vector<8x128xf32>
    %829 = arith.mulf %785, %798 : vector<8x128xf32>
    %cst_268 = arith.constant 0.000000e+00 : f32
    %830 = vector.broadcast %cst_268 : f32 to vector<8x128xf32>
    %831 = arith.subf %830, %829 : vector<8x128xf32>
    %832 = arith.mulf %831, %800 : vector<8x128xf32>
    %833 = arith.mulf %794, %794 : vector<8x128xf32>
    %834 = arith.mulf %804, %804 : vector<8x128xf32>
    %835 = arith.addf %833, %834 : vector<8x128xf32>
    %836 = arith.mulf %810, %810 : vector<8x128xf32>
    %837 = arith.addf %835, %836 : vector<8x128xf32>
    %838 = arith.mulf %822, %822 : vector<8x128xf32>
    %839 = arith.addf %837, %838 : vector<8x128xf32>
    %840 = arith.mulf %796, %804 : vector<8x128xf32>
    %841 = arith.mulf %814, %810 : vector<8x128xf32>
    %842 = arith.addf %840, %841 : vector<8x128xf32>
    %843 = arith.mulf %828, %822 : vector<8x128xf32>
    %844 = arith.addf %842, %843 : vector<8x128xf32>
    %845 = arith.mulf %796, %796 : vector<8x128xf32>
    %846 = arith.mulf %814, %814 : vector<8x128xf32>
    %847 = arith.addf %845, %846 : vector<8x128xf32>
    %848 = arith.mulf %828, %828 : vector<8x128xf32>
    %849 = arith.addf %847, %848 : vector<8x128xf32>
    %850 = arith.mulf %798, %810 : vector<8x128xf32>
    %851 = arith.mulf %832, %822 : vector<8x128xf32>
    %852 = arith.addf %850, %851 : vector<8x128xf32>
    %853 = arith.mulf %798, %814 : vector<8x128xf32>
    %854 = arith.mulf %832, %828 : vector<8x128xf32>
    %855 = arith.addf %853, %854 : vector<8x128xf32>
    %856 = arith.mulf %798, %798 : vector<8x128xf32>
    %857 = arith.mulf %832, %832 : vector<8x128xf32>
    %858 = arith.addf %856, %857 : vector<8x128xf32>
    %859 = arith.mulf %800, %822 : vector<8x128xf32>
    %860 = arith.mulf %800, %828 : vector<8x128xf32>
    %861 = arith.mulf %800, %832 : vector<8x128xf32>
    %862 = arith.mulf %800, %800 : vector<8x128xf32>
    %863 = arith.mulf %416, %839 : vector<8x128xf32>
    %864 = arith.mulf %452, %844 : vector<8x128xf32>
    %865 = arith.addf %863, %864 : vector<8x128xf32>
    %866 = arith.mulf %524, %852 : vector<8x128xf32>
    %867 = arith.addf %865, %866 : vector<8x128xf32>
    %868 = arith.mulf %632, %859 : vector<8x128xf32>
    %869 = arith.addf %867, %868 : vector<8x128xf32>
    %870 = arith.mulf %416, %844 : vector<8x128xf32>
    %871 = arith.mulf %452, %849 : vector<8x128xf32>
    %872 = arith.addf %870, %871 : vector<8x128xf32>
    %873 = arith.mulf %524, %855 : vector<8x128xf32>
    %874 = arith.addf %872, %873 : vector<8x128xf32>
    %875 = arith.mulf %632, %860 : vector<8x128xf32>
    %876 = arith.addf %874, %875 : vector<8x128xf32>
    %877 = arith.mulf %416, %852 : vector<8x128xf32>
    %878 = arith.mulf %452, %855 : vector<8x128xf32>
    %879 = arith.addf %877, %878 : vector<8x128xf32>
    %880 = arith.mulf %524, %858 : vector<8x128xf32>
    %881 = arith.addf %879, %880 : vector<8x128xf32>
    %882 = arith.mulf %632, %861 : vector<8x128xf32>
    %883 = arith.addf %881, %882 : vector<8x128xf32>
    %884 = arith.mulf %416, %859 : vector<8x128xf32>
    %885 = arith.mulf %452, %860 : vector<8x128xf32>
    %886 = arith.addf %884, %885 : vector<8x128xf32>
    %887 = arith.mulf %524, %861 : vector<8x128xf32>
    %888 = arith.addf %886, %887 : vector<8x128xf32>
    %889 = arith.mulf %632, %862 : vector<8x128xf32>
    %890 = arith.addf %888, %889 : vector<8x128xf32>
    %891 = arith.mulf %452, %839 : vector<8x128xf32>
    %892 = arith.mulf %488, %844 : vector<8x128xf32>
    %893 = arith.addf %891, %892 : vector<8x128xf32>
    %894 = arith.mulf %560, %852 : vector<8x128xf32>
    %895 = arith.addf %893, %894 : vector<8x128xf32>
    %896 = arith.mulf %668, %859 : vector<8x128xf32>
    %897 = arith.addf %895, %896 : vector<8x128xf32>
    %898 = arith.mulf %452, %844 : vector<8x128xf32>
    %899 = arith.mulf %488, %849 : vector<8x128xf32>
    %900 = arith.addf %898, %899 : vector<8x128xf32>
    %901 = arith.mulf %560, %855 : vector<8x128xf32>
    %902 = arith.addf %900, %901 : vector<8x128xf32>
    %903 = arith.mulf %668, %860 : vector<8x128xf32>
    %904 = arith.addf %902, %903 : vector<8x128xf32>
    %905 = arith.mulf %452, %852 : vector<8x128xf32>
    %906 = arith.mulf %488, %855 : vector<8x128xf32>
    %907 = arith.addf %905, %906 : vector<8x128xf32>
    %908 = arith.mulf %560, %858 : vector<8x128xf32>
    %909 = arith.addf %907, %908 : vector<8x128xf32>
    %910 = arith.mulf %668, %861 : vector<8x128xf32>
    %911 = arith.addf %909, %910 : vector<8x128xf32>
    %912 = arith.mulf %452, %859 : vector<8x128xf32>
    %913 = arith.mulf %488, %860 : vector<8x128xf32>
    %914 = arith.addf %912, %913 : vector<8x128xf32>
    %915 = arith.mulf %560, %861 : vector<8x128xf32>
    %916 = arith.addf %914, %915 : vector<8x128xf32>
    %917 = arith.mulf %668, %862 : vector<8x128xf32>
    %918 = arith.addf %916, %917 : vector<8x128xf32>
    %919 = arith.mulf %524, %839 : vector<8x128xf32>
    %920 = arith.mulf %560, %844 : vector<8x128xf32>
    %921 = arith.addf %919, %920 : vector<8x128xf32>
    %922 = arith.mulf %596, %852 : vector<8x128xf32>
    %923 = arith.addf %921, %922 : vector<8x128xf32>
    %924 = arith.mulf %704, %859 : vector<8x128xf32>
    %925 = arith.addf %923, %924 : vector<8x128xf32>
    %926 = arith.mulf %524, %844 : vector<8x128xf32>
    %927 = arith.mulf %560, %849 : vector<8x128xf32>
    %928 = arith.addf %926, %927 : vector<8x128xf32>
    %929 = arith.mulf %596, %855 : vector<8x128xf32>
    %930 = arith.addf %928, %929 : vector<8x128xf32>
    %931 = arith.mulf %704, %860 : vector<8x128xf32>
    %932 = arith.addf %930, %931 : vector<8x128xf32>
    %933 = arith.mulf %524, %852 : vector<8x128xf32>
    %934 = arith.mulf %560, %855 : vector<8x128xf32>
    %935 = arith.addf %933, %934 : vector<8x128xf32>
    %936 = arith.mulf %596, %858 : vector<8x128xf32>
    %937 = arith.addf %935, %936 : vector<8x128xf32>
    %938 = arith.mulf %704, %861 : vector<8x128xf32>
    %939 = arith.addf %937, %938 : vector<8x128xf32>
    %940 = arith.mulf %524, %859 : vector<8x128xf32>
    %941 = arith.mulf %560, %860 : vector<8x128xf32>
    %942 = arith.addf %940, %941 : vector<8x128xf32>
    %943 = arith.mulf %596, %861 : vector<8x128xf32>
    %944 = arith.addf %942, %943 : vector<8x128xf32>
    %945 = arith.mulf %704, %862 : vector<8x128xf32>
    %946 = arith.addf %944, %945 : vector<8x128xf32>
    %947 = arith.mulf %632, %839 : vector<8x128xf32>
    %948 = arith.mulf %668, %844 : vector<8x128xf32>
    %949 = arith.addf %947, %948 : vector<8x128xf32>
    %950 = arith.mulf %704, %852 : vector<8x128xf32>
    %951 = arith.addf %949, %950 : vector<8x128xf32>
    %952 = arith.mulf %740, %859 : vector<8x128xf32>
    %953 = arith.addf %951, %952 : vector<8x128xf32>
    %954 = arith.mulf %632, %844 : vector<8x128xf32>
    %955 = arith.mulf %668, %849 : vector<8x128xf32>
    %956 = arith.addf %954, %955 : vector<8x128xf32>
    %957 = arith.mulf %704, %855 : vector<8x128xf32>
    %958 = arith.addf %956, %957 : vector<8x128xf32>
    %959 = arith.mulf %740, %860 : vector<8x128xf32>
    %960 = arith.addf %958, %959 : vector<8x128xf32>
    %961 = arith.mulf %632, %852 : vector<8x128xf32>
    %962 = arith.mulf %668, %855 : vector<8x128xf32>
    %963 = arith.addf %961, %962 : vector<8x128xf32>
    %964 = arith.mulf %704, %858 : vector<8x128xf32>
    %965 = arith.addf %963, %964 : vector<8x128xf32>
    %966 = arith.mulf %740, %861 : vector<8x128xf32>
    %967 = arith.addf %965, %966 : vector<8x128xf32>
    %968 = arith.mulf %632, %859 : vector<8x128xf32>
    %969 = arith.mulf %668, %860 : vector<8x128xf32>
    %970 = arith.addf %968, %969 : vector<8x128xf32>
    %971 = arith.mulf %704, %861 : vector<8x128xf32>
    %972 = arith.addf %970, %971 : vector<8x128xf32>
    %973 = arith.mulf %740, %862 : vector<8x128xf32>
    %974 = arith.addf %972, %973 : vector<8x128xf32>
    %975 = arith.subf %9, %268 : vector<8x128xf32>
    %976 = arith.subf %11, %292 : vector<8x128xf32>
    %977 = arith.subf %13, %316 : vector<8x128xf32>
    %978 = arith.subf %15, %340 : vector<8x128xf32>
    %979 = arith.mulf %869, %975 : vector<8x128xf32>
    %980 = arith.mulf %876, %976 : vector<8x128xf32>
    %981 = arith.addf %979, %980 : vector<8x128xf32>
    %982 = arith.mulf %883, %977 : vector<8x128xf32>
    %983 = arith.addf %981, %982 : vector<8x128xf32>
    %984 = arith.mulf %890, %978 : vector<8x128xf32>
    %985 = arith.addf %983, %984 : vector<8x128xf32>
    %986 = arith.addf %268, %985 : vector<8x128xf32>
    %c0_269 = arith.constant 0 : index
    %c0_270 = arith.constant 0 : index
    %c0_271 = arith.constant 0 : index
    %987 = vector.load %arg7[%c0_269, %c0_270, %c0_271] : memref<4x8x128xf32, #tpu.memory_space<vmem>>, vector<1x8x128xf32>
    %988 = vector.shape_cast %987 : vector<1x8x128xf32> to vector<8x128xf32>
    %989 = vector.shape_cast %986 : vector<8x128xf32> to vector<1x8x128xf32>
    tpu.vector_store %arg7[%c0_269, %c0_270, %c0_271], %989 {strides = array<i32>} : memref<4x8x128xf32, #tpu.memory_space<vmem>>, vector<1x8x128xf32>,
    %990 = arith.mulf %897, %975 : vector<8x128xf32>
    %991 = arith.mulf %904, %976 : vector<8x128xf32>
    %992 = arith.addf %990, %991 : vector<8x128xf32>
    %993 = arith.mulf %911, %977 : vector<8x128xf32>
    %994 = arith.addf %992, %993 : vector<8x128xf32>
    %995 = arith.mulf %918, %978 : vector<8x128xf32>
    %996 = arith.addf %994, %995 : vector<8x128xf32>
    %997 = arith.addf %292, %996 : vector<8x128xf32>
    %c1_272 = arith.constant 1 : index
    %c0_273 = arith.constant 0 : index
    %c0_274 = arith.constant 0 : index
    %998 = vector.load %arg7[%c1_272, %c0_273, %c0_274] : memref<4x8x128xf32, #tpu.memory_space<vmem>>, vector<1x8x128xf32>
    %999 = vector.shape_cast %998 : vector<1x8x128xf32> to vector<8x128xf32>
    %1000 = vector.shape_cast %997 : vector<8x128xf32> to vector<1x8x128xf32>
    tpu.vector_store %arg7[%c1_272, %c0_273, %c0_274], %1000 {strides = array<i32>} : memref<4x8x128xf32, #tpu.memory_space<vmem>>, vector<1x8x128xf32>,
    %1001 = arith.mulf %925, %975 : vector<8x128xf32>
    %1002 = arith.mulf %932, %976 : vector<8x128xf32>
    %1003 = arith.addf %1001, %1002 : vector<8x128xf32>
    %1004 = arith.mulf %939, %977 : vector<8x128xf32>
    %1005 = arith.addf %1003, %1004 : vector<8x128xf32>
    %1006 = arith.mulf %946, %978 : vector<8x128xf32>
    %1007 = arith.addf %1005, %1006 : vector<8x128xf32>
    %1008 = arith.addf %316, %1007 : vector<8x128xf32>
    %c2_275 = arith.constant 2 : index
    %c0_276 = arith.constant 0 : index
    %c0_277 = arith.constant 0 : index
    %1009 = vector.load %arg7[%c2_275, %c0_276, %c0_277] : memref<4x8x128xf32, #tpu.memory_space<vmem>>, vector<1x8x128xf32>
    %1010 = vector.shape_cast %1009 : vector<1x8x128xf32> to vector<8x128xf32>
    %1011 = vector.shape_cast %1008 : vector<8x128xf32> to vector<1x8x128xf32>
    tpu.vector_store %arg7[%c2_275, %c0_276, %c0_277], %1011 {strides = array<i32>} : memref<4x8x128xf32, #tpu.memory_space<vmem>>, vector<1x8x128xf32>,
    %1012 = arith.mulf %953, %975 : vector<8x128xf32>
    %1013 = arith.mulf %960, %976 : vector<8x128xf32>
    %1014 = arith.addf %1012, %1013 : vector<8x128xf32>
    %1015 = arith.mulf %967, %977 : vector<8x128xf32>
    %1016 = arith.addf %1014, %1015 : vector<8x128xf32>
    %1017 = arith.mulf %974, %978 : vector<8x128xf32>
    %1018 = arith.addf %1016, %1017 : vector<8x128xf32>
    %1019 = arith.addf %340, %1018 : vector<8x128xf32>
    %c3_278 = arith.constant 3 : index
    %c0_279 = arith.constant 0 : index
    %c0_280 = arith.constant 0 : index
    %1020 = vector.load %arg7[%c3_278, %c0_279, %c0_280] : memref<4x8x128xf32, #tpu.memory_space<vmem>>, vector<1x8x128xf32>
    %1021 = vector.shape_cast %1020 : vector<1x8x128xf32> to vector<8x128xf32>
    %1022 = vector.shape_cast %1019 : vector<8x128xf32> to vector<1x8x128xf32>
    tpu.vector_store %arg7[%c3_278, %c0_279, %c0_280], %1022 {strides = array<i32>} : memref<4x8x128xf32, #tpu.memory_space<vmem>>, vector<1x8x128xf32>,
    %1023 = arith.mulf %741, %869 : vector<8x128xf32>
    %1024 = arith.mulf %742, %876 : vector<8x128xf32>
    %1025 = arith.addf %1023, %1024 : vector<8x128xf32>
    %1026 = arith.mulf %743, %883 : vector<8x128xf32>
    %1027 = arith.addf %1025, %1026 : vector<8x128xf32>
    %1028 = arith.mulf %744, %890 : vector<8x128xf32>
    %1029 = arith.addf %1027, %1028 : vector<8x128xf32>
    %1030 = arith.mulf %741, %897 : vector<8x128xf32>
    %1031 = arith.mulf %742, %904 : vector<8x128xf32>
    %1032 = arith.addf %1030, %1031 : vector<8x128xf32>
    %1033 = arith.mulf %743, %911 : vector<8x128xf32>
    %1034 = arith.addf %1032, %1033 : vector<8x128xf32>
    %1035 = arith.mulf %744, %918 : vector<8x128xf32>
    %1036 = arith.addf %1034, %1035 : vector<8x128xf32>
    %1037 = arith.mulf %741, %925 : vector<8x128xf32>
    %1038 = arith.mulf %742, %932 : vector<8x128xf32>
    %1039 = arith.addf %1037, %1038 : vector<8x128xf32>
    %1040 = arith.mulf %743, %939 : vector<8x128xf32>
    %1041 = arith.addf %1039, %1040 : vector<8x128xf32>
    %1042 = arith.mulf %744, %946 : vector<8x128xf32>
    %1043 = arith.addf %1041, %1042 : vector<8x128xf32>
    %1044 = arith.mulf %741, %953 : vector<8x128xf32>
    %1045 = arith.mulf %742, %960 : vector<8x128xf32>
    %1046 = arith.addf %1044, %1045 : vector<8x128xf32>
    %1047 = arith.mulf %743, %967 : vector<8x128xf32>
    %1048 = arith.addf %1046, %1047 : vector<8x128xf32>
    %1049 = arith.mulf %744, %974 : vector<8x128xf32>
    %1050 = arith.addf %1048, %1049 : vector<8x128xf32>
    %1051 = arith.mulf %745, %869 : vector<8x128xf32>
    %1052 = arith.mulf %746, %876 : vector<8x128xf32>
    %1053 = arith.addf %1051, %1052 : vector<8x128xf32>
    %1054 = arith.mulf %747, %883 : vector<8x128xf32>
    %1055 = arith.addf %1053, %1054 : vector<8x128xf32>
    %1056 = arith.mulf %748, %890 : vector<8x128xf32>
    %1057 = arith.addf %1055, %1056 : vector<8x128xf32>
    %1058 = arith.mulf %745, %897 : vector<8x128xf32>
    %1059 = arith.mulf %746, %904 : vector<8x128xf32>
    %1060 = arith.addf %1058, %1059 : vector<8x128xf32>
    %1061 = arith.mulf %747, %911 : vector<8x128xf32>
    %1062 = arith.addf %1060, %1061 : vector<8x128xf32>
    %1063 = arith.mulf %748, %918 : vector<8x128xf32>
    %1064 = arith.addf %1062, %1063 : vector<8x128xf32>
    %1065 = arith.mulf %745, %925 : vector<8x128xf32>
    %1066 = arith.mulf %746, %932 : vector<8x128xf32>
    %1067 = arith.addf %1065, %1066 : vector<8x128xf32>
    %1068 = arith.mulf %747, %939 : vector<8x128xf32>
    %1069 = arith.addf %1067, %1068 : vector<8x128xf32>
    %1070 = arith.mulf %748, %946 : vector<8x128xf32>
    %1071 = arith.addf %1069, %1070 : vector<8x128xf32>
    %1072 = arith.mulf %745, %953 : vector<8x128xf32>
    %1073 = arith.mulf %746, %960 : vector<8x128xf32>
    %1074 = arith.addf %1072, %1073 : vector<8x128xf32>
    %1075 = arith.mulf %747, %967 : vector<8x128xf32>
    %1076 = arith.addf %1074, %1075 : vector<8x128xf32>
    %1077 = arith.mulf %748, %974 : vector<8x128xf32>
    %1078 = arith.addf %1076, %1077 : vector<8x128xf32>
    %1079 = arith.mulf %749, %869 : vector<8x128xf32>
    %1080 = arith.mulf %750, %876 : vector<8x128xf32>
    %1081 = arith.addf %1079, %1080 : vector<8x128xf32>
    %1082 = arith.mulf %751, %883 : vector<8x128xf32>
    %1083 = arith.addf %1081, %1082 : vector<8x128xf32>
    %1084 = arith.mulf %752, %890 : vector<8x128xf32>
    %1085 = arith.addf %1083, %1084 : vector<8x128xf32>
    %1086 = arith.mulf %749, %897 : vector<8x128xf32>
    %1087 = arith.mulf %750, %904 : vector<8x128xf32>
    %1088 = arith.addf %1086, %1087 : vector<8x128xf32>
    %1089 = arith.mulf %751, %911 : vector<8x128xf32>
    %1090 = arith.addf %1088, %1089 : vector<8x128xf32>
    %1091 = arith.mulf %752, %918 : vector<8x128xf32>
    %1092 = arith.addf %1090, %1091 : vector<8x128xf32>
    %1093 = arith.mulf %749, %925 : vector<8x128xf32>
    %1094 = arith.mulf %750, %932 : vector<8x128xf32>
    %1095 = arith.addf %1093, %1094 : vector<8x128xf32>
    %1096 = arith.mulf %751, %939 : vector<8x128xf32>
    %1097 = arith.addf %1095, %1096 : vector<8x128xf32>
    %1098 = arith.mulf %752, %946 : vector<8x128xf32>
    %1099 = arith.addf %1097, %1098 : vector<8x128xf32>
    %1100 = arith.mulf %749, %953 : vector<8x128xf32>
    %1101 = arith.mulf %750, %960 : vector<8x128xf32>
    %1102 = arith.addf %1100, %1101 : vector<8x128xf32>
    %1103 = arith.mulf %751, %967 : vector<8x128xf32>
    %1104 = arith.addf %1102, %1103 : vector<8x128xf32>
    %1105 = arith.mulf %752, %974 : vector<8x128xf32>
    %1106 = arith.addf %1104, %1105 : vector<8x128xf32>
    %1107 = arith.mulf %753, %869 : vector<8x128xf32>
    %1108 = arith.mulf %754, %876 : vector<8x128xf32>
    %1109 = arith.addf %1107, %1108 : vector<8x128xf32>
    %1110 = arith.mulf %755, %883 : vector<8x128xf32>
    %1111 = arith.addf %1109, %1110 : vector<8x128xf32>
    %1112 = arith.mulf %756, %890 : vector<8x128xf32>
    %1113 = arith.addf %1111, %1112 : vector<8x128xf32>
    %1114 = arith.mulf %753, %897 : vector<8x128xf32>
    %1115 = arith.mulf %754, %904 : vector<8x128xf32>
    %1116 = arith.addf %1114, %1115 : vector<8x128xf32>
    %1117 = arith.mulf %755, %911 : vector<8x128xf32>
    %1118 = arith.addf %1116, %1117 : vector<8x128xf32>
    %1119 = arith.mulf %756, %918 : vector<8x128xf32>
    %1120 = arith.addf %1118, %1119 : vector<8x128xf32>
    %1121 = arith.mulf %753, %925 : vector<8x128xf32>
    %1122 = arith.mulf %754, %932 : vector<8x128xf32>
    %1123 = arith.addf %1121, %1122 : vector<8x128xf32>
    %1124 = arith.mulf %755, %939 : vector<8x128xf32>
    %1125 = arith.addf %1123, %1124 : vector<8x128xf32>
    %1126 = arith.mulf %756, %946 : vector<8x128xf32>
    %1127 = arith.addf %1125, %1126 : vector<8x128xf32>
    %1128 = arith.mulf %753, %953 : vector<8x128xf32>
    %1129 = arith.mulf %754, %960 : vector<8x128xf32>
    %1130 = arith.addf %1128, %1129 : vector<8x128xf32>
    %1131 = arith.mulf %755, %967 : vector<8x128xf32>
    %1132 = arith.addf %1130, %1131 : vector<8x128xf32>
    %1133 = arith.mulf %756, %974 : vector<8x128xf32>
    %1134 = arith.addf %1132, %1133 : vector<8x128xf32>
    %1135 = arith.mulf %869, %1029 : vector<8x128xf32>
    %1136 = arith.mulf %876, %1057 : vector<8x128xf32>
    %1137 = arith.addf %1135, %1136 : vector<8x128xf32>
    %1138 = arith.mulf %883, %1085 : vector<8x128xf32>
    %1139 = arith.addf %1137, %1138 : vector<8x128xf32>
    %1140 = arith.mulf %890, %1113 : vector<8x128xf32>
    %1141 = arith.addf %1139, %1140 : vector<8x128xf32>
    %1142 = arith.subf %416, %1141 : vector<8x128xf32>
    %c0_281 = arith.constant 0 : index
    %c0_282 = arith.constant 0 : index
    %c0_283 = arith.constant 0 : index
    %1143 = vector.load %arg8[%c0_281, %c0_282, %c0_283] : memref<16x8x128xf32, #tpu.memory_space<vmem>>, vector<1x8x128xf32>
    %1144 = vector.shape_cast %1143 : vector<1x8x128xf32> to vector<8x128xf32>
    %1145 = vector.shape_cast %1142 : vector<8x128xf32> to vector<1x8x128xf32>
    tpu.vector_store %arg8[%c0_281, %c0_282, %c0_283], %1145 {strides = array<i32>} : memref<16x8x128xf32, #tpu.memory_space<vmem>>, vector<1x8x128xf32>,
    %1146 = arith.mulf %869, %1036 : vector<8x128xf32>
    %1147 = arith.mulf %876, %1064 : vector<8x128xf32>
    %1148 = arith.addf %1146, %1147 : vector<8x128xf32>
    %1149 = arith.mulf %883, %1092 : vector<8x128xf32>
    %1150 = arith.addf %1148, %1149 : vector<8x128xf32>
    %1151 = arith.mulf %890, %1120 : vector<8x128xf32>
    %1152 = arith.addf %1150, %1151 : vector<8x128xf32>
    %1153 = arith.subf %452, %1152 : vector<8x128xf32>
    %c1_284 = arith.constant 1 : index
    %c0_285 = arith.constant 0 : index
    %c0_286 = arith.constant 0 : index
    %1154 = vector.load %arg8[%c1_284, %c0_285, %c0_286] : memref<16x8x128xf32, #tpu.memory_space<vmem>>, vector<1x8x128xf32>
    %1155 = vector.shape_cast %1154 : vector<1x8x128xf32> to vector<8x128xf32>
    %1156 = vector.shape_cast %1153 : vector<8x128xf32> to vector<1x8x128xf32>
    tpu.vector_store %arg8[%c1_284, %c0_285, %c0_286], %1156 {strides = array<i32>} : memref<16x8x128xf32, #tpu.memory_space<vmem>>, vector<1x8x128xf32>,
    %1157 = arith.mulf %869, %1043 : vector<8x128xf32>
    %1158 = arith.mulf %876, %1071 : vector<8x128xf32>
    %1159 = arith.addf %1157, %1158 : vector<8x128xf32>
    %1160 = arith.mulf %883, %1099 : vector<8x128xf32>
    %1161 = arith.addf %1159, %1160 : vector<8x128xf32>
    %1162 = arith.mulf %890, %1127 : vector<8x128xf32>
    %1163 = arith.addf %1161, %1162 : vector<8x128xf32>
    %1164 = arith.subf %524, %1163 : vector<8x128xf32>
    %c2_287 = arith.constant 2 : index
    %c0_288 = arith.constant 0 : index
    %c0_289 = arith.constant 0 : index
    %1165 = vector.load %arg8[%c2_287, %c0_288, %c0_289] : memref<16x8x128xf32, #tpu.memory_space<vmem>>, vector<1x8x128xf32>
    %1166 = vector.shape_cast %1165 : vector<1x8x128xf32> to vector<8x128xf32>
    %1167 = vector.shape_cast %1164 : vector<8x128xf32> to vector<1x8x128xf32>
    tpu.vector_store %arg8[%c2_287, %c0_288, %c0_289], %1167 {strides = array<i32>} : memref<16x8x128xf32, #tpu.memory_space<vmem>>, vector<1x8x128xf32>,
    %1168 = arith.mulf %869, %1050 : vector<8x128xf32>
    %1169 = arith.mulf %876, %1078 : vector<8x128xf32>
    %1170 = arith.addf %1168, %1169 : vector<8x128xf32>
    %1171 = arith.mulf %883, %1106 : vector<8x128xf32>
    %1172 = arith.addf %1170, %1171 : vector<8x128xf32>
    %1173 = arith.mulf %890, %1134 : vector<8x128xf32>
    %1174 = arith.addf %1172, %1173 : vector<8x128xf32>
    %1175 = arith.subf %632, %1174 : vector<8x128xf32>
    %c3_290 = arith.constant 3 : index
    %c0_291 = arith.constant 0 : index
    %c0_292 = arith.constant 0 : index
    %1176 = vector.load %arg8[%c3_290, %c0_291, %c0_292] : memref<16x8x128xf32, #tpu.memory_space<vmem>>, vector<1x8x128xf32>
    %1177 = vector.shape_cast %1176 : vector<1x8x128xf32> to vector<8x128xf32>
    %1178 = vector.shape_cast %1175 : vector<8x128xf32> to vector<1x8x128xf32>
    tpu.vector_store %arg8[%c3_290, %c0_291, %c0_292], %1178 {strides = array<i32>} : memref<16x8x128xf32, #tpu.memory_space<vmem>>, vector<1x8x128xf32>,
    %1179 = arith.mulf %897, %1029 : vector<8x128xf32>
    %1180 = arith.mulf %904, %1057 : vector<8x128xf32>
    %1181 = arith.addf %1179, %1180 : vector<8x128xf32>
    %1182 = arith.mulf %911, %1085 : vector<8x128xf32>
    %1183 = arith.addf %1181, %1182 : vector<8x128xf32>
    %1184 = arith.mulf %918, %1113 : vector<8x128xf32>
    %1185 = arith.addf %1183, %1184 : vector<8x128xf32>
    %1186 = arith.subf %452, %1185 : vector<8x128xf32>
    %c4_293 = arith.constant 4 : index
    %c0_294 = arith.constant 0 : index
    %c0_295 = arith.constant 0 : index
    %1187 = vector.load %arg8[%c4_293, %c0_294, %c0_295] : memref<16x8x128xf32, #tpu.memory_space<vmem>>, vector<1x8x128xf32>
    %1188 = vector.shape_cast %1187 : vector<1x8x128xf32> to vector<8x128xf32>
    %1189 = vector.shape_cast %1186 : vector<8x128xf32> to vector<1x8x128xf32>
    tpu.vector_store %arg8[%c4_293, %c0_294, %c0_295], %1189 {strides = array<i32>} : memref<16x8x128xf32, #tpu.memory_space<vmem>>, vector<1x8x128xf32>,
    %1190 = arith.mulf %897, %1036 : vector<8x128xf32>
    %1191 = arith.mulf %904, %1064 : vector<8x128xf32>
    %1192 = arith.addf %1190, %1191 : vector<8x128xf32>
    %1193 = arith.mulf %911, %1092 : vector<8x128xf32>
    %1194 = arith.addf %1192, %1193 : vector<8x128xf32>
    %1195 = arith.mulf %918, %1120 : vector<8x128xf32>
    %1196 = arith.addf %1194, %1195 : vector<8x128xf32>
    %1197 = arith.subf %488, %1196 : vector<8x128xf32>
    %c5_296 = arith.constant 5 : index
    %c0_297 = arith.constant 0 : index
    %c0_298 = arith.constant 0 : index
    %1198 = vector.load %arg8[%c5_296, %c0_297, %c0_298] : memref<16x8x128xf32, #tpu.memory_space<vmem>>, vector<1x8x128xf32>
    %1199 = vector.shape_cast %1198 : vector<1x8x128xf32> to vector<8x128xf32>
    %1200 = vector.shape_cast %1197 : vector<8x128xf32> to vector<1x8x128xf32>
    tpu.vector_store %arg8[%c5_296, %c0_297, %c0_298], %1200 {strides = array<i32>} : memref<16x8x128xf32, #tpu.memory_space<vmem>>, vector<1x8x128xf32>,
    %1201 = arith.mulf %897, %1043 : vector<8x128xf32>
    %1202 = arith.mulf %904, %1071 : vector<8x128xf32>
    %1203 = arith.addf %1201, %1202 : vector<8x128xf32>
    %1204 = arith.mulf %911, %1099 : vector<8x128xf32>
    %1205 = arith.addf %1203, %1204 : vector<8x128xf32>
    %1206 = arith.mulf %918, %1127 : vector<8x128xf32>
    %1207 = arith.addf %1205, %1206 : vector<8x128xf32>
    %1208 = arith.subf %560, %1207 : vector<8x128xf32>
    %c6_299 = arith.constant 6 : index
    %c0_300 = arith.constant 0 : index
    %c0_301 = arith.constant 0 : index
    %1209 = vector.load %arg8[%c6_299, %c0_300, %c0_301] : memref<16x8x128xf32, #tpu.memory_space<vmem>>, vector<1x8x128xf32>
    %1210 = vector.shape_cast %1209 : vector<1x8x128xf32> to vector<8x128xf32>
    %1211 = vector.shape_cast %1208 : vector<8x128xf32> to vector<1x8x128xf32>
    tpu.vector_store %arg8[%c6_299, %c0_300, %c0_301], %1211 {strides = array<i32>} : memref<16x8x128xf32, #tpu.memory_space<vmem>>, vector<1x8x128xf32>,
    %1212 = arith.mulf %897, %1050 : vector<8x128xf32>
    %1213 = arith.mulf %904, %1078 : vector<8x128xf32>
    %1214 = arith.addf %1212, %1213 : vector<8x128xf32>
    %1215 = arith.mulf %911, %1106 : vector<8x128xf32>
    %1216 = arith.addf %1214, %1215 : vector<8x128xf32>
    %1217 = arith.mulf %918, %1134 : vector<8x128xf32>
    %1218 = arith.addf %1216, %1217 : vector<8x128xf32>
    %1219 = arith.subf %668, %1218 : vector<8x128xf32>
    %c7_302 = arith.constant 7 : index
    %c0_303 = arith.constant 0 : index
    %c0_304 = arith.constant 0 : index
    %1220 = vector.load %arg8[%c7_302, %c0_303, %c0_304] : memref<16x8x128xf32, #tpu.memory_space<vmem>>, vector<1x8x128xf32>
    %1221 = vector.shape_cast %1220 : vector<1x8x128xf32> to vector<8x128xf32>
    %1222 = vector.shape_cast %1219 : vector<8x128xf32> to vector<1x8x128xf32>
    tpu.vector_store %arg8[%c7_302, %c0_303, %c0_304], %1222 {strides = array<i32>} : memref<16x8x128xf32, #tpu.memory_space<vmem>>, vector<1x8x128xf32>,
    %1223 = arith.mulf %925, %1029 : vector<8x128xf32>
    %1224 = arith.mulf %932, %1057 : vector<8x128xf32>
    %1225 = arith.addf %1223, %1224 : vector<8x128xf32>
    %1226 = arith.mulf %939, %1085 : vector<8x128xf32>
    %1227 = arith.addf %1225, %1226 : vector<8x128xf32>
    %1228 = arith.mulf %946, %1113 : vector<8x128xf32>
    %1229 = arith.addf %1227, %1228 : vector<8x128xf32>
    %1230 = arith.subf %524, %1229 : vector<8x128xf32>
    %c8_305 = arith.constant 8 : index
    %c0_306 = arith.constant 0 : index
    %c0_307 = arith.constant 0 : index
    %1231 = vector.load %arg8[%c8_305, %c0_306, %c0_307] : memref<16x8x128xf32, #tpu.memory_space<vmem>>, vector<1x8x128xf32>
    %1232 = vector.shape_cast %1231 : vector<1x8x128xf32> to vector<8x128xf32>
    %1233 = vector.shape_cast %1230 : vector<8x128xf32> to vector<1x8x128xf32>
    tpu.vector_store %arg8[%c8_305, %c0_306, %c0_307], %1233 {strides = array<i32>} : memref<16x8x128xf32, #tpu.memory_space<vmem>>, vector<1x8x128xf32>,
    %1234 = arith.mulf %925, %1036 : vector<8x128xf32>
    %1235 = arith.mulf %932, %1064 : vector<8x128xf32>
    %1236 = arith.addf %1234, %1235 : vector<8x128xf32>
    %1237 = arith.mulf %939, %1092 : vector<8x128xf32>
    %1238 = arith.addf %1236, %1237 : vector<8x128xf32>
    %1239 = arith.mulf %946, %1120 : vector<8x128xf32>
    %1240 = arith.addf %1238, %1239 : vector<8x128xf32>
    %1241 = arith.subf %560, %1240 : vector<8x128xf32>
    %c9_308 = arith.constant 9 : index
    %c0_309 = arith.constant 0 : index
    %c0_310 = arith.constant 0 : index
    %1242 = vector.load %arg8[%c9_308, %c0_309, %c0_310] : memref<16x8x128xf32, #tpu.memory_space<vmem>>, vector<1x8x128xf32>
    %1243 = vector.shape_cast %1242 : vector<1x8x128xf32> to vector<8x128xf32>
    %1244 = vector.shape_cast %1241 : vector<8x128xf32> to vector<1x8x128xf32>
    tpu.vector_store %arg8[%c9_308, %c0_309, %c0_310], %1244 {strides = array<i32>} : memref<16x8x128xf32, #tpu.memory_space<vmem>>, vector<1x8x128xf32>,
    %1245 = arith.mulf %925, %1043 : vector<8x128xf32>
    %1246 = arith.mulf %932, %1071 : vector<8x128xf32>
    %1247 = arith.addf %1245, %1246 : vector<8x128xf32>
    %1248 = arith.mulf %939, %1099 : vector<8x128xf32>
    %1249 = arith.addf %1247, %1248 : vector<8x128xf32>
    %1250 = arith.mulf %946, %1127 : vector<8x128xf32>
    %1251 = arith.addf %1249, %1250 : vector<8x128xf32>
    %1252 = arith.subf %596, %1251 : vector<8x128xf32>
    %c10_311 = arith.constant 10 : index
    %c0_312 = arith.constant 0 : index
    %c0_313 = arith.constant 0 : index
    %1253 = vector.load %arg8[%c10_311, %c0_312, %c0_313] : memref<16x8x128xf32, #tpu.memory_space<vmem>>, vector<1x8x128xf32>
    %1254 = vector.shape_cast %1253 : vector<1x8x128xf32> to vector<8x128xf32>
    %1255 = vector.shape_cast %1252 : vector<8x128xf32> to vector<1x8x128xf32>
    tpu.vector_store %arg8[%c10_311, %c0_312, %c0_313], %1255 {strides = array<i32>} : memref<16x8x128xf32, #tpu.memory_space<vmem>>, vector<1x8x128xf32>,
    %1256 = arith.mulf %925, %1050 : vector<8x128xf32>
    %1257 = arith.mulf %932, %1078 : vector<8x128xf32>
    %1258 = arith.addf %1256, %1257 : vector<8x128xf32>
    %1259 = arith.mulf %939, %1106 : vector<8x128xf32>
    %1260 = arith.addf %1258, %1259 : vector<8x128xf32>
    %1261 = arith.mulf %946, %1134 : vector<8x128xf32>
    %1262 = arith.addf %1260, %1261 : vector<8x128xf32>
    %1263 = arith.subf %704, %1262 : vector<8x128xf32>
    %c11 = arith.constant 11 : index
    %c0_314 = arith.constant 0 : index
    %c0_315 = arith.constant 0 : index
    %1264 = vector.load %arg8[%c11, %c0_314, %c0_315] : memref<16x8x128xf32, #tpu.memory_space<vmem>>, vector<1x8x128xf32>
    %1265 = vector.shape_cast %1264 : vector<1x8x128xf32> to vector<8x128xf32>
    %1266 = vector.shape_cast %1263 : vector<8x128xf32> to vector<1x8x128xf32>
    tpu.vector_store %arg8[%c11, %c0_314, %c0_315], %1266 {strides = array<i32>} : memref<16x8x128xf32, #tpu.memory_space<vmem>>, vector<1x8x128xf32>,
    %1267 = arith.mulf %953, %1029 : vector<8x128xf32>
    %1268 = arith.mulf %960, %1057 : vector<8x128xf32>
    %1269 = arith.addf %1267, %1268 : vector<8x128xf32>
    %1270 = arith.mulf %967, %1085 : vector<8x128xf32>
    %1271 = arith.addf %1269, %1270 : vector<8x128xf32>
    %1272 = arith.mulf %974, %1113 : vector<8x128xf32>
    %1273 = arith.addf %1271, %1272 : vector<8x128xf32>
    %1274 = arith.subf %632, %1273 : vector<8x128xf32>
    %c12_316 = arith.constant 12 : index
    %c0_317 = arith.constant 0 : index
    %c0_318 = arith.constant 0 : index
    %1275 = vector.load %arg8[%c12_316, %c0_317, %c0_318] : memref<16x8x128xf32, #tpu.memory_space<vmem>>, vector<1x8x128xf32>
    %1276 = vector.shape_cast %1275 : vector<1x8x128xf32> to vector<8x128xf32>
    %1277 = vector.shape_cast %1274 : vector<8x128xf32> to vector<1x8x128xf32>
    tpu.vector_store %arg8[%c12_316, %c0_317, %c0_318], %1277 {strides = array<i32>} : memref<16x8x128xf32, #tpu.memory_space<vmem>>, vector<1x8x128xf32>,
    %1278 = arith.mulf %953, %1036 : vector<8x128xf32>
    %1279 = arith.mulf %960, %1064 : vector<8x128xf32>
    %1280 = arith.addf %1278, %1279 : vector<8x128xf32>
    %1281 = arith.mulf %967, %1092 : vector<8x128xf32>
    %1282 = arith.addf %1280, %1281 : vector<8x128xf32>
    %1283 = arith.mulf %974, %1120 : vector<8x128xf32>
    %1284 = arith.addf %1282, %1283 : vector<8x128xf32>
    %1285 = arith.subf %668, %1284 : vector<8x128xf32>
    %c13_319 = arith.constant 13 : index
    %c0_320 = arith.constant 0 : index
    %c0_321 = arith.constant 0 : index
    %1286 = vector.load %arg8[%c13_319, %c0_320, %c0_321] : memref<16x8x128xf32, #tpu.memory_space<vmem>>, vector<1x8x128xf32>
    %1287 = vector.shape_cast %1286 : vector<1x8x128xf32> to vector<8x128xf32>
    %1288 = vector.shape_cast %1285 : vector<8x128xf32> to vector<1x8x128xf32>
    tpu.vector_store %arg8[%c13_319, %c0_320, %c0_321], %1288 {strides = array<i32>} : memref<16x8x128xf32, #tpu.memory_space<vmem>>, vector<1x8x128xf32>,
    %1289 = arith.mulf %953, %1043 : vector<8x128xf32>
    %1290 = arith.mulf %960, %1071 : vector<8x128xf32>
    %1291 = arith.addf %1289, %1290 : vector<8x128xf32>
    %1292 = arith.mulf %967, %1099 : vector<8x128xf32>
    %1293 = arith.addf %1291, %1292 : vector<8x128xf32>
    %1294 = arith.mulf %974, %1127 : vector<8x128xf32>
    %1295 = arith.addf %1293, %1294 : vector<8x128xf32>
    %1296 = arith.subf %704, %1295 : vector<8x128xf32>
    %c14_322 = arith.constant 14 : index
    %c0_323 = arith.constant 0 : index
    %c0_324 = arith.constant 0 : index
    %1297 = vector.load %arg8[%c14_322, %c0_323, %c0_324] : memref<16x8x128xf32, #tpu.memory_space<vmem>>, vector<1x8x128xf32>
    %1298 = vector.shape_cast %1297 : vector<1x8x128xf32> to vector<8x128xf32>
    %1299 = vector.shape_cast %1296 : vector<8x128xf32> to vector<1x8x128xf32>
    tpu.vector_store %arg8[%c14_322, %c0_323, %c0_324], %1299 {strides = array<i32>} : memref<16x8x128xf32, #tpu.memory_space<vmem>>, vector<1x8x128xf32>,
    %1300 = arith.mulf %953, %1050 : vector<8x128xf32>
    %1301 = arith.mulf %960, %1078 : vector<8x128xf32>
    %1302 = arith.addf %1300, %1301 : vector<8x128xf32>
    %1303 = arith.mulf %967, %1106 : vector<8x128xf32>
    %1304 = arith.addf %1302, %1303 : vector<8x128xf32>
    %1305 = arith.mulf %974, %1134 : vector<8x128xf32>
    %1306 = arith.addf %1304, %1305 : vector<8x128xf32>
    %1307 = arith.subf %740, %1306 : vector<8x128xf32>
    %c15_325 = arith.constant 15 : index
    %c0_326 = arith.constant 0 : index
    %c0_327 = arith.constant 0 : index
    %1308 = vector.load %arg8[%c15_325, %c0_326, %c0_327] : memref<16x8x128xf32, #tpu.memory_space<vmem>>, vector<1x8x128xf32>
    %1309 = vector.shape_cast %1308 : vector<1x8x128xf32> to vector<8x128xf32>
    %1310 = vector.shape_cast %1307 : vector<8x128xf32> to vector<1x8x128xf32>
    tpu.vector_store %arg8[%c15_325, %c0_326, %c0_327], %1310 {strides = array<i32>} : memref<16x8x128xf32, #tpu.memory_space<vmem>>, vector<1x8x128xf32>,
    %c0_328 = arith.constant 0 : index
    %c0_329 = arith.constant 0 : index
    %c0_330 = arith.constant 0 : index
    %1311 = vector.load %arg6[%c0_328, %c0_329, %c0_330] : memref<4x8x128xf32, #tpu.memory_space<vmem>>, vector<1x8x128xf32>
    %1312 = vector.shape_cast %1311 : vector<1x8x128xf32> to vector<8x128xf32>
    %1313 = vector.shape_cast %268 : vector<8x128xf32> to vector<1x8x128xf32>
    tpu.vector_store %arg6[%c0_328, %c0_329, %c0_330], %1313 {strides = array<i32>} : memref<4x8x128xf32, #tpu.memory_space<vmem>>, vector<1x8x128xf32>,
    %c1_331 = arith.constant 1 : index
    %c0_332 = arith.constant 0 : index
    %c0_333 = arith.constant 0 : index
    %1314 = vector.load %arg6[%c1_331, %c0_332, %c0_333] : memref<4x8x128xf32, #tpu.memory_space<vmem>>, vector<1x8x128xf32>
    %1315 = vector.shape_cast %1314 : vector<1x8x128xf32> to vector<8x128xf32>
    %1316 = vector.shape_cast %292 : vector<8x128xf32> to vector<1x8x128xf32>
    tpu.vector_store %arg6[%c1_331, %c0_332, %c0_333], %1316 {strides = array<i32>} : memref<4x8x128xf32, #tpu.memory_space<vmem>>, vector<1x8x128xf32>,
    %c2_334 = arith.constant 2 : index
    %c0_335 = arith.constant 0 : index
    %c0_336 = arith.constant 0 : index
    %1317 = vector.load %arg6[%c2_334, %c0_335, %c0_336] : memref<4x8x128xf32, #tpu.memory_space<vmem>>, vector<1x8x128xf32>
    %1318 = vector.shape_cast %1317 : vector<1x8x128xf32> to vector<8x128xf32>
    %1319 = vector.shape_cast %316 : vector<8x128xf32> to vector<1x8x128xf32>
    tpu.vector_store %arg6[%c2_334, %c0_335, %c0_336], %1319 {strides = array<i32>} : memref<4x8x128xf32, #tpu.memory_space<vmem>>, vector<1x8x128xf32>,
    %c3_337 = arith.constant 3 : index
    %c0_338 = arith.constant 0 : index
    %c0_339 = arith.constant 0 : index
    %1320 = vector.load %arg6[%c3_337, %c0_338, %c0_339] : memref<4x8x128xf32, #tpu.memory_space<vmem>>, vector<1x8x128xf32>
    %1321 = vector.shape_cast %1320 : vector<1x8x128xf32> to vector<8x128xf32>
    %1322 = vector.shape_cast %340 : vector<8x128xf32> to vector<1x8x128xf32>
    tpu.vector_store %arg6[%c3_337, %c0_338, %c0_339], %1322 {strides = array<i32>} : memref<4x8x128xf32, #tpu.memory_space<vmem>>, vector<1x8x128xf32>,
    return
  }
  func.func @transform_0(%arg0: i32) -> (i32, i32, i32) {
    %c0_i32 = arith.constant 0 : i32
    %c0_i32_0 = arith.constant 0 : i32
    %c0_i32_1 = arith.constant 0 : i32
    return %c0_i32, %arg0, %c0_i32_0 : i32, i32, i32
  }
  func.func @transform_1(%arg0: i32) -> (i32, i32, i32) {
    %c0_i32 = arith.constant 0 : i32
    %c0_i32_0 = arith.constant 0 : i32
    %c0_i32_1 = arith.constant 0 : i32
    return %c0_i32, %arg0, %c0_i32_0 : i32, i32, i32
  }
  func.func @transform_2(%arg0: i32) -> (i32, i32, i32) {
    %c0_i32 = arith.constant 0 : i32
    %c0_i32_0 = arith.constant 0 : i32
    %c0_i32_1 = arith.constant 0 : i32
    return %c0_i32, %arg0, %c0_i32_0 : i32, i32, i32
  }
  func.func @transform_3(%arg0: i32) -> (i32, i32, i32) {
    %c0_i32 = arith.constant 0 : i32
    %c0_i32_0 = arith.constant 0 : i32
    %c0_i32_1 = arith.constant 0 : i32
    return %c0_i32, %arg0, %c0_i32_0 : i32, i32, i32
  }
  func.func @transform_4(%arg0: i32) -> (i32, i32, i32) {
    %c0_i32 = arith.constant 0 : i32
    %c0_i32_0 = arith.constant 0 : i32
    %c0_i32_1 = arith.constant 0 : i32
    return %c0_i32, %arg0, %c0_i32_0 : i32, i32, i32
  }
  func.func @transform_5(%arg0: i32) -> (i32, i32, i32) {
    %c0_i32 = arith.constant 0 : i32
    %c0_i32_0 = arith.constant 0 : i32
    %c0_i32_1 = arith.constant 0 : i32
    return %c0_i32, %arg0, %c0_i32_0 : i32, i32, i32
  }
  func.func @transform_6(%arg0: i32) -> (i32, i32, i32) {
    %c0_i32 = arith.constant 0 : i32
    %c0_i32_0 = arith.constant 0 : i32
    %c0_i32_1 = arith.constant 0 : i32
    return %c0_i32, %arg0, %c0_i32_0 : i32, i32, i32
  }
  func.func @transform_7(%arg0: i32) -> (i32, i32, i32) {
    %c0_i32 = arith.constant 0 : i32
    %c0_i32_0 = arith.constant 0 : i32
    %c0_i32_1 = arith.constant 0 : i32
    return %c0_i32, %arg0, %c0_i32_0 : i32, i32, i32
  }
}

</mosaic_0001>

<llo_original>
// kernel: tpu_custom_call.1
$region0: #{tpu_custom_call.1}
  #allocation0 [shape = 'u32[]', space=smem, size = 0x4, offset = 0x4, fixed_abs, tag = 'smem constant byte address 0x4 - core index']
  #allocation1 [shape = 'u32[144,128]{1,0:T(1,128)}', space=vmem, size = 0x12000, scoped, tag = 'internal scratch']
  %s0 = inlined_call_operand.hbm [shape: f32[4,8,128], index: 0, kind: input, shape index: {}]
  %s1 = inlined_call_operand.hbm [shape: f32[4,8,128], index: 1, kind: input, shape index: {}]
  %s2 = inlined_call_operand.hbm [shape: f32[16,8,128], index: 2, kind: input, shape index: {}]
  %s3 = inlined_call_operand.hbm [shape: f32[10,8,128], index: 3, kind: input, shape index: {}]
  %s4 = inlined_call_operand.hbm [shape: f32[10,8,128], index: 4, kind: input, shape index: {}]
  %s5 = inlined_call_operand.hbm [shape: f32[4,8,128], index: 5, kind: output, shape index: {0}]
  %s6 = inlined_call_operand.hbm [shape: f32[4,8,128], index: 6, kind: output, shape index: {1}]
  %s7 = inlined_call_operand.hbm [shape: f32[16,8,128], index: 7, kind: output, shape index: {2}]
  %8 = xla_tuple %s5, %s6, %s7
  %s9 = sld [smem:[#allocation0]]
  $region66: #{tpu_custom_call.1} parent=0
    _
  %s11 = ssub.s32 1, %s9
  %s12 = scalar_select 0, %s11, %s9
  $region1: #{tpu_custom_call.1} parent=0
    #allocation2 [shape = 'u8[16384]{0}', space=vmem, size = 0x4000, scoped, tag = 'input window, operand 0, single buffered']
    #allocation3 [shape = 's32[1]{0}', space=sflag, size = 0x4, scoped, tag = 'scoped memory for tpu_custom_call.1']
    #allocation4 [shape = 's32[1]{0}', space=sflag, size = 0x4, scoped, tag = 'scoped memory for tpu_custom_call.1']
    #allocation5 [shape = 'u8[16384]{0}', space=vmem, size = 0x4000, scoped, tag = 'input window, operand 1, single buffered']
    #allocation6 [shape = 's32[1]{0}', space=sflag, size = 0x4, scoped, tag = 'scoped memory for tpu_custom_call.1']
    #allocation7 [shape = 'u8[65536]{0}', space=vmem, size = 0x10000, scoped, tag = 'input window, operand 2, single buffered']
    #allocation8 [shape = 'u8[40960]{0}', space=vmem, size = 0xa000, scoped, tag = 'input window, operand 3, single buffered']
    #allocation9 [shape = 's32[1]{0}', space=sflag, size = 0x4, scoped, tag = 'scoped memory for tpu_custom_call.1']
    #allocation10 [shape = 'u8[40960]{0}', space=vmem, size = 0xa000, scoped, tag = 'input window, operand 4, single buffered']
    #allocation11 [shape = 'u8[16384]{0}', space=vmem, size = 0x4000, scoped, tag = 'output window, operand 0, single buffered']
    #allocation12 [shape = 'u8[16384]{0}', space=vmem, size = 0x4000, scoped, tag = 'output window, operand 1, single buffered']
    #allocation13 [shape = 's32[1]{0}', space=sflag, size = 0x4, scoped, tag = 'scoped memory for tpu_custom_call.1']
    #allocation14 [shape = 'u8[65536]{0}', space=vmem, size = 0x10000, scoped, tag = 'output window, operand 2, single buffered']
    %13 = vsyncpa [#allocation3], 0
    %14 = vsyncpa [#allocation6], 0
    %15 = vsyncpa [#allocation9], 0
    %16 = vsyncpa [#allocation4], 0
    %17 = vsyncpa [#allocation13], 0
    // Predicated region
    $region2: #{tpu_custom_call.1} parent=1 // pred_check
      _
    $region3: #{tpu_custom_call.1} parent=1 // pred_check_branch
      %19 = sbr.rel (0) target = $region5
    $region4: #{tpu_custom_call.1} parent=1 // pred_region
      %s21 = ssub.s32 512, 512
      %22 = vsyncadd [#allocation3], %s21
      %s23 = sshll.u32 [#allocation2], 4
      %s24 = int_to_ptr.vmem [resolvable:$true] %s23
      %29 = dma.hbm_to_vmem [thread:$0]  %s0, 512, %s24, [#allocation3], 128, 128, 8
    $region5: #{tpu_custom_call.1} parent=1 // pred_fallthru
      _
    // Predicated region
    $region6: #{tpu_custom_call.1} parent=1 // pred_check
      _
    $region7: #{tpu_custom_call.1} parent=1 // pred_check_branch
      %31 = sbr.rel (0) target = $region9
    $region8: #{tpu_custom_call.1} parent=1 // pred_region
      %s33 = ssub.s32 512, 512
      %34 = vsyncadd [#allocation6], %s33
      %s35 = sshll.u32 [#allocation5], 4
      %s36 = int_to_ptr.vmem [resolvable:$true] %s35
      %41 = dma.hbm_to_vmem [thread:$0]  %s1, 512, %s36, [#allocation6], 128, 128, 8
    $region9: #{tpu_custom_call.1} parent=1 // pred_fallthru
      _
    // Predicated region
    $region10: #{tpu_custom_call.1} parent=1 // pred_check
      _
    $region11: #{tpu_custom_call.1} parent=1 // pred_check_branch
      %43 = sbr.rel (0) target = $region13
    $region12: #{tpu_custom_call.1} parent=1 // pred_region
      %s45 = ssub.s32 2048, 2048
      %46 = vsyncadd [#allocation6], %s45
      %s47 = sshll.u32 [#allocation7], 4
      %s48 = int_to_ptr.vmem [resolvable:$true] %s47
      %53 = dma.hbm_to_vmem [thread:$0]  %s2, 2048, %s48, [#allocation6], 128, 128, 8
    $region13: #{tpu_custom_call.1} parent=1 // pred_fallthru
      _
    // Predicated region
    $region14: #{tpu_custom_call.1} parent=1 // pred_check
      _
    $region15: #{tpu_custom_call.1} parent=1 // pred_check_branch
      %55 = sbr.rel (0) target = $region17
    $region16: #{tpu_custom_call.1} parent=1 // pred_region
      %s57 = ssub.s32 1280, 1280
      %58 = vsyncadd [#allocation9], %s57
      %s59 = sshll.u32 [#allocation8], 4
      %s60 = int_to_ptr.vmem [resolvable:$true] %s59
      %65 = dma.hbm_to_vmem [thread:$0]  %s3, 1280, %s60, [#allocation9], 128, 128, 8
    $region17: #{tpu_custom_call.1} parent=1 // pred_fallthru
      _
    // Predicated region
    $region18: #{tpu_custom_call.1} parent=1 // pred_check
      _
    $region19: #{tpu_custom_call.1} parent=1 // pred_check_branch
      %67 = sbr.rel (0) target = $region21
    $region20: #{tpu_custom_call.1} parent=1 // pred_region
      %s69 = ssub.s32 1280, 1280
      %70 = vsyncadd [#allocation9], %s69
      %s71 = sshll.u32 [#allocation10], 4
      %s72 = int_to_ptr.vmem [resolvable:$true] %s71
      %77 = dma.hbm_to_vmem [thread:$0]  %s4, 1280, %s72, [#allocation9], 128, 128, 8
    $region21: #{tpu_custom_call.1} parent=1 // pred_fallthru
      _
    // Predicated region
    $region22: #{tpu_custom_call.1} parent=1 // pred_check
      _
    $region23: #{tpu_custom_call.1} parent=1 // pred_check_branch
      %79 = sbr.rel (0) target = $region25
    $region24: #{tpu_custom_call.1} parent=1 // pred_region
      %80 = dma.done [#allocation3], 512
    $region25: #{tpu_custom_call.1} parent=1 // pred_fallthru
      _
    // Predicated region
    $region26: #{tpu_custom_call.1} parent=1 // pred_check
      _
    $region27: #{tpu_custom_call.1} parent=1 // pred_check_branch
      %82 = sbr.rel (0) target = $region29
    $region28: #{tpu_custom_call.1} parent=1 // pred_region
      %83 = dma.done [#allocation6], 512
    $region29: #{tpu_custom_call.1} parent=1 // pred_fallthru
      _
    // Predicated region
    $region30: #{tpu_custom_call.1} parent=1 // pred_check
      _
    $region31: #{tpu_custom_call.1} parent=1 // pred_check_branch
      %85 = sbr.rel (0) target = $region33
    $region32: #{tpu_custom_call.1} parent=1 // pred_region
      %86 = dma.done [#allocation6], 2048
    $region33: #{tpu_custom_call.1} parent=1 // pred_fallthru
      _
    // Predicated region
    $region34: #{tpu_custom_call.1} parent=1 // pred_check
      _
    $region35: #{tpu_custom_call.1} parent=1 // pred_check_branch
      %88 = sbr.rel (0) target = $region37
    $region36: #{tpu_custom_call.1} parent=1 // pred_region
      %89 = dma.done [#allocation9], 1280
    $region37: #{tpu_custom_call.1} parent=1 // pred_fallthru
      _
    // Predicated region
    $region38: #{tpu_custom_call.1} parent=1 // pred_check
      _
    $region39: #{tpu_custom_call.1} parent=1 // pred_check_branch
      %91 = sbr.rel (0) target = $region41
    $region40: #{tpu_custom_call.1} parent=1 // pred_region
      %92 = dma.done [#allocation9], 1280
    $region41: #{tpu_custom_call.1} parent=1 // pred_fallthru
      _
    %v93 = vld [vmem:[#allocation5] sm:$0xff]
    %s94 = scalar_lea.vmem [#allocation5], 8
    %v95 = vld [vmem:[%s94] sm:$0xff]
    %s96 = scalar_lea.vmem [#allocation5], 16
    %v97 = vld [vmem:[%s96] sm:$0xff]
    %s98 = scalar_lea.vmem [#allocation5], 24
    %v99 = vld [vmem:[%s98] sm:$0xff]
    %v100 = vld [vmem:[#allocation2] sm:$0xff]
    %s101 = scalar_lea.vmem [#allocation2], 8
    %v102 = vld [vmem:[%s101] sm:$0xff]
    %s103 = scalar_lea.vmem [#allocation2], 16
    %v104 = vld [vmem:[%s103] sm:$0xff]
    %s105 = scalar_lea.vmem [#allocation2], 24
    %v106 = vld [vmem:[%s105] sm:$0xff]
    %v107 = vld [vmem:[#allocation7] sm:$0xff]
    %s108 = scalar_lea.vmem [#allocation7], 32
    %v109 = vld [vmem:[%s108] sm:$0xff]
    %s110 = scalar_lea.vmem [#allocation7], 40
    %v111 = vld [vmem:[%s110] sm:$0xff]
    %s112 = scalar_lea.vmem [#allocation7], 64
    %v113 = vld [vmem:[%s112] sm:$0xff]
    %s114 = scalar_lea.vmem [#allocation7], 72
    %v115 = vld [vmem:[%s114] sm:$0xff]
    %s116 = scalar_lea.vmem [#allocation7], 80
    %v117 = vld [vmem:[%s116] sm:$0xff]
    %s118 = scalar_lea.vmem [#allocation7], 96
    %v119 = vld [vmem:[%s118] sm:$0xff]
    %s120 = scalar_lea.vmem [#allocation7], 104
    %v121 = vld [vmem:[%s120] sm:$0xff]
    %s122 = scalar_lea.vmem [#allocation7], 112
    %v123 = vld [vmem:[%s122] sm:$0xff]
    %s124 = scalar_lea.vmem [#allocation7], 120
    %v125 = vld [vmem:[%s124] sm:$0xff]
    %v126 = vld [vmem:[#allocation8] sm:$0xff]
    %v127 = vmul.f32 %v126, 1.442695
    %v128 = vpow.pop %v127
    %s129 = scalar_lea.vmem [#allocation8], 8
    %v130 = vld [vmem:[%s129] sm:$0xff]
    %s131 = scalar_lea.vmem [#allocation8], 16
    %v132 = vld [vmem:[%s131] sm:$0xff]
    %v133 = vmul.f32 %v132, 1.442695
    %v134 = vpow.pop %v133
    %s135 = scalar_lea.vmem [#allocation8], 24
    %v136 = vld [vmem:[%s135] sm:$0xff]
    %s137 = scalar_lea.vmem [#allocation8], 32
    %v138 = vld [vmem:[%s137] sm:$0xff]
    %s139 = scalar_lea.vmem [#allocation8], 40
    %v140 = vld [vmem:[%s139] sm:$0xff]
    %v141 = vmul.f32 %v140, 1.442695
    %v142 = vpow.pop %v141
    %s143 = scalar_lea.vmem [#allocation8], 48
    %v144 = vld [vmem:[%s143] sm:$0xff]
    %s145 = scalar_lea.vmem [#allocation8], 56
    %v146 = vld [vmem:[%s145] sm:$0xff]
    %s147 = scalar_lea.vmem [#allocation8], 64
    %v148 = vld [vmem:[%s147] sm:$0xff]
    %s149 = scalar_lea.vmem [#allocation8], 72
    %v150 = vld [vmem:[%s149] sm:$0xff]
    %v151 = vmul.f32 %v150, 1.442695
    %v152 = vpow.pop %v151
    %v153 = vmul.f32 %v128, %v128
    %v154 = vmul.f32 %v130, %v128
    %v155 = vmul.f32 %v130, %v130
    %v156 = vmul.f32 %v134, %v134
    %v157 = vadd.f32 %v155, %v156
    %v158 = vmul.f32 %v136, %v128
    %v159 = vmul.f32 %v136, %v130
    %v160 = vmul.f32 %v138, %v134
    %v161 = vadd.f32 %v159, %v160
    %v162 = vmul.f32 %v136, %v136
    %v163 = vmul.f32 %v138, %v138
    %v164 = vadd.f32 %v162, %v163
    %v165 = vmul.f32 %v142, %v142
    %v166 = vadd.f32 %v164, %v165
    %v167 = vmul.f32 %v144, %v128
    %v168 = vmul.f32 %v144, %v130
    %v169 = vmul.f32 %v146, %v134
    %v170 = vadd.f32 %v168, %v169
    %v171 = vmul.f32 %v144, %v136
    %v172 = vmul.f32 %v146, %v138
    %v173 = vadd.f32 %v171, %v172
    %v174 = vmul.f32 %v148, %v142
    %v175 = vadd.f32 %v173, %v174
    %v176 = vmul.f32 %v144, %v144
    %v177 = vmul.f32 %v146, %v146
    %v178 = vadd.f32 %v176, %v177
    %v179 = vmul.f32 %v148, %v148
    %v180 = vadd.f32 %v178, %v179
    %v181 = vmul.f32 %v152, %v152
    %v182 = vadd.f32 %v180, %v181
    %v183 = vld [vmem:[#allocation10] sm:$0xff]
    %v184 = vmul.f32 %v183, 1.442695
    %v185 = vpow.pop %v184
    %s186 = scalar_lea.vmem [#allocation10], 8
    %v187 = vld [vmem:[%s186] sm:$0xff]
    %s188 = scalar_lea.vmem [#allocation10], 16
    %v189 = vld [vmem:[%s188] sm:$0xff]
    %v190 = vmul.f32 %v189, 1.442695
    %v191 = vpow.pop %v190
    %s192 = scalar_lea.vmem [#allocation10], 24
    %v193 = vld [vmem:[%s192] sm:$0xff]
    %s194 = scalar_lea.vmem [#allocation10], 32
    %v195 = vld [vmem:[%s194] sm:$0xff]
    %s196 = scalar_lea.vmem [#allocation10], 40
    %v197 = vld [vmem:[%s196] sm:$0xff]
    %v198 = vmul.f32 %v197, 1.442695
    %v199 = vpow.pop %v198
    %s200 = scalar_lea.vmem [#allocation10], 48
    %v201 = vld [vmem:[%s200] sm:$0xff]
    %s202 = scalar_lea.vmem [#allocation10], 56
    %v203 = vld [vmem:[%s202] sm:$0xff]
    %s204 = scalar_lea.vmem [#allocation10], 64
    %v205 = vld [vmem:[%s204] sm:$0xff]
    %s206 = scalar_lea.vmem [#allocation10], 72
    %v207 = vld [vmem:[%s206] sm:$0xff]
    %v208 = vmul.f32 %v207, 1.442695
    %v209 = vpow.pop %v208
    %v210 = vmul.f32 %v185, %v185
    %v211 = vmul.f32 %v187, %v185
    %v212 = vmul.f32 %v187, %v187
    %v213 = vmul.f32 %v191, %v191
    %v214 = vadd.f32 %v212, %v213
    %v215 = vmul.f32 %v193, %v185
    %v216 = vmul.f32 %v193, %v187
    %v217 = vmul.f32 %v195, %v191
    %v218 = vadd.f32 %v216, %v217
    %v219 = vmul.f32 %v193, %v193
    %v220 = vmul.f32 %v195, %v195
    %v221 = vadd.f32 %v219, %v220
    %v222 = vmul.f32 %v199, %v199
    %v223 = vadd.f32 %v221, %v222
    %v224 = vmul.f32 %v201, %v185
    %v225 = vmul.f32 %v201, %v187
    %v226 = vmul.f32 %v203, %v191
    %v227 = vadd.f32 %v225, %v226
    %v228 = vmul.f32 %v201, %v193
    %v229 = vmul.f32 %v203, %v195
    %v230 = vadd.f32 %v228, %v229
    %v231 = vmul.f32 %v205, %v199
    %v232 = vadd.f32 %v230, %v231
    %v233 = vmul.f32 %v201, %v201
    %v234 = vmul.f32 %v203, %v203
    %v235 = vadd.f32 %v233, %v234
    %v236 = vmul.f32 %v205, %v205
    %v237 = vadd.f32 %v235, %v236
    %v238 = vmul.f32 %v209, %v209
    %v239 = vadd.f32 %v237, %v238
    %v240 = vrsqrt.pop %v107
    %v241 = vmul.f32 %v107, %v240
    %vm242 = vcmp.eq.f32.partialorder %v107, inf
    %v243 = vsel %vm242, %v107, %v241
    %vm244 = vcmp.eq.f32.partialorder %v107, 0.0
    %v245 = vand.u32 %v107, 2147483648
    %v246 = vsel %vm244, %v245, %v243
    %v247 = vrcp.pop %v246
    %v248 = vmul.f32 1.0, %v247
    %v249 = vmul.f32 %v109, %v248
    %v250 = vmul.f32 %v113, %v248
    %v251 = vmul.f32 %v119, %v248
    %v252 = vmul.f32 %v249, %v249
    %v253 = vsub.f32 %v111, %v252
    %v254 = vrsqrt.pop %v253
    %v255 = vmul.f32 %v253, %v254
    %vm256 = vcmp.eq.f32.partialorder %v253, inf
    %v257 = vsel %vm256, %v253, %v255
    %vm258 = vcmp.eq.f32.partialorder %v253, 0.0
    %v259 = vand.u32 %v253, 2147483648
    %v260 = vsel %vm258, %v259, %v257
    %v261 = vrcp.pop %v260
    %v262 = vmul.f32 1.0, %v261
    %v263 = vmul.f32 %v250, %v249
    %v264 = vsub.f32 %v115, %v263
    %v265 = vmul.f32 %v264, %v262
    %v266 = vmul.f32 %v251, %v249
    %v267 = vsub.f32 %v121, %v266
    %v268 = vmul.f32 %v267, %v262
    %v269 = vmul.f32 %v250, %v250
    %v270 = vsub.f32 %v117, %v269
    %v271 = vmul.f32 %v265, %v265
    %v272 = vsub.f32 %v270, %v271
    %v273 = vrsqrt.pop %v272
    %v274 = vmul.f32 %v272, %v273
    %vm275 = vcmp.eq.f32.partialorder %v272, inf
    %v276 = vsel %vm275, %v272, %v274
    %vm277 = vcmp.eq.f32.partialorder %v272, 0.0
    %v278 = vand.u32 %v272, 2147483648
    %v279 = vsel %vm277, %v278, %v276
    %v280 = vrcp.pop %v279
    %v281 = vmul.f32 1.0, %v280
    %v282 = vmul.f32 %v251, %v250
    %v283 = vsub.f32 %v123, %v282
    %v284 = vmul.f32 %v268, %v265
    %v285 = vsub.f32 %v283, %v284
    %v286 = vmul.f32 %v285, %v281
    %v287 = vmul.f32 %v251, %v251
    %v288 = vsub.f32 %v125, %v287
    %v289 = vmul.f32 %v268, %v268
    %v290 = vsub.f32 %v288, %v289
    %v291 = vmul.f32 %v286, %v286
    %v292 = vsub.f32 %v290, %v291
    %v293 = vrsqrt.pop %v292
    %v294 = vmul.f32 %v292, %v293
    %vm295 = vcmp.eq.f32.partialorder %v292, inf
    %v296 = vsel %vm295, %v292, %v294
    %vm297 = vcmp.eq.f32.partialorder %v292, 0.0
    %v298 = vand.u32 %v292, 2147483648
    %v299 = vsel %vm297, %v298, %v296
    %v300 = vmul.f32 %v246, 1.7320508
    %v301 = vmul.f32 %v249, 1.7320508
    %v302 = vmul.f32 %v250, 1.7320508
    %v303 = vmul.f32 %v251, 1.7320508
    %v304 = vmul.f32 %v260, 1.7320508
    %v305 = vmul.f32 %v265, 1.7320508
    %v306 = vmul.f32 %v268, 1.7320508
    %v307 = vmul.f32 %v279, 1.7320508
    %v308 = vmul.f32 %v286, 1.7320508
    %v309 = vmul.f32 %v299, 1.7320508
    %v310 = vmul.f32 %v246, -1.7320508
    %v311 = vmul.f32 %v249, -1.7320508
    %v312 = vmul.f32 %v250, -1.7320508
    %v313 = vmul.f32 %v251, -1.7320508
    %v314 = vmul.f32 %v260, -1.7320508
    %v315 = vmul.f32 %v265, -1.7320508
    %v316 = vmul.f32 %v268, -1.7320508
    %v317 = vmul.f32 %v279, -1.7320508
    %v318 = vmul.f32 %v286, -1.7320508
    %v319 = vmul.f32 %v299, -1.7320508
    %v320 = vmul.f32 %v300, 0.16666667
    %v321 = vadd.f32 %v320, 0.0
    %v322 = vadd.f32 %v321, 0.0
    %v323 = vadd.f32 %v322, 0.0
    %v324 = vmul.f32 %v310, 0.16666667
    %v325 = vadd.f32 %v323, %v324
    %v326 = vadd.f32 %v93, %v325
    %v327 = vmul.f32 %v301, 0.16666667
    %v328 = vmul.f32 %v304, 0.16666667
    %v329 = vadd.f32 %v327, %v328
    %v330 = vadd.f32 %v329, 0.0
    %v331 = vadd.f32 %v330, 0.0
    %v332 = vmul.f32 %v311, 0.16666667
    %v333 = vadd.f32 %v331, %v332
    %v334 = vmul.f32 %v314, 0.16666667
    %v335 = vadd.f32 %v333, %v334
    %v336 = vadd.f32 %v95, %v335
    %v337 = vmul.f32 %v302, 0.16666667
    %v338 = vmul.f32 %v305, 0.16666667
    %v339 = vadd.f32 %v337, %v338
    %v340 = vmul.f32 %v307, 0.16666667
    %v341 = vadd.f32 %v339, %v340
    %v342 = vadd.f32 %v341, 0.0
    %v343 = vmul.f32 %v312, 0.16666667
    %v344 = vadd.f32 %v342, %v343
    %v345 = vmul.f32 %v315, 0.16666667
    %v346 = vadd.f32 %v344, %v345
    %v347 = vmul.f32 %v317, 0.16666667
    %v348 = vadd.f32 %v346, %v347
    %v349 = vadd.f32 %v97, %v348
    %v350 = vmul.f32 %v303, 0.16666667
    %v351 = vmul.f32 %v306, 0.16666667
    %v352 = vadd.f32 %v350, %v351
    %v353 = vmul.f32 %v308, 0.16666667
    %v354 = vadd.f32 %v352, %v353
    %v355 = vmul.f32 %v309, 0.16666667
    %v356 = vadd.f32 %v354, %v355
    %v357 = vmul.f32 %v313, 0.16666667
    %v358 = vadd.f32 %v356, %v357
    %v359 = vmul.f32 %v316, 0.16666667
    %v360 = vadd.f32 %v358, %v359
    %v361 = vmul.f32 %v318, 0.16666667
    %v362 = vadd.f32 %v360, %v361
    %v363 = vmul.f32 %v319, 0.16666667
    %v364 = vadd.f32 %v362, %v363
    %v365 = vadd.f32 %v99, %v364
    %v366 = vsub.f32 %v93, %v326
    %v367 = vsub.f32 %v95, %v336
    %v368 = vsub.f32 %v97, %v349
    %v369 = vsub.f32 %v99, %v365
    %v370 = vadd.f32 %v366, 0.0
    %v371 = vadd.f32 %v367, 0.0
    %v372 = vadd.f32 %v368, 0.0
    %v373 = vadd.f32 %v369, 0.0
    %v374 = vadd.f32 %v300, %v366
    %v375 = vadd.f32 %v301, %v367
    %v376 = vadd.f32 %v302, %v368
    %v377 = vadd.f32 %v303, %v369
    %v378 = vadd.f32 %v304, %v367
    %v379 = vadd.f32 %v305, %v368
    %v380 = vadd.f32 %v306, %v369
    %v381 = vadd.f32 %v307, %v368
    %v382 = vadd.f32 %v308, %v369
    %v383 = vadd.f32 %v309, %v369
    %v384 = vadd.f32 %v310, %v366
    %v385 = vadd.f32 %v311, %v367
    %v386 = vadd.f32 %v312, %v368
    %v387 = vadd.f32 %v313, %v369
    %v388 = vadd.f32 %v314, %v367
    %v389 = vadd.f32 %v315, %v368
    %v390 = vadd.f32 %v316, %v369
    %v391 = vadd.f32 %v317, %v368
    %v392 = vadd.f32 %v318, %v369
    %v393 = vadd.f32 %v319, %v369
    %v394 = vmul.f32 %v370, %v370
    %v395 = vmul.f32 %v394, -0.33333334
    %v396 = vmul.f32 %v374, %v374
    %v397 = vmul.f32 %v396, 0.16666667
    %v398 = vadd.f32 %v395, %v397
    %v399 = vmul.f32 %v394, 0.16666667
    %v400 = vadd.f32 %v398, %v399
    %v401 = vadd.f32 %v400, %v399
    %v402 = vadd.f32 %v401, %v399
    %v403 = vmul.f32 %v384, %v384
    %v404 = vmul.f32 %v403, 0.16666667
    %v405 = vadd.f32 %v402, %v404
    %v406 = vmul.f32 %v366, %v366
    %v407 = vmul.f32 %v406, 0.16666667
    %v408 = vadd.f32 %v405, %v407
    %v409 = vadd.f32 %v408, %v407
    %v410 = vadd.f32 %v409, %v407
    %v411 = vadd.f32 %v410, %v153
    %v412 = vmul.f32 %v371, %v370
    %v413 = vmul.f32 %v412, -0.33333334
    %v414 = vmul.f32 %v375, %v374
    %v415 = vmul.f32 %v414, 0.16666667
    %v416 = vadd.f32 %v413, %v415
    %v417 = vmul.f32 %v378, %v370
    %v418 = vmul.f32 %v417, 0.16666667
    %v419 = vadd.f32 %v416, %v418
    %v420 = vmul.f32 %v412, 0.16666667
    %v421 = vadd.f32 %v419, %v420
    %v422 = vadd.f32 %v421, %v420
    %v423 = vmul.f32 %v385, %v384
    %v424 = vmul.f32 %v423, 0.16666667
    %v425 = vadd.f32 %v422, %v424
    %v426 = vmul.f32 %v388, %v366
    %v427 = vmul.f32 %v426, 0.16666667
    %v428 = vadd.f32 %v425, %v427
    %v429 = vmul.f32 %v367, %v366
    %v430 = vmul.f32 %v429, 0.16666667
    %v431 = vadd.f32 %v428, %v430
    %v432 = vadd.f32 %v431, %v430
    %v433 = vadd.f32 %v432, %v154
    %v434 = vmul.f32 %v371, %v371
    %v435 = vmul.f32 %v434, -0.33333334
    %v436 = vmul.f32 %v375, %v375
    %v437 = vmul.f32 %v436, 0.16666667
    %v438 = vadd.f32 %v435, %v437
    %v439 = vmul.f32 %v378, %v378
    %v440 = vmul.f32 %v439, 0.16666667
    %v441 = vadd.f32 %v438, %v440
    %v442 = vmul.f32 %v434, 0.16666667
    %v443 = vadd.f32 %v441, %v442
    %v444 = vadd.f32 %v443, %v442
    %v445 = vmul.f32 %v385, %v385
    %v446 = vmul.f32 %v445, 0.16666667
    %v447 = vadd.f32 %v444, %v446
    %v448 = vmul.f32 %v388, %v388
    %v449 = vmul.f32 %v448, 0.16666667
    %v450 = vadd.f32 %v447, %v449
    %v451 = vmul.f32 %v367, %v367
    %v452 = vmul.f32 %v451, 0.16666667
    %v453 = vadd.f32 %v450, %v452
    %v454 = vadd.f32 %v453, %v452
    %v455 = vadd.f32 %v454, %v157
    %v456 = vmul.f32 %v372, %v370
    %v457 = vmul.f32 %v456, -0.33333334
    %v458 = vmul.f32 %v376, %v374
    %v459 = vmul.f32 %v458, 0.16666667
    %v460 = vadd.f32 %v457, %v459
    %v461 = vmul.f32 %v379, %v370
    %v462 = vmul.f32 %v461, 0.16666667
    %v463 = vadd.f32 %v460, %v462
    %v464 = vmul.f32 %v381, %v370
    %v465 = vmul.f32 %v464, 0.16666667
    %v466 = vadd.f32 %v463, %v465
    %v467 = vmul.f32 %v456, 0.16666667
    %v468 = vadd.f32 %v466, %v467
    %v469 = vmul.f32 %v386, %v384
    %v470 = vmul.f32 %v469, 0.16666667
    %v471 = vadd.f32 %v468, %v470
    %v472 = vmul.f32 %v389, %v366
    %v473 = vmul.f32 %v472, 0.16666667
    %v474 = vadd.f32 %v471, %v473
    %v475 = vmul.f32 %v391, %v366
    %v476 = vmul.f32 %v475, 0.16666667
    %v477 = vadd.f32 %v474, %v476
    %v478 = vmul.f32 %v368, %v366
    %v479 = vmul.f32 %v478, 0.16666667
    %v480 = vadd.f32 %v477, %v479
    %v481 = vadd.f32 %v480, %v158
    %v482 = vmul.f32 %v372, %v371
    %v483 = vmul.f32 %v482, -0.33333334
    %v484 = vmul.f32 %v376, %v375
    %v485 = vmul.f32 %v484, 0.16666667
    %v486 = vadd.f32 %v483, %v485
    %v487 = vmul.f32 %v379, %v378
    %v488 = vmul.f32 %v487, 0.16666667
    %v489 = vadd.f32 %v486, %v488
    %v490 = vmul.f32 %v381, %v371
    %v491 = vmul.f32 %v490, 0.16666667
    %v492 = vadd.f32 %v489, %v491
    %v493 = vmul.f32 %v482, 0.16666667
    %v494 = vadd.f32 %v492, %v493
    %v495 = vmul.f32 %v386, %v385
    %v496 = vmul.f32 %v495, 0.16666667
    %v497 = vadd.f32 %v494, %v496
    %v498 = vmul.f32 %v389, %v388
    %v499 = vmul.f32 %v498, 0.16666667
    %v500 = vadd.f32 %v497, %v499
    %v501 = vmul.f32 %v391, %v367
    %v502 = vmul.f32 %v501, 0.16666667
    %v503 = vadd.f32 %v500, %v502
    %v504 = vmul.f32 %v368, %v367
    %v505 = vmul.f32 %v504, 0.16666667
    %v506 = vadd.f32 %v503, %v505
    %v507 = vadd.f32 %v506, %v161
    %v508 = vmul.f32 %v372, %v372
    %v509 = vmul.f32 %v508, -0.33333334
    %v510 = vmul.f32 %v376, %v376
    %v511 = vmul.f32 %v510, 0.16666667
    %v512 = vadd.f32 %v509, %v511
    %v513 = vmul.f32 %v379, %v379
    %v514 = vmul.f32 %v513, 0.16666667
    %v515 = vadd.f32 %v512, %v514
    %v516 = vmul.f32 %v381, %v381
    %v517 = vmul.f32 %v516, 0.16666667
    %v518 = vadd.f32 %v515, %v517
    %v519 = vmul.f32 %v508, 0.16666667
    %v520 = vadd.f32 %v518, %v519
    %v521 = vmul.f32 %v386, %v386
    %v522 = vmul.f32 %v521, 0.16666667
    %v523 = vadd.f32 %v520, %v522
    %v524 = vmul.f32 %v389, %v389
    %v525 = vmul.f32 %v524, 0.16666667
    %v526 = vadd.f32 %v523, %v525
    %v527 = vmul.f32 %v391, %v391
    %v528 = vmul.f32 %v527, 0.16666667
    %v529 = vadd.f32 %v526, %v528
    %v530 = vmul.f32 %v368, %v368
    %v531 = vmul.f32 %v530, 0.16666667
    %v532 = vadd.f32 %v529, %v531
    %v533 = vadd.f32 %v532, %v166
    %v534 = vmul.f32 %v373, %v370
    %v535 = vmul.f32 %v534, -0.33333334
    %v536 = vmul.f32 %v377, %v374
    %v537 = vmul.f32 %v536, 0.16666667
    %v538 = vadd.f32 %v535, %v537
    %v539 = vmul.f32 %v380, %v370
    %v540 = vmul.f32 %v539, 0.16666667
    %v541 = vadd.f32 %v538, %v540
    %v542 = vmul.f32 %v382, %v370
    %v543 = vmul.f32 %v542, 0.16666667
    %v544 = vadd.f32 %v541, %v543
    %v545 = vmul.f32 %v383, %v370
    %v546 = vmul.f32 %v545, 0.16666667
    %v547 = vadd.f32 %v544, %v546
    %v548 = vmul.f32 %v387, %v384
    %v549 = vmul.f32 %v548, 0.16666667
    %v550 = vadd.f32 %v547, %v549
    %v551 = vmul.f32 %v390, %v366
    %v552 = vmul.f32 %v551, 0.16666667
    %v553 = vadd.f32 %v550, %v552
    %v554 = vmul.f32 %v392, %v366
    %v555 = vmul.f32 %v554, 0.16666667
    %v556 = vadd.f32 %v553, %v555
    %v557 = vmul.f32 %v393, %v366
    %v558 = vmul.f32 %v557, 0.16666667
    %v559 = vadd.f32 %v556, %v558
    %v560 = vadd.f32 %v559, %v167
    %v561 = vmul.f32 %v373, %v371
    %v562 = vmul.f32 %v561, -0.33333334
    %v563 = vmul.f32 %v377, %v375
    %v564 = vmul.f32 %v563, 0.16666667
    %v565 = vadd.f32 %v562, %v564
    %v566 = vmul.f32 %v380, %v378
    %v567 = vmul.f32 %v566, 0.16666667
    %v568 = vadd.f32 %v565, %v567
    %v569 = vmul.f32 %v382, %v371
    %v570 = vmul.f32 %v569, 0.16666667
    %v571 = vadd.f32 %v568, %v570
    %v572 = vmul.f32 %v383, %v371
    %v573 = vmul.f32 %v572, 0.16666667
    %v574 = vadd.f32 %v571, %v573
    %v575 = vmul.f32 %v387, %v385
    %v576 = vmul.f32 %v575, 0.16666667
    %v577 = vadd.f32 %v574, %v576
    %v578 = vmul.f32 %v390, %v388
    %v579 = vmul.f32 %v578, 0.16666667
    %v580 = vadd.f32 %v577, %v579
    %v581 = vmul.f32 %v392, %v367
    %v582 = vmul.f32 %v581, 0.16666667
    %v583 = vadd.f32 %v580, %v582
    %v584 = vmul.f32 %v393, %v367
    %v585 = vmul.f32 %v584, 0.16666667
    %v586 = vadd.f32 %v583, %v585
    %v587 = vadd.f32 %v586, %v170
    %v588 = vmul.f32 %v373, %v372
    %v589 = vmul.f32 %v588, -0.33333334
    %v590 = vmul.f32 %v377, %v376
    %v591 = vmul.f32 %v590, 0.16666667
    %v592 = vadd.f32 %v589, %v591
    %v593 = vmul.f32 %v380, %v379
    %v594 = vmul.f32 %v593, 0.16666667
    %v595 = vadd.f32 %v592, %v594
    %v596 = vmul.f32 %v382, %v381
    %v597 = vmul.f32 %v596, 0.16666667
    %v598 = vadd.f32 %v595, %v597
    %v599 = vmul.f32 %v383, %v372
    %v600 = vmul.f32 %v599, 0.16666667
    %v601 = vadd.f32 %v598, %v600
    %v602 = vmul.f32 %v387, %v386
    %v603 = vmul.f32 %v602, 0.16666667
    %v604 = vadd.f32 %v601, %v603
    %v605 = vmul.f32 %v390, %v389
    %v606 = vmul.f32 %v605, 0.16666667
    %v607 = vadd.f32 %v604, %v606
    %v608 = vmul.f32 %v392, %v391
    %v609 = vmul.f32 %v608, 0.16666667
    %v610 = vadd.f32 %v607, %v609
    %v611 = vmul.f32 %v393, %v368
    %v612 = vmul.f32 %v611, 0.16666667
    %v613 = vadd.f32 %v610, %v612
    %v614 = vadd.f32 %v613, %v175
    %v615 = vmul.f32 %v373, %v373
    %v616 = vmul.f32 %v615, -0.33333334
    %v617 = vmul.f32 %v377, %v377
    %v618 = vmul.f32 %v617, 0.16666667
    %v619 = vadd.f32 %v616, %v618
    %v620 = vmul.f32 %v380, %v380
    %v621 = vmul.f32 %v620, 0.16666667
    %v622 = vadd.f32 %v619, %v621
    %v623 = vmul.f32 %v382, %v382
    %v624 = vmul.f32 %v623, 0.16666667
    %v625 = vadd.f32 %v622, %v624
    %v626 = vmul.f32 %v383, %v383
    %v627 = vmul.f32 %v626, 0.16666667
    %v628 = vadd.f32 %v625, %v627
    %v629 = vmul.f32 %v387, %v387
    %v630 = vmul.f32 %v629, 0.16666667
    %v631 = vadd.f32 %v628, %v630
    %v632 = vmul.f32 %v390, %v390
    %v633 = vmul.f32 %v632, 0.16666667
    %v634 = vadd.f32 %v631, %v633
    %v635 = vmul.f32 %v392, %v392
    %v636 = vmul.f32 %v635, 0.16666667
    %v637 = vadd.f32 %v634, %v636
    %v638 = vmul.f32 %v393, %v393
    %v639 = vmul.f32 %v638, 0.16666667
    %v640 = vadd.f32 %v637, %v639
    %v641 = vadd.f32 %v640, %v182
    %v642 = vadd.f32 %v411, %v210
    %v643 = vadd.f32 %v433, %v211
    %v644 = vadd.f32 %v481, %v215
    %v645 = vadd.f32 %v560, %v224
    %v646 = vadd.f32 %v455, %v214
    %v647 = vadd.f32 %v507, %v218
    %v648 = vadd.f32 %v587, %v227
    %v649 = vadd.f32 %v533, %v223
    %v650 = vadd.f32 %v614, %v232
    %v651 = vadd.f32 %v641, %v239
    %v652 = vrsqrt.pop %v642
    %v653 = vmul.f32 %v642, %v652
    %vm654 = vcmp.eq.f32.partialorder %v642, inf
    %v655 = vsel %vm654, %v642, %v653
    %vm656 = vcmp.eq.f32.partialorder %v642, 0.0
    %v657 = vand.u32 %v642, 2147483648
    %v658 = vsel %vm656, %v657, %v655
    %v659 = vrcp.pop %v658
    %v660 = vmul.f32 1.0, %v659
    %v661 = vmul.f32 %v643, %v660
    %v662 = vmul.f32 %v644, %v660
    %v663 = vmul.f32 %v645, %v660
    %v664 = vmul.f32 %v661, %v661
    %v665 = vsub.f32 %v646, %v664
    %v666 = vrsqrt.pop %v665
    %v667 = vmul.f32 %v665, %v666
    %vm668 = vcmp.eq.f32.partialorder %v665, inf
    %v669 = vsel %vm668, %v665, %v667
    %vm670 = vcmp.eq.f32.partialorder %v665, 0.0
    %v671 = vand.u32 %v665, 2147483648
    %v672 = vsel %vm670, %v671, %v669
    %v673 = vrcp.pop %v672
    %v674 = vmul.f32 1.0, %v673
    %v675 = vmul.f32 %v662, %v661
    %v676 = vsub.f32 %v647, %v675
    %v677 = vmul.f32 %v676, %v674
    %v678 = vmul.f32 %v663, %v661
    %v679 = vsub.f32 %v648, %v678
    %v680 = vmul.f32 %v679, %v674
    %v681 = vmul.f32 %v662, %v662
    %v682 = vsub.f32 %v649, %v681
    %v683 = vmul.f32 %v677, %v677
    %v684 = vsub.f32 %v682, %v683
    %v685 = vrsqrt.pop %v684
    %v686 = vmul.f32 %v684, %v685
    %vm687 = vcmp.eq.f32.partialorder %v684, inf
    %v688 = vsel %vm687, %v684, %v686
    %vm689 = vcmp.eq.f32.partialorder %v684, 0.0
    %v690 = vand.u32 %v684, 2147483648
    %v691 = vsel %vm689, %v690, %v688
    %v692 = vrcp.pop %v691
    %v693 = vmul.f32 1.0, %v692
    %v694 = vmul.f32 %v663, %v662
    %v695 = vsub.f32 %v650, %v694
    %v696 = vmul.f32 %v680, %v677
    %v697 = vsub.f32 %v695, %v696
    %v698 = vmul.f32 %v697, %v693
    %v699 = vmul.f32 %v663, %v663
    %v700 = vsub.f32 %v651, %v699
    %v701 = vmul.f32 %v680, %v680
    %v702 = vsub.f32 %v700, %v701
    %v703 = vmul.f32 %v698, %v698
    %v704 = vsub.f32 %v702, %v703
    %v705 = vrsqrt.pop %v704
    %v706 = vmul.f32 %v704, %v705
    %vm707 = vcmp.eq.f32.partialorder %v704, inf
    %v708 = vsel %vm707, %v704, %v706
    %vm709 = vcmp.eq.f32.partialorder %v704, 0.0
    %v710 = vand.u32 %v704, 2147483648
    %v711 = vsel %vm709, %v710, %v708
    %v712 = vrcp.pop %v711
    %v713 = vmul.f32 1.0, %v712
    %v714 = vmul.f32 %v661, %v660
    %v715 = vsub.f32 0.0, %v714
    %v716 = vmul.f32 %v715, %v674
    %v717 = vmul.f32 %v662, %v660
    %v718 = vmul.f32 %v677, %v716
    %v719 = vadd.f32 %v717, %v718
    %v720 = vsub.f32 0.0, %v719
    %v721 = vmul.f32 %v720, %v693
    %v722 = vmul.f32 %v677, %v674
    %v723 = vsub.f32 0.0, %v722
    %v724 = vmul.f32 %v723, %v693
    %v725 = vmul.f32 %v663, %v660
    %v726 = vmul.f32 %v680, %v716
    %v727 = vadd.f32 %v725, %v726
    %v728 = vmul.f32 %v698, %v721
    %v729 = vadd.f32 %v727, %v728
    %v730 = vsub.f32 0.0, %v729
    %v731 = vmul.f32 %v730, %v713
    %v732 = vmul.f32 %v680, %v674
    %v733 = vmul.f32 %v698, %v724
    %v734 = vadd.f32 %v732, %v733
    %v735 = vsub.f32 0.0, %v734
    %v736 = vmul.f32 %v735, %v713
    %v737 = vmul.f32 %v698, %v693
    %v738 = vsub.f32 0.0, %v737
    %v739 = vmul.f32 %v738, %v713
    %v740 = vmul.f32 %v660, %v660
    %v741 = vmul.f32 %v716, %v716
    %v742 = vadd.f32 %v740, %v741
    %v743 = vmul.f32 %v721, %v721
    %v744 = vadd.f32 %v742, %v743
    %v745 = vmul.f32 %v731, %v731
    %v746 = vadd.f32 %v744, %v745
    %v747 = vmul.f32 %v674, %v716
    %v748 = vmul.f32 %v724, %v721
    %v749 = vadd.f32 %v747, %v748
    %v750 = vmul.f32 %v736, %v731
    %v751 = vadd.f32 %v749, %v750
    %v752 = vmul.f32 %v674, %v674
    %v753 = vmul.f32 %v724, %v724
    %v754 = vadd.f32 %v752, %v753
    %v755 = vmul.f32 %v736, %v736
    %v756 = vadd.f32 %v754, %v755
    %v757 = vmul.f32 %v693, %v721
    %v758 = vmul.f32 %v739, %v731
    %v759 = vadd.f32 %v757, %v758
    %v760 = vmul.f32 %v693, %v724
    %v761 = vmul.f32 %v739, %v736
    %v762 = vadd.f32 %v760, %v761
    %v763 = vmul.f32 %v693, %v693
    %v764 = vmul.f32 %v739, %v739
    %v765 = vadd.f32 %v763, %v764
    %v766 = vmul.f32 %v713, %v731
    %v767 = vmul.f32 %v713, %v736
    %v768 = vmul.f32 %v713, %v739
    %v769 = vmul.f32 %v713, %v713
    %v770 = vmul.f32 %v411, %v746
    %v771 = vmul.f32 %v433, %v751
    %v772 = vadd.f32 %v770, %v771
    %v773 = vmul.f32 %v481, %v759
    %v774 = vadd.f32 %v772, %v773
    %v775 = vmul.f32 %v560, %v766
    %v776 = vadd.f32 %v774, %v775
    %v777 = vmul.f32 %v411, %v751
    %v778 = vmul.f32 %v433, %v756
    %v779 = vadd.f32 %v777, %v778
    %v780 = vmul.f32 %v481, %v762
    %v781 = vadd.f32 %v779, %v780
    %v782 = vmul.f32 %v560, %v767
    %v783 = vadd.f32 %v781, %v782
    %v784 = vmul.f32 %v411, %v759
    %v785 = vmul.f32 %v433, %v762
    %v786 = vadd.f32 %v784, %v785
    %v787 = vmul.f32 %v481, %v765
    %v788 = vadd.f32 %v786, %v787
    %v789 = vmul.f32 %v560, %v768
    %v790 = vadd.f32 %v788, %v789
    %v791 = vmul.f32 %v411, %v766
    %v792 = vmul.f32 %v433, %v767
    %v793 = vadd.f32 %v791, %v792
    %v794 = vmul.f32 %v481, %v768
    %v795 = vadd.f32 %v793, %v794
    %v796 = vmul.f32 %v560, %v769
    %v797 = vadd.f32 %v795, %v796
    %v798 = vmul.f32 %v433, %v746
    %v799 = vmul.f32 %v455, %v751
    %v800 = vadd.f32 %v798, %v799
    %v801 = vmul.f32 %v507, %v759
    %v802 = vadd.f32 %v800, %v801
    %v803 = vmul.f32 %v587, %v766
    %v804 = vadd.f32 %v802, %v803
    %v805 = vmul.f32 %v455, %v756
    %v806 = vadd.f32 %v771, %v805
    %v807 = vmul.f32 %v507, %v762
    %v808 = vadd.f32 %v806, %v807
    %v809 = vmul.f32 %v587, %v767
    %v810 = vadd.f32 %v808, %v809
    %v811 = vmul.f32 %v433, %v759
    %v812 = vmul.f32 %v455, %v762
    %v813 = vadd.f32 %v811, %v812
    %v814 = vmul.f32 %v507, %v765
    %v815 = vadd.f32 %v813, %v814
    %v816 = vmul.f32 %v587, %v768
    %v817 = vadd.f32 %v815, %v816
    %v818 = vmul.f32 %v433, %v766
    %v819 = vmul.f32 %v455, %v767
    %v820 = vadd.f32 %v818, %v819
    %v821 = vmul.f32 %v507, %v768
    %v822 = vadd.f32 %v820, %v821
    %v823 = vmul.f32 %v587, %v769
    %v824 = vadd.f32 %v822, %v823
    %v825 = vmul.f32 %v481, %v746
    %v826 = vmul.f32 %v507, %v751
    %v827 = vadd.f32 %v825, %v826
    %v828 = vmul.f32 %v533, %v759
    %v829 = vadd.f32 %v827, %v828
    %v830 = vmul.f32 %v614, %v766
    %v831 = vadd.f32 %v829, %v830
    %v832 = vmul.f32 %v481, %v751
    %v833 = vmul.f32 %v507, %v756
    %v834 = vadd.f32 %v832, %v833
    %v835 = vmul.f32 %v533, %v762
    %v836 = vadd.f32 %v834, %v835
    %v837 = vmul.f32 %v614, %v767
    %v838 = vadd.f32 %v836, %v837
    %v839 = vadd.f32 %v773, %v807
    %v840 = vmul.f32 %v533, %v765
    %v841 = vadd.f32 %v839, %v840
    %v842 = vmul.f32 %v614, %v768
    %v843 = vadd.f32 %v841, %v842
    %v844 = vmul.f32 %v481, %v766
    %v845 = vmul.f32 %v507, %v767
    %v846 = vadd.f32 %v844, %v845
    %v847 = vmul.f32 %v533, %v768
    %v848 = vadd.f32 %v846, %v847
    %v849 = vmul.f32 %v614, %v769
    %v850 = vadd.f32 %v848, %v849
    %v851 = vmul.f32 %v560, %v746
    %v852 = vmul.f32 %v587, %v751
    %v853 = vadd.f32 %v851, %v852
    %v854 = vmul.f32 %v614, %v759
    %v855 = vadd.f32 %v853, %v854
    %v856 = vmul.f32 %v641, %v766
    %v857 = vadd.f32 %v855, %v856
    %v858 = vmul.f32 %v560, %v751
    %v859 = vmul.f32 %v587, %v756
    %v860 = vadd.f32 %v858, %v859
    %v861 = vmul.f32 %v614, %v762
    %v862 = vadd.f32 %v860, %v861
    %v863 = vmul.f32 %v641, %v767
    %v864 = vadd.f32 %v862, %v863
    %v865 = vmul.f32 %v560, %v759
    %v866 = vmul.f32 %v587, %v762
    %v867 = vadd.f32 %v865, %v866
    %v868 = vmul.f32 %v614, %v765
    %v869 = vadd.f32 %v867, %v868
    %v870 = vmul.f32 %v641, %v768
    %v871 = vadd.f32 %v869, %v870
    %v872 = vadd.f32 %v775, %v809
    %v873 = vadd.f32 %v872, %v842
    %v874 = vmul.f32 %v641, %v769
    %v875 = vadd.f32 %v873, %v874
    %v876 = vsub.f32 %v100, %v326
    %v877 = vsub.f32 %v102, %v336
    %v878 = vsub.f32 %v104, %v349
    %v879 = vsub.f32 %v106, %v365
    %v880 = vmul.f32 %v776, %v876
    %v881 = vmul.f32 %v783, %v877
    %v882 = vadd.f32 %v880, %v881
    %v883 = vmul.f32 %v790, %v878
    %v884 = vadd.f32 %v882, %v883
    %v885 = vmul.f32 %v797, %v879
    %v886 = vadd.f32 %v884, %v885
    %v887 = vadd.f32 %v326, %v886
    %888 = vst [vmem:[#allocation12] sm:$0xff] %v887
    %v889 = vmul.f32 %v804, %v876
    %v890 = vmul.f32 %v810, %v877
    %v891 = vadd.f32 %v889, %v890
    %v892 = vmul.f32 %v817, %v878
    %v893 = vadd.f32 %v891, %v892
    %v894 = vmul.f32 %v824, %v879
    %v895 = vadd.f32 %v893, %v894
    %v896 = vadd.f32 %v336, %v895
    %s897 = scalar_lea.vmem [#allocation12], 8
    %898 = vst [vmem:[%s897] sm:$0xff] %v896
    %v899 = vmul.f32 %v831, %v876
    %v900 = vmul.f32 %v838, %v877
    %v901 = vadd.f32 %v899, %v900
    %v902 = vmul.f32 %v843, %v878
    %v903 = vadd.f32 %v901, %v902
    %v904 = vmul.f32 %v850, %v879
    %v905 = vadd.f32 %v903, %v904
    %v906 = vadd.f32 %v349, %v905
    %s907 = scalar_lea.vmem [#allocation12], 16
    %908 = vst [vmem:[%s907] sm:$0xff] %v906
    %v909 = vmul.f32 %v857, %v876
    %v910 = vmul.f32 %v864, %v877
    %v911 = vadd.f32 %v909, %v910
    %v912 = vmul.f32 %v871, %v878
    %v913 = vadd.f32 %v911, %v912
    %v914 = vmul.f32 %v875, %v879
    %v915 = vadd.f32 %v913, %v914
    %v916 = vadd.f32 %v365, %v915
    %s917 = scalar_lea.vmem [#allocation12], 24
    %918 = vst [vmem:[%s917] sm:$0xff] %v916
    %v919 = vmul.f32 %v642, %v776
    %v920 = vmul.f32 %v643, %v783
    %v921 = vadd.f32 %v919, %v920
    %v922 = vmul.f32 %v644, %v790
    %v923 = vadd.f32 %v921, %v922
    %v924 = vmul.f32 %v645, %v797
    %v925 = vadd.f32 %v923, %v924
    %v926 = vmul.f32 %v642, %v804
    %v927 = vmul.f32 %v643, %v810
    %v928 = vadd.f32 %v926, %v927
    %v929 = vmul.f32 %v644, %v817
    %v930 = vadd.f32 %v928, %v929
    %v931 = vmul.f32 %v645, %v824
    %v932 = vadd.f32 %v930, %v931
    %v933 = vmul.f32 %v642, %v831
    %v934 = vmul.f32 %v643, %v838
    %v935 = vadd.f32 %v933, %v934
    %v936 = vmul.f32 %v644, %v843
    %v937 = vadd.f32 %v935, %v936
    %v938 = vmul.f32 %v645, %v850
    %v939 = vadd.f32 %v937, %v938
    %v940 = vmul.f32 %v642, %v857
    %v941 = vmul.f32 %v643, %v864
    %v942 = vadd.f32 %v940, %v941
    %v943 = vmul.f32 %v644, %v871
    %v944 = vadd.f32 %v942, %v943
    %v945 = vmul.f32 %v645, %v875
    %v946 = vadd.f32 %v944, %v945
    %v947 = vmul.f32 %v643, %v776
    %v948 = vmul.f32 %v646, %v783
    %v949 = vadd.f32 %v947, %v948
    %v950 = vmul.f32 %v647, %v790
    %v951 = vadd.f32 %v949, %v950
    %v952 = vmul.f32 %v648, %v797
    %v953 = vadd.f32 %v951, %v952
    %v954 = vmul.f32 %v643, %v804
    %v955 = vmul.f32 %v646, %v810
    %v956 = vadd.f32 %v954, %v955
    %v957 = vmul.f32 %v647, %v817
    %v958 = vadd.f32 %v956, %v957
    %v959 = vmul.f32 %v648, %v824
    %v960 = vadd.f32 %v958, %v959
    %v961 = vmul.f32 %v643, %v831
    %v962 = vmul.f32 %v646, %v838
    %v963 = vadd.f32 %v961, %v962
    %v964 = vmul.f32 %v647, %v843
    %v965 = vadd.f32 %v963, %v964
    %v966 = vmul.f32 %v648, %v850
    %v967 = vadd.f32 %v965, %v966
    %v968 = vmul.f32 %v643, %v857
    %v969 = vmul.f32 %v646, %v864
    %v970 = vadd.f32 %v968, %v969
    %v971 = vmul.f32 %v647, %v871
    %v972 = vadd.f32 %v970, %v971
    %v973 = vmul.f32 %v648, %v875
    %v974 = vadd.f32 %v972, %v973
    %v975 = vmul.f32 %v644, %v776
    %v976 = vmul.f32 %v647, %v783
    %v977 = vadd.f32 %v975, %v976
    %v978 = vmul.f32 %v649, %v790
    %v979 = vadd.f32 %v977, %v978
    %v980 = vmul.f32 %v650, %v797
    %v981 = vadd.f32 %v979, %v980
    %v982 = vmul.f32 %v644, %v804
    %v983 = vmul.f32 %v647, %v810
    %v984 = vadd.f32 %v982, %v983
    %v985 = vmul.f32 %v649, %v817
    %v986 = vadd.f32 %v984, %v985
    %v987 = vmul.f32 %v650, %v824
    %v988 = vadd.f32 %v986, %v987
    %v989 = vmul.f32 %v644, %v831
    %v990 = vmul.f32 %v647, %v838
    %v991 = vadd.f32 %v989, %v990
    %v992 = vmul.f32 %v649, %v843
    %v993 = vadd.f32 %v991, %v992
    %v994 = vmul.f32 %v650, %v850
    %v995 = vadd.f32 %v993, %v994
    %v996 = vmul.f32 %v644, %v857
    %v997 = vmul.f32 %v647, %v864
    %v998 = vadd.f32 %v996, %v997
    %v999 = vmul.f32 %v649, %v871
    %v1000 = vadd.f32 %v998, %v999
    %v1001 = vmul.f32 %v650, %v875
    %v1002 = vadd.f32 %v1000, %v1001
    %v1003 = vmul.f32 %v645, %v776
    %v1004 = vmul.f32 %v648, %v783
    %v1005 = vadd.f32 %v1003, %v1004
    %v1006 = vmul.f32 %v650, %v790
    %v1007 = vadd.f32 %v1005, %v1006
    %v1008 = vmul.f32 %v651, %v797
    %v1009 = vadd.f32 %v1007, %v1008
    %v1010 = vmul.f32 %v645, %v804
    %v1011 = vmul.f32 %v648, %v810
    %v1012 = vadd.f32 %v1010, %v1011
    %v1013 = vmul.f32 %v650, %v817
    %v1014 = vadd.f32 %v1012, %v1013
    %v1015 = vmul.f32 %v651, %v824
    %v1016 = vadd.f32 %v1014, %v1015
    %v1017 = vmul.f32 %v645, %v831
    %v1018 = vmul.f32 %v648, %v838
    %v1019 = vadd.f32 %v1017, %v1018
    %v1020 = vmul.f32 %v650, %v843
    %v1021 = vadd.f32 %v1019, %v1020
    %v1022 = vmul.f32 %v651, %v850
    %v1023 = vadd.f32 %v1021, %v1022
    %v1024 = vmul.f32 %v645, %v857
    %v1025 = vmul.f32 %v648, %v864
    %v1026 = vadd.f32 %v1024, %v1025
    %v1027 = vmul.f32 %v650, %v871
    %v1028 = vadd.f32 %v1026, %v1027
    %v1029 = vmul.f32 %v651, %v875
    %v1030 = vadd.f32 %v1028, %v1029
    %v1031 = vmul.f32 %v776, %v925
    %v1032 = vmul.f32 %v783, %v953
    %v1033 = vadd.f32 %v1031, %v1032
    %v1034 = vmul.f32 %v790, %v981
    %v1035 = vadd.f32 %v1033, %v1034
    %v1036 = vmul.f32 %v797, %v1009
    %v1037 = vadd.f32 %v1035, %v1036
    %v1038 = vsub.f32 %v411, %v1037
    %1039 = vst [vmem:[#allocation14] sm:$0xff] %v1038
    %v1040 = vmul.f32 %v776, %v932
    %v1041 = vmul.f32 %v783, %v960
    %v1042 = vadd.f32 %v1040, %v1041
    %v1043 = vmul.f32 %v790, %v988
    %v1044 = vadd.f32 %v1042, %v1043
    %v1045 = vmul.f32 %v797, %v1016
    %v1046 = vadd.f32 %v1044, %v1045
    %v1047 = vsub.f32 %v433, %v1046
    %s1048 = scalar_lea.vmem [#allocation14], 8
    %1049 = vst [vmem:[%s1048] sm:$0xff] %v1047
    %v1050 = vmul.f32 %v776, %v939
    %v1051 = vmul.f32 %v783, %v967
    %v1052 = vadd.f32 %v1050, %v1051
    %v1053 = vmul.f32 %v790, %v995
    %v1054 = vadd.f32 %v1052, %v1053
    %v1055 = vmul.f32 %v797, %v1023
    %v1056 = vadd.f32 %v1054, %v1055
    %v1057 = vsub.f32 %v481, %v1056
    %s1058 = scalar_lea.vmem [#allocation14], 16
    %1059 = vst [vmem:[%s1058] sm:$0xff] %v1057
    %v1060 = vmul.f32 %v776, %v946
    %v1061 = vmul.f32 %v783, %v974
    %v1062 = vadd.f32 %v1060, %v1061
    %v1063 = vmul.f32 %v790, %v1002
    %v1064 = vadd.f32 %v1062, %v1063
    %v1065 = vmul.f32 %v797, %v1030
    %v1066 = vadd.f32 %v1064, %v1065
    %v1067 = vsub.f32 %v560, %v1066
    %s1068 = scalar_lea.vmem [#allocation14], 24
    %1069 = vst [vmem:[%s1068] sm:$0xff] %v1067
    %v1070 = vmul.f32 %v804, %v925
    %v1071 = vmul.f32 %v810, %v953
    %v1072 = vadd.f32 %v1070, %v1071
    %v1073 = vmul.f32 %v817, %v981
    %v1074 = vadd.f32 %v1072, %v1073
    %v1075 = vmul.f32 %v824, %v1009
    %v1076 = vadd.f32 %v1074, %v1075
    %v1077 = vsub.f32 %v433, %v1076
    %s1078 = scalar_lea.vmem [#allocation14], 32
    %1079 = vst [vmem:[%s1078] sm:$0xff] %v1077
    %v1080 = vmul.f32 %v804, %v932
    %v1081 = vmul.f32 %v810, %v960
    %v1082 = vadd.f32 %v1080, %v1081
    %v1083 = vmul.f32 %v817, %v988
    %v1084 = vadd.f32 %v1082, %v1083
    %v1085 = vmul.f32 %v824, %v1016
    %v1086 = vadd.f32 %v1084, %v1085
    %v1087 = vsub.f32 %v455, %v1086
    %s1088 = scalar_lea.vmem [#allocation14], 40
    %1089 = vst [vmem:[%s1088] sm:$0xff] %v1087
    %v1090 = vmul.f32 %v804, %v939
    %v1091 = vmul.f32 %v810, %v967
    %v1092 = vadd.f32 %v1090, %v1091
    %v1093 = vmul.f32 %v817, %v995
    %v1094 = vadd.f32 %v1092, %v1093
    %v1095 = vmul.f32 %v824, %v1023
    %v1096 = vadd.f32 %v1094, %v1095
    %v1097 = vsub.f32 %v507, %v1096
    %s1098 = scalar_lea.vmem [#allocation14], 48
    %1099 = vst [vmem:[%s1098] sm:$0xff] %v1097
    %v1100 = vmul.f32 %v804, %v946
    %v1101 = vmul.f32 %v810, %v974
    %v1102 = vadd.f32 %v1100, %v1101
    %v1103 = vmul.f32 %v817, %v1002
    %v1104 = vadd.f32 %v1102, %v1103
    %v1105 = vmul.f32 %v824, %v1030
    %v1106 = vadd.f32 %v1104, %v1105
    %v1107 = vsub.f32 %v587, %v1106
    %s1108 = scalar_lea.vmem [#allocation14], 56
    %1109 = vst [vmem:[%s1108] sm:$0xff] %v1107
    %v1110 = vmul.f32 %v831, %v925
    %v1111 = vmul.f32 %v838, %v953
    %v1112 = vadd.f32 %v1110, %v1111
    %v1113 = vmul.f32 %v843, %v981
    %v1114 = vadd.f32 %v1112, %v1113
    %v1115 = vmul.f32 %v850, %v1009
    %v1116 = vadd.f32 %v1114, %v1115
    %v1117 = vsub.f32 %v481, %v1116
    %s1118 = scalar_lea.vmem [#allocation14], 64
    %1119 = vst [vmem:[%s1118] sm:$0xff] %v1117
    %v1120 = vmul.f32 %v831, %v932
    %v1121 = vmul.f32 %v838, %v960
    %v1122 = vadd.f32 %v1120, %v1121
    %v1123 = vmul.f32 %v843, %v988
    %v1124 = vadd.f32 %v1122, %v1123
    %v1125 = vmul.f32 %v850, %v1016
    %v1126 = vadd.f32 %v1124, %v1125
    %v1127 = vsub.f32 %v507, %v1126
    %s1128 = scalar_lea.vmem [#allocation14], 72
    %1129 = vst [vmem:[%s1128] sm:$0xff] %v1127
    %v1130 = vmul.f32 %v831, %v939
    %v1131 = vmul.f32 %v838, %v967
    %v1132 = vadd.f32 %v1130, %v1131
    %v1133 = vmul.f32 %v843, %v995
    %v1134 = vadd.f32 %v1132, %v1133
    %v1135 = vmul.f32 %v850, %v1023
    %v1136 = vadd.f32 %v1134, %v1135
    %v1137 = vsub.f32 %v533, %v1136
    %s1138 = scalar_lea.vmem [#allocation14], 80
    %1139 = vst [vmem:[%s1138] sm:$0xff] %v1137
    %v1140 = vmul.f32 %v831, %v946
    %v1141 = vmul.f32 %v838, %v974
    %v1142 = vadd.f32 %v1140, %v1141
    %v1143 = vmul.f32 %v843, %v1002
    %v1144 = vadd.f32 %v1142, %v1143
    %v1145 = vmul.f32 %v850, %v1030
    %v1146 = vadd.f32 %v1144, %v1145
    %v1147 = vsub.f32 %v614, %v1146
    %s1148 = scalar_lea.vmem [#allocation14], 88
    %1149 = vst [vmem:[%s1148] sm:$0xff] %v1147
    %v1150 = vmul.f32 %v857, %v925
    %v1151 = vmul.f32 %v864, %v953
    %v1152 = vadd.f32 %v1150, %v1151
    %v1153 = vmul.f32 %v871, %v981
    %v1154 = vadd.f32 %v1152, %v1153
    %v1155 = vmul.f32 %v875, %v1009
    %v1156 = vadd.f32 %v1154, %v1155
    %v1157 = vsub.f32 %v560, %v1156
    %s1158 = scalar_lea.vmem [#allocation14], 96
    %1159 = vst [vmem:[%s1158] sm:$0xff] %v1157
    %v1160 = vmul.f32 %v857, %v932
    %v1161 = vmul.f32 %v864, %v960
    %v1162 = vadd.f32 %v1160, %v1161
    %v1163 = vmul.f32 %v871, %v988
    %v1164 = vadd.f32 %v1162, %v1163
    %v1165 = vmul.f32 %v875, %v1016
    %v1166 = vadd.f32 %v1164, %v1165
    %v1167 = vsub.f32 %v587, %v1166
    %s1168 = scalar_lea.vmem [#allocation14], 104
    %1169 = vst [vmem:[%s1168] sm:$0xff] %v1167
    %v1170 = vmul.f32 %v857, %v939
    %v1171 = vmul.f32 %v864, %v967
    %v1172 = vadd.f32 %v1170, %v1171
    %v1173 = vmul.f32 %v871, %v995
    %v1174 = vadd.f32 %v1172, %v1173
    %v1175 = vmul.f32 %v875, %v1023
    %v1176 = vadd.f32 %v1174, %v1175
    %v1177 = vsub.f32 %v614, %v1176
    %s1178 = scalar_lea.vmem [#allocation14], 112
    %1179 = vst [vmem:[%s1178] sm:$0xff] %v1177
    %v1180 = vmul.f32 %v857, %v946
    %v1181 = vmul.f32 %v864, %v974
    %v1182 = vadd.f32 %v1180, %v1181
    %v1183 = vmul.f32 %v871, %v1002
    %v1184 = vadd.f32 %v1182, %v1183
    %v1185 = vmul.f32 %v875, %v1030
    %v1186 = vadd.f32 %v1184, %v1185
    %v1187 = vsub.f32 %v641, %v1186
    %s1188 = scalar_lea.vmem [#allocation14], 120
    %1189 = vst [vmem:[%s1188] sm:$0xff] %v1187
    %1190 = vst [vmem:[#allocation11] sm:$0xff] %v326
    %s1191 = scalar_lea.vmem [#allocation11], 8
    %1192 = vst [vmem:[%s1191] sm:$0xff] %v336
    %s1193 = scalar_lea.vmem [#allocation11], 16
    %1194 = vst [vmem:[%s1193] sm:$0xff] %v349
    %s1195 = scalar_lea.vmem [#allocation11], 24
    %1196 = vst [vmem:[%s1195] sm:$0xff] %v365
    // Predicated region
    $region42: #{tpu_custom_call.1} parent=1 // pred_check
      _
    $region43: #{tpu_custom_call.1} parent=1 // pred_check_branch
      %1198 = sbr.rel (0) target = $region45
    $region44: #{tpu_custom_call.1} parent=1 // pred_region
      %s1200 = ssub.s32 512, 512
      %1201 = vsyncadd [#allocation4], %s1200
      %s1202 = sshll.u32 [#allocation11], 4
      %s1203 = int_to_ptr.vmem [resolvable:$true] %s1202
      %1208 = dma.vmem_to_hbm [thread:$0]  %s1203, 512, %s5, [#allocation4], 128, 128, 8
    $region45: #{tpu_custom_call.1} parent=1 // pred_fallthru
      _
    // Predicated region
    $region46: #{tpu_custom_call.1} parent=1 // pred_check
      _
    $region47: #{tpu_custom_call.1} parent=1 // pred_check_branch
      %1210 = sbr.rel (0) target = $region49
    $region48: #{tpu_custom_call.1} parent=1 // pred_region
      %s1212 = ssub.s32 512, 512
      %1213 = vsyncadd [#allocation13], %s1212
      %s1214 = sshll.u32 [#allocation12], 4
      %s1215 = int_to_ptr.vmem [resolvable:$true] %s1214
      %1220 = dma.vmem_to_hbm [thread:$0]  %s1215, 512, %s6, [#allocation13], 128, 128, 8
    $region49: #{tpu_custom_call.1} parent=1 // pred_fallthru
      _
    // Predicated region
    $region50: #{tpu_custom_call.1} parent=1 // pred_check
      _
    $region51: #{tpu_custom_call.1} parent=1 // pred_check_branch
      %1222 = sbr.rel (0) target = $region53
    $region52: #{tpu_custom_call.1} parent=1 // pred_region
      %s1224 = ssub.s32 2048, 2048
      %1225 = vsyncadd [#allocation13], %s1224
      %s1226 = sshll.u32 [#allocation14], 4
      %s1227 = int_to_ptr.vmem [resolvable:$true] %s1226
      %1232 = dma.vmem_to_hbm [thread:$0]  %s1227, 2048, %s7, [#allocation13], 128, 128, 8
    $region53: #{tpu_custom_call.1} parent=1 // pred_fallthru
      _
    // Predicated region
    $region54: #{tpu_custom_call.1} parent=1 // pred_check
      _
    $region55: #{tpu_custom_call.1} parent=1 // pred_check_branch
      %1234 = sbr.rel (0) target = $region57
    $region56: #{tpu_custom_call.1} parent=1 // pred_region
      %1235 = dma.done [#allocation4], 512
    $region57: #{tpu_custom_call.1} parent=1 // pred_fallthru
      _
    // Predicated region
    $region58: #{tpu_custom_call.1} parent=1 // pred_check
      _
    $region59: #{tpu_custom_call.1} parent=1 // pred_check_branch
      %1237 = sbr.rel (0) target = $region61
    $region60: #{tpu_custom_call.1} parent=1 // pred_region
      %1238 = dma.done [#allocation13], 512
    $region61: #{tpu_custom_call.1} parent=1 // pred_fallthru
      _
    // Predicated region
    $region62: #{tpu_custom_call.1} parent=1 // pred_check
      _
    $region63: #{tpu_custom_call.1} parent=1 // pred_check_branch
      %1240 = sbr.rel (0) target = $region65
    $region64: #{tpu_custom_call.1} parent=1 // pred_region
      %1241 = dma.done [#allocation13], 2048
    $region65: #{tpu_custom_call.1} parent=1 // pred_fallthru
      _
    %1242 = vsyncpa [#allocation3], 1
    %1243 = vsyncpa [#allocation6], 1
    %1244 = vsyncpa [#allocation9], 1
    %1245 = vsyncpa [#allocation4], 1
    %1246 = vsyncpa [#allocation13], 1

</llo_original>
